<compile_context>
chip_gen: v7x
topology: tpu7x:2x2x1
jax: 0.10.0
libtpu: 0.0.40
codegen_flags: <defaults>
</compile_context>

<pallas_src>
import math

import jax
import jax.numpy as jnp
from jax.experimental import pallas as pl
from jax.experimental.pallas import tpu as pltpu


_LANES = 128
_VMEM_BUDGET = 32 * 1024 * 1024   # per-step working-set target for tile sizing
_VMEM_LIMIT = 48 * 1024 * 1024    # scoped VMEM limit handed to Mosaic


def _round_up(x, m):
    return (x + m - 1) // m * m


# ---------------------------------------------------------------------------
# Pallas kernel: fused im2col + 9-tap MXU GEMM + folded-BN shift + ReLU
# ---------------------------------------------------------------------------
def _make_convreg_kernel(bb, H, W, C, Npad):
    rows = bb * H * W

    def kernel(x_ref, w_ref, shift_ref, o_ref):
        # x_ref:     (bb, H+2, W+2, C)  bf16  zero-haloed NHWC activation block
        # w_ref:     (9, C, Npad)       bf16  conv weight, BN scale folded in
        # shift_ref: (1, Npad)          f32   scale*(conv_bias - mean) + beta
        # o_ref:     (rows, Npad)       f32   lane-dense output rows
        xb = x_ref[...]
        acc = jnp.zeros((rows, Npad), jnp.float32)
        # Nine shifted taps built with static VMEM slices — no im2col in HBM.
        for k in range(9):
            dy, dx = k // 3, k % 3
            tap = xb[:, dy:dy + H, dx:dx + W, :].reshape(rows, C)
            acc = acc + jnp.dot(tap, w_ref[k],
                                preferred_element_type=jnp.float32)
        y = jnp.maximum(acc + shift_ref[...], 0.0)
        o_ref[...] = y.astype(o_ref.dtype)

    return kernel


def _pick_block_b(B, H, W, C, Npad, budget=_VMEM_BUDGET):
    """Largest divisor of B whose per-step VMEM working set fits the budget."""
    def est(bb):
        rows = bb * H * W
        inp = 2 * bb * (H + 2) * (W + 2) * C * 2        # double-buffered input
        out = 2 * rows * Npad * 4                        # double-buffered output
        wgt = 2 * (9 * C * Npad * 2 + Npad * 4)          # resident weight/shift
        tmp = rows * Npad * 4 + 4 * rows * C * 2         # f32 acc + live taps
        return inp + out + wgt + tmp

    best = 1
    for bb in range(1, B + 1):
        if B % bb == 0 and est(bb) <= budget:
            best = bb
    return best


# ---------------------------------------------------------------------------
# ConvReg parameters (PyTorch-style init) + one-time GEMM-layout preparation
# ---------------------------------------------------------------------------
def init_conv_reg_params(key, ch, eps=1e-5):
    kw, kb, kg, kbe, km, kv = jax.random.split(key, 6)
    fan_in = ch * 9
    bound = 1.0 / math.sqrt(fan_in)
    w = jax.random.uniform(kw, (ch, ch, 3, 3), jnp.float32, -bound, bound)  # OIHW
    b = jax.random.uniform(kb, (ch,), jnp.float32, -bound, bound)
    gamma = jax.random.uniform(kg, (ch,), jnp.float32, 0.5, 1.5)
    beta = 0.1 * jax.random.normal(kbe, (ch,), jnp.float32)
    mean = 0.1 * jax.random.normal(km, (ch,), jnp.float32)
    var = jax.random.uniform(kv, (ch,), jnp.float32, 0.5, 1.5)
    raw = dict(w=w, b=b, gamma=gamma, beta=beta, mean=mean, var=var, eps=eps)

    # One-time prep, outside the per-call path:
    #   * OIHW -> (kh, kw, I, O) -> (9, I, O) per-tap GEMM layout
    #   * fold inference-form BN scale into the output columns, cast bf16
    #   * pad output channels to a multiple of 128 lanes (lane-dense stores)
    Npad = _round_up(ch, _LANES)
    scale = gamma / jnp.sqrt(var + eps)
    shift = scale * (b - mean) + beta
    w9 = jnp.transpose(w, (2, 3, 1, 0)).reshape(9, ch, ch)
    w9 = (w9 * scale[None, None, :]).astype(jnp.bfloat16)
    w9 = jnp.pad(w9, ((0, 0), (0, 0), (0, Npad - ch)))
    shift_p = jnp.pad(shift, (0, Npad - ch)).reshape(1, Npad).astype(jnp.float32)
    prepped = dict(w9=w9, shift=shift_p)
    return raw, prepped


# ---------------------------------------------------------------------------
# ConvReg forward (fused im2col + GEMM + BN + ReLU inside one Pallas kernel)
# ---------------------------------------------------------------------------
def conv_reg_forward(x_nchw, prepped):
    B, C, H, W = x_nchw.shape
    w9 = prepped["w9"]          # (9, C, Npad) bf16
    shift = prepped["shift"]    # (1, Npad)    f32
    Npad = w9.shape[-1]

    # Layout prep in XLA: NCHW->NHWC, 1-px zero halo, bf16 cast.  One fused
    # pass over ~1x the activation (vs the 9x-inflated im2col panel before).
    x_nhwc = jnp.transpose(x_nchw, (0, 2, 3, 1))
    x_pad = jnp.pad(x_nhwc, ((0, 0), (1, 1), (1, 1), (0, 0))).astype(jnp.bfloat16)

    block_b = _pick_block_b(B, H, W, C, Npad)
    Bp = _round_up(B, block_b)
    if Bp != B:  # only if no divisor of B fits the budget (rare); tiny halo pad
        x_pad = jnp.pad(x_pad, ((0, Bp - B), (0, 0), (0, 0), (0, 0)))
    grid_b = Bp // block_b
    rows = block_b * H * W      # GEMM rows per grid step (>= 512 when budget allows)
    M = Bp * H * W

    cost = pl.CostEstimate(
        flops=2 * M * 9 * C * Npad,
        bytes_accessed=(Bp * (H + 2) * (W + 2) * C * 2
                        + 9 * C * Npad * 2 + Npad * 4
                        + M * Npad * 4),
        transcendentals=0,
    )

    kernel = _make_convreg_kernel(block_b, H, W, C, Npad)

    y2d = pl.pallas_call(
        kernel,
        out_shape=jax.ShapeDtypeStruct((M, Npad), jnp.float32),
        grid=(grid_b,),
        in_specs=[
            pl.BlockSpec((block_b, H + 2, W + 2, C), lambda i: (i, 0, 0, 0)),
            pl.BlockSpec((9, C, Npad), lambda i: (0, 0, 0)),   # resident weight
            pl.BlockSpec((1, Npad), lambda i: (0, 0)),         # resident shift
        ],
        out_specs=pl.BlockSpec((rows, Npad), lambda i: (i, 0)),
        compiler_params=pltpu.CompilerParams(
            dimension_semantics=("parallel",),   # v7x: split batch over 2 TCs
            vmem_limit_bytes=_VMEM_LIMIT,
        ),
        cost_estimate=cost,
    )(x_pad, w9, shift)

    # Slice the real channels back out and restore NCHW (module contract).
    # TODO(synk): emit bf16 / NHWC directly if the distillation loss consumes it.
    y = y2d[:B * H * W, :C].reshape(B, H, W, C)
    return jnp.transpose(y, (0, 3, 1, 2))


# ---------------------------------------------------------------------------
# Connector: list of identity / ConvReg connectors
# ---------------------------------------------------------------------------
def make_connector(key, s_shapes, t_shapes):
    assert len(s_shapes) == len(t_shapes), "unequal length of feat list"
    connectors = []
    for s, t in zip(s_shapes, t_shapes):
        if s[1] == t[1] and s[2] == t[2]:
            connectors.append(None)  # nn.Sequential() == identity
        else:
            key, sub = jax.random.split(key)
            connectors.append(init_conv_reg_params(sub, ch=s[1]))
    return connectors


def connector_forward(connectors, g_s):
    out = []
    for conn, x in zip(connectors, g_s):
        if conn is None:
            out.append(x)
        else:
            _, prepped = conn
            out.append(conv_reg_forward(x, prepped))
    return out


# ---------------------------------------------------------------------------
# Plain-JAX reference for the ConvReg path (mirrors the kernel's bf16 folding)
# ---------------------------------------------------------------------------
def conv_reg_reference(x_nchw, raw):
    scale = raw["gamma"] / jnp.sqrt(raw["var"] + raw["eps"])
    shift = scale * (raw["b"] - raw["mean"]) + raw["beta"]
    xq = x_nchw.astype(jnp.bfloat16).astype(jnp.float32)
    wq = (raw["w"] * scale[:, None, None, None]).astype(jnp.bfloat16).astype(jnp.float32)
    y = jax.lax.conv_general_dilated(
        xq, wq, window_strides=(1, 1), padding="SAME",
        dimension_numbers=("NCHW", "OIHW", "NCHW"),
        precision=jax.lax.Precision.HIGHEST,
    )
    y = y + shift[None, :, None, None]
    return jnp.maximum(y, 0.0)


if __name__ == "__main__":
    key = jax.random.PRNGKey(0)
    B = 2
    # First pair matches (identity connector); second pair mismatches -> ConvReg.
    s_shapes = [(B, 4, 16, 16), (B, 8, 16, 16)]
    t_shapes = [(B, 4, 16, 16), (B, 8, 8, 8)]

    kc, k0, k1 = jax.random.split(key, 3)
    connectors = make_connector(kc, s_shapes, t_shapes)

    g_s = [
        jax.random.normal(k0, s_shapes[0], jnp.float32),
        jax.random.normal(k1, s_shapes[1], jnp.float32),
    ]

    out = connector_forward(connectors, g_s)
    out = jax.block_until_ready(out)

    # Identity branch: passthrough.
    assert out[0].shape == s_shapes[0]
    assert jnp.array_equal(out[0], g_s[0])

    # ConvReg branch: compare against plain-JAX conv + BN + ReLU reference.
    raw, _ = connectors[1]
    y_ref = conv_reg_reference(g_s[1], raw)
    assert out[1].shape == (B, 8, 16, 16)
    assert jnp.allclose(out[1], y_ref, atol=2e-3, rtol=2e-3), float(
        jnp.max(jnp.abs(out[1] - y_ref))
    )

    print("KERNEL_OK")
</pallas_src>

<mosaic_0001>
module attributes {stable_mosaic.version = 11 : i64} {
  func.func @kernel(%arg0: i32, %arg1: memref<2x18x18x8xbf16, #tpu.memory_space<vmem>>, %arg2: memref<9x8x128xbf16, #tpu.memory_space<vmem>>, %arg3: memref<1x128xf32, #tpu.memory_space<vmem>>, %arg4: memref<512x128xf32, #tpu.memory_space<vmem>>) attributes {dimension_semantics = [#tpu.dimension_semantics<parallel>], iteration_bounds = array<i64: 1>, scalar_prefetch = 0 : i64, scratch_operands = 0 : i64, tpu.core_type = #tpu.core_type<tc>, window_params = [{transform_indices = @transform_0, window_bounds = array<i64: 2, 18, 18, 8>}, {pipeline_mode = #tpu.pipeline_mode<synchronous>, transform_indices = @transform_1, window_bounds = array<i64: 9, 8, 128>}, {pipeline_mode = #tpu.pipeline_mode<synchronous>, transform_indices = @transform_2, window_bounds = array<i64: 1, 128>}, {transform_indices = @transform_3, window_bounds = array<i64: 512, 128>}]} {
    %c0 = arith.constant 0 : index
    %c0_0 = arith.constant 0 : index
    %c0_1 = arith.constant 0 : index
    %c0_2 = arith.constant 0 : index
    %0 = vector.load %arg1[%c0, %c0_0, %c0_1, %c0_2] : memref<2x18x18x8xbf16, #tpu.memory_space<vmem>>, vector<2x18x18x8xbf16>
    %cst = arith.constant 0.000000e+00 : f32
    %1 = vector.broadcast %cst : f32 to vector<512x128xf32>
    %2 = vector.extract_strided_slice %0 {offsets = [0, 0, 0, 0], sizes = [2, 16, 16, 8], strides = [1, 1, 1, 1]} : vector<2x18x18x8xbf16> to vector<2x16x16x8xbf16>
    %3 = vector.shape_cast %2 : vector<2x16x16x8xbf16> to vector<512x8xbf16>
    %c0_3 = arith.constant 0 : index
    %c0_4 = arith.constant 0 : index
    %c0_5 = arith.constant 0 : index
    %4 = vector.load %arg2[%c0_3, %c0_4, %c0_5] : memref<9x8x128xbf16, #tpu.memory_space<vmem>>, vector<1x8x128xbf16>
    %5 = vector.shape_cast %4 : vector<1x8x128xbf16> to vector<8x128xbf16>
    %cst_6 = arith.constant dense<0.000000e+00> : vector<512x128xf32>
    %6 = tpu.matmul %3, %5, %cst_6 {dimension_numbers = #tpu.dot_dimension_numbers<[1], [0], [0], [1], [0, 0, 1, 1], [], []>} : vector<512x8xbf16>, vector<8x128xbf16>, vector<512x128xf32> -> vector<512x128xf32>
    %7 = arith.addf %1, %6 : vector<512x128xf32>
    %8 = vector.extract_strided_slice %0 {offsets = [0, 0, 1, 0], sizes = [2, 16, 16, 8], strides = [1, 1, 1, 1]} : vector<2x18x18x8xbf16> to vector<2x16x16x8xbf16>
    %9 = vector.shape_cast %8 : vector<2x16x16x8xbf16> to vector<512x8xbf16>
    %c1 = arith.constant 1 : index
    %c0_7 = arith.constant 0 : index
    %c0_8 = arith.constant 0 : index
    %10 = vector.load %arg2[%c1, %c0_7, %c0_8] : memref<9x8x128xbf16, #tpu.memory_space<vmem>>, vector<1x8x128xbf16>
    %11 = vector.shape_cast %10 : vector<1x8x128xbf16> to vector<8x128xbf16>
    %cst_9 = arith.constant dense<0.000000e+00> : vector<512x128xf32>
    %12 = tpu.matmul %9, %11, %cst_9 {dimension_numbers = #tpu.dot_dimension_numbers<[1], [0], [0], [1], [0, 0, 1, 1], [], []>} : vector<512x8xbf16>, vector<8x128xbf16>, vector<512x128xf32> -> vector<512x128xf32>
    %13 = arith.addf %7, %12 : vector<512x128xf32>
    %14 = vector.extract_strided_slice %0 {offsets = [0, 0, 2, 0], sizes = [2, 16, 16, 8], strides = [1, 1, 1, 1]} : vector<2x18x18x8xbf16> to vector<2x16x16x8xbf16>
    %15 = vector.shape_cast %14 : vector<2x16x16x8xbf16> to vector<512x8xbf16>
    %c2 = arith.constant 2 : index
    %c0_10 = arith.constant 0 : index
    %c0_11 = arith.constant 0 : index
    %16 = vector.load %arg2[%c2, %c0_10, %c0_11] : memref<9x8x128xbf16, #tpu.memory_space<vmem>>, vector<1x8x128xbf16>
    %17 = vector.shape_cast %16 : vector<1x8x128xbf16> to vector<8x128xbf16>
    %cst_12 = arith.constant dense<0.000000e+00> : vector<512x128xf32>
    %18 = tpu.matmul %15, %17, %cst_12 {dimension_numbers = #tpu.dot_dimension_numbers<[1], [0], [0], [1], [0, 0, 1, 1], [], []>} : vector<512x8xbf16>, vector<8x128xbf16>, vector<512x128xf32> -> vector<512x128xf32>
    %19 = arith.addf %13, %18 : vector<512x128xf32>
    %20 = vector.extract_strided_slice %0 {offsets = [0, 1, 0, 0], sizes = [2, 16, 16, 8], strides = [1, 1, 1, 1]} : vector<2x18x18x8xbf16> to vector<2x16x16x8xbf16>
    %21 = vector.shape_cast %20 : vector<2x16x16x8xbf16> to vector<512x8xbf16>
    %c3 = arith.constant 3 : index
    %c0_13 = arith.constant 0 : index
    %c0_14 = arith.constant 0 : index
    %22 = vector.load %arg2[%c3, %c0_13, %c0_14] : memref<9x8x128xbf16, #tpu.memory_space<vmem>>, vector<1x8x128xbf16>
    %23 = vector.shape_cast %22 : vector<1x8x128xbf16> to vector<8x128xbf16>
    %cst_15 = arith.constant dense<0.000000e+00> : vector<512x128xf32>
    %24 = tpu.matmul %21, %23, %cst_15 {dimension_numbers = #tpu.dot_dimension_numbers<[1], [0], [0], [1], [0, 0, 1, 1], [], []>} : vector<512x8xbf16>, vector<8x128xbf16>, vector<512x128xf32> -> vector<512x128xf32>
    %25 = arith.addf %19, %24 : vector<512x128xf32>
    %26 = vector.extract_strided_slice %0 {offsets = [0, 1, 1, 0], sizes = [2, 16, 16, 8], strides = [1, 1, 1, 1]} : vector<2x18x18x8xbf16> to vector<2x16x16x8xbf16>
    %27 = vector.shape_cast %26 : vector<2x16x16x8xbf16> to vector<512x8xbf16>
    %c4 = arith.constant 4 : index
    %c0_16 = arith.constant 0 : index
    %c0_17 = arith.constant 0 : index
    %28 = vector.load %arg2[%c4, %c0_16, %c0_17] : memref<9x8x128xbf16, #tpu.memory_space<vmem>>, vector<1x8x128xbf16>
    %29 = vector.shape_cast %28 : vector<1x8x128xbf16> to vector<8x128xbf16>
    %cst_18 = arith.constant dense<0.000000e+00> : vector<512x128xf32>
    %30 = tpu.matmul %27, %29, %cst_18 {dimension_numbers = #tpu.dot_dimension_numbers<[1], [0], [0], [1], [0, 0, 1, 1], [], []>} : vector<512x8xbf16>, vector<8x128xbf16>, vector<512x128xf32> -> vector<512x128xf32>
    %31 = arith.addf %25, %30 : vector<512x128xf32>
    %32 = vector.extract_strided_slice %0 {offsets = [0, 1, 2, 0], sizes = [2, 16, 16, 8], strides = [1, 1, 1, 1]} : vector<2x18x18x8xbf16> to vector<2x16x16x8xbf16>
    %33 = vector.shape_cast %32 : vector<2x16x16x8xbf16> to vector<512x8xbf16>
    %c5 = arith.constant 5 : index
    %c0_19 = arith.constant 0 : index
    %c0_20 = arith.constant 0 : index
    %34 = vector.load %arg2[%c5, %c0_19, %c0_20] : memref<9x8x128xbf16, #tpu.memory_space<vmem>>, vector<1x8x128xbf16>
    %35 = vector.shape_cast %34 : vector<1x8x128xbf16> to vector<8x128xbf16>
    %cst_21 = arith.constant dense<0.000000e+00> : vector<512x128xf32>
    %36 = tpu.matmul %33, %35, %cst_21 {dimension_numbers = #tpu.dot_dimension_numbers<[1], [0], [0], [1], [0, 0, 1, 1], [], []>} : vector<512x8xbf16>, vector<8x128xbf16>, vector<512x128xf32> -> vector<512x128xf32>
    %37 = arith.addf %31, %36 : vector<512x128xf32>
    %38 = vector.extract_strided_slice %0 {offsets = [0, 2, 0, 0], sizes = [2, 16, 16, 8], strides = [1, 1, 1, 1]} : vector<2x18x18x8xbf16> to vector<2x16x16x8xbf16>
    %39 = vector.shape_cast %38 : vector<2x16x16x8xbf16> to vector<512x8xbf16>
    %c6 = arith.constant 6 : index
    %c0_22 = arith.constant 0 : index
    %c0_23 = arith.constant 0 : index
    %40 = vector.load %arg2[%c6, %c0_22, %c0_23] : memref<9x8x128xbf16, #tpu.memory_space<vmem>>, vector<1x8x128xbf16>
    %41 = vector.shape_cast %40 : vector<1x8x128xbf16> to vector<8x128xbf16>
    %cst_24 = arith.constant dense<0.000000e+00> : vector<512x128xf32>
    %42 = tpu.matmul %39, %41, %cst_24 {dimension_numbers = #tpu.dot_dimension_numbers<[1], [0], [0], [1], [0, 0, 1, 1], [], []>} : vector<512x8xbf16>, vector<8x128xbf16>, vector<512x128xf32> -> vector<512x128xf32>
    %43 = arith.addf %37, %42 : vector<512x128xf32>
    %44 = vector.extract_strided_slice %0 {offsets = [0, 2, 1, 0], sizes = [2, 16, 16, 8], strides = [1, 1, 1, 1]} : vector<2x18x18x8xbf16> to vector<2x16x16x8xbf16>
    %45 = vector.shape_cast %44 : vector<2x16x16x8xbf16> to vector<512x8xbf16>
    %c7 = arith.constant 7 : index
    %c0_25 = arith.constant 0 : index
    %c0_26 = arith.constant 0 : index
    %46 = vector.load %arg2[%c7, %c0_25, %c0_26] : memref<9x8x128xbf16, #tpu.memory_space<vmem>>, vector<1x8x128xbf16>
    %47 = vector.shape_cast %46 : vector<1x8x128xbf16> to vector<8x128xbf16>
    %cst_27 = arith.constant dense<0.000000e+00> : vector<512x128xf32>
    %48 = tpu.matmul %45, %47, %cst_27 {dimension_numbers = #tpu.dot_dimension_numbers<[1], [0], [0], [1], [0, 0, 1, 1], [], []>} : vector<512x8xbf16>, vector<8x128xbf16>, vector<512x128xf32> -> vector<512x128xf32>
    %49 = arith.addf %43, %48 : vector<512x128xf32>
    %50 = vector.extract_strided_slice %0 {offsets = [0, 2, 2, 0], sizes = [2, 16, 16, 8], strides = [1, 1, 1, 1]} : vector<2x18x18x8xbf16> to vector<2x16x16x8xbf16>
    %51 = vector.shape_cast %50 : vector<2x16x16x8xbf16> to vector<512x8xbf16>
    %c8 = arith.constant 8 : index
    %c0_28 = arith.constant 0 : index
    %c0_29 = arith.constant 0 : index
    %52 = vector.load %arg2[%c8, %c0_28, %c0_29] : memref<9x8x128xbf16, #tpu.memory_space<vmem>>, vector<1x8x128xbf16>
    %53 = vector.shape_cast %52 : vector<1x8x128xbf16> to vector<8x128xbf16>
    %cst_30 = arith.constant dense<0.000000e+00> : vector<512x128xf32>
    %54 = tpu.matmul %51, %53, %cst_30 {dimension_numbers = #tpu.dot_dimension_numbers<[1], [0], [0], [1], [0, 0, 1, 1], [], []>} : vector<512x8xbf16>, vector<8x128xbf16>, vector<512x128xf32> -> vector<512x128xf32>
    %55 = arith.addf %49, %54 : vector<512x128xf32>
    %c0_31 = arith.constant 0 : index
    %c0_32 = arith.constant 0 : index
    %56 = vector.load %arg3[%c0_31, %c0_32] : memref<1x128xf32, #tpu.memory_space<vmem>>, vector<1x128xf32>
    %57 = vector.broadcast %56 : vector<1x128xf32> to vector<512x128xf32>
    %58 = arith.addf %55, %57 : vector<512x128xf32>
    %cst_33 = arith.constant 0.000000e+00 : f32
    %59 = vector.broadcast %cst_33 : f32 to vector<512x128xf32>
    %60 = arith.maximumf %58, %59 : vector<512x128xf32>
    %c0_34 = arith.constant 0 : index
    %c0_35 = arith.constant 0 : index
    %61 = vector.load %arg4[%c0_34, %c0_35] : memref<512x128xf32, #tpu.memory_space<vmem>>, vector<512x128xf32>
    tpu.vector_store %arg4[%c0_34, %c0_35], %60 {strides = array<i32>} : memref<512x128xf32, #tpu.memory_space<vmem>>, vector<512x128xf32>,
    return
  }
  func.func @transform_0(%arg0: i32) -> (i32, i32, i32, i32) {
    %c0_i32 = arith.constant 0 : i32
    %c0_i32_0 = arith.constant 0 : i32
    %c0_i32_1 = arith.constant 0 : i32
    %c0_i32_2 = arith.constant 0 : i32
    return %arg0, %c0_i32, %c0_i32_0, %c0_i32_1 : i32, i32, i32, i32
  }
  func.func @transform_1(%arg0: i32) -> (i32, i32, i32) {
    %c0_i32 = arith.constant 0 : i32
    %c0_i32_0 = arith.constant 0 : i32
    %c0_i32_1 = arith.constant 0 : i32
    %c0_i32_2 = arith.constant 0 : i32
    return %c0_i32, %c0_i32_0, %c0_i32_1 : i32, i32, i32
  }
  func.func @transform_2(%arg0: i32) -> (i32, i32) {
    %c0_i32 = arith.constant 0 : i32
    %c0_i32_0 = arith.constant 0 : i32
    %c0_i32_1 = arith.constant 0 : i32
    return %c0_i32, %c0_i32_0 : i32, i32
  }
  func.func @transform_3(%arg0: i32) -> (i32, i32) {
    %c0_i32 = arith.constant 0 : i32
    %c0_i32_0 = arith.constant 0 : i32
    return %arg0, %c0_i32 : i32, i32
  }
}

</mosaic_0001>

<llo_original>
// kernel: tpu_custom_call.1
$region0: #{tpu_custom_call.1}
  #allocation0 [shape = 'u32[]', space=smem, size = 0x4, offset = 0x4, fixed_abs, tag = 'smem constant byte address 0x4 - core index']
  #allocation1 [shape = 'u32[144,128]{1,0:T(1,128)}', space=vmem, size = 0x12000, scoped, tag = 'internal scratch']
  %s0 = inlined_call_operand.vmem [shape: bf16[2,18,18,8], index: 0, kind: input, shape index: {}]
  %s1 = inlined_call_operand.vmem [shape: bf16[9,8,128], index: 1, kind: input, shape index: {}]
  %s2 = inlined_call_operand.vmem [shape: f32[1,128], index: 2, kind: input, shape index: {}]
  %s3 = inlined_call_operand.hbm [shape: f32[512,128], index: 3, kind: output, shape index: {}]
  %s4 = sld [smem:[#allocation0]]
  $region22: #{tpu_custom_call.1} parent=0
    _
  %s6 = ssub.s32 1, %s4
  %s7 = scalar_select 0, %s6, %s4
  $region1: #{tpu_custom_call.1} parent=0
    #allocation2 [shape = 'u8[262144]{0}', space=vmem, size = 0x40000, scoped, tag = 'output window, operand 0, single buffered']
    #allocation3 [shape = 's32[1]{0}', space=sflag, size = 0x4, scoped, tag = 'scoped memory for tpu_custom_call.1']
    %8 = vsyncpa [#allocation3], 0
    // Predicated region
    $region2: #{tpu_custom_call.1} parent=1 // pred_check
      _
    $region3: #{tpu_custom_call.1} parent=1 // pred_check_branch
      %10 = sbr.rel (0) target = $region5
    $region4: #{tpu_custom_call.1} parent=1 // pred_region
      _
    $region5: #{tpu_custom_call.1} parent=1 // pred_fallthru
      _
    // Predicated region
    $region6: #{tpu_custom_call.1} parent=1 // pred_check
      _
    $region7: #{tpu_custom_call.1} parent=1 // pred_check_branch
      %12 = sbr.rel (0) target = $region9
    $region8: #{tpu_custom_call.1} parent=1 // pred_region
      _
    $region9: #{tpu_custom_call.1} parent=1 // pred_fallthru
      _
    // Predicated region
    $region10: #{tpu_custom_call.1} parent=1 // pred_check
      _
    $region11: #{tpu_custom_call.1} parent=1 // pred_check_branch
      %14 = sbr.rel (0) target = $region13
    $region12: #{tpu_custom_call.1} parent=1 // pred_region
      _
    $region13: #{tpu_custom_call.1} parent=1 // pred_fallthru
      _
    %v16 = vld [vmem:[%s0] sm:$0xf]
    %v17 = vld [vmem:[%s0 + $0x4] sm:$0xf]
    %v18 = vld [vmem:[%s0 + $0x8] sm:$0x1]
    %v19 = vld [vmem:[%s0 + $0xc] sm:$0xf]
    %v20 = vld [vmem:[%s0 + $0x10] sm:$0xf]
    %v21 = vld [vmem:[%s0 + $0x14] sm:$0x1]
    %v22 = vld [vmem:[%s0 + $0x18] sm:$0xf]
    %v23 = vld [vmem:[%s0 + $0x1c] sm:$0xf]
    %v24 = vld [vmem:[%s0 + $0x20] sm:$0x1]
    %v25 = vld [vmem:[%s0 + $0x24] sm:$0xf]
    %v26 = vld [vmem:[%s0 + $0x28] sm:$0xf]
    %v27 = vld [vmem:[%s0 + $0x2c] sm:$0x1]
    %v28 = vld [vmem:[%s0 + $0x30] sm:$0xf]
    %v29 = vld [vmem:[%s0 + $0x34] sm:$0xf]
    %v30 = vld [vmem:[%s0 + $0x38] sm:$0x1]
    %v31 = vld [vmem:[%s0 + $0x3c] sm:$0xf]
    %v32 = vld [vmem:[%s0 + $0x40] sm:$0xf]
    %v33 = vld [vmem:[%s0 + $0x44] sm:$0x1]
    %v34 = vld [vmem:[%s0 + $0x48] sm:$0xf]
    %v35 = vld [vmem:[%s0 + $0x4c] sm:$0xf]
    %v36 = vld [vmem:[%s0 + $0x50] sm:$0x1]
    %v37 = vld [vmem:[%s0 + $0x54] sm:$0xf]
    %v38 = vld [vmem:[%s0 + $0x58] sm:$0xf]
    %v39 = vld [vmem:[%s0 + $0x5c] sm:$0x1]
    %v40 = vld [vmem:[%s0 + $0x60] sm:$0xf]
    %v41 = vld [vmem:[%s0 + $0x64] sm:$0xf]
    %v42 = vld [vmem:[%s0 + $0x68] sm:$0x1]
    %v43 = vld [vmem:[%s0 + $0x6c] sm:$0xf]
    %v44 = vld [vmem:[%s0 + $0x70] sm:$0xf]
    %v45 = vld [vmem:[%s0 + $0x74] sm:$0x1]
    %v46 = vld [vmem:[%s0 + $0x78] sm:$0xf]
    %v47 = vld [vmem:[%s0 + $0x7c] sm:$0xf]
    %v48 = vld [vmem:[%s0 + $0x80] sm:$0x1]
    %v49 = vld [vmem:[%s0 + $0x84] sm:$0xf]
    %v50 = vld [vmem:[%s0 + $0x88] sm:$0xf]
    %v51 = vld [vmem:[%s0 + $0x8c] sm:$0x1]
    %v52 = vld [vmem:[%s0 + $0x90] sm:$0xf]
    %v53 = vld [vmem:[%s0 + $0x94] sm:$0xf]
    %v54 = vld [vmem:[%s0 + $0x98] sm:$0x1]
    %v55 = vld [vmem:[%s0 + $0x9c] sm:$0xf]
    %v56 = vld [vmem:[%s0 + $0xa0] sm:$0xf]
    %v57 = vld [vmem:[%s0 + $0xa4] sm:$0x1]
    %v58 = vld [vmem:[%s0 + $0xa8] sm:$0xf]
    %v59 = vld [vmem:[%s0 + $0xac] sm:$0xf]
    %v60 = vld [vmem:[%s0 + $0xb0] sm:$0x1]
    %v61 = vld [vmem:[%s0 + $0xb4] sm:$0xf]
    %v62 = vld [vmem:[%s0 + $0xb8] sm:$0xf]
    %v63 = vld [vmem:[%s0 + $0xbc] sm:$0x1]
    %v64 = vld [vmem:[%s0 + $0xc0] sm:$0xf]
    %v65 = vld [vmem:[%s0 + $0xc4] sm:$0xf]
    %v66 = vld [vmem:[%s0 + $0xc8] sm:$0x1]
    %v67 = vld [vmem:[%s0 + $0xcc] sm:$0xf]
    %v68 = vld [vmem:[%s0 + $0xd0] sm:$0xf]
    %v69 = vld [vmem:[%s0 + $0xd4] sm:$0x1]
    %v70 = vld [vmem:[%s0 + $0xd8] sm:$0xf]
    %v71 = vld [vmem:[%s0 + $0xdc] sm:$0xf]
    %v72 = vld [vmem:[%s0 + $0xe0] sm:$0x1]
    %v73 = vld [vmem:[%s0 + $0xe4] sm:$0xf]
    %v74 = vld [vmem:[%s0 + $0xe8] sm:$0xf]
    %v75 = vld [vmem:[%s0 + $0xec] sm:$0x1]
    %v76 = vld [vmem:[%s0 + $0xf0] sm:$0xf]
    %v77 = vld [vmem:[%s0 + $0xf4] sm:$0xf]
    %v78 = vld [vmem:[%s0 + $0xf8] sm:$0x1]
    %v79 = vld [vmem:[%s0 + $0xfc] sm:$0xf]
    %v80 = vld [vmem:[%s0 + $0x100] sm:$0xf]
    %v81 = vld [vmem:[%s0 + $0x104] sm:$0x1]
    %v82 = vld [vmem:[%s0 + $0x108] sm:$0xf]
    %v83 = vld [vmem:[%s0 + $0x10c] sm:$0xf]
    %v84 = vld [vmem:[%s0 + $0x110] sm:$0x1]
    %v85 = vld [vmem:[%s0 + $0x114] sm:$0xf]
    %v86 = vld [vmem:[%s0 + $0x118] sm:$0xf]
    %v87 = vld [vmem:[%s0 + $0x11c] sm:$0x1]
    %v88 = vld [vmem:[%s0 + $0x120] sm:$0xf]
    %v89 = vld [vmem:[%s0 + $0x124] sm:$0xf]
    %v90 = vld [vmem:[%s0 + $0x128] sm:$0x1]
    %v91 = vld [vmem:[%s0 + $0x12c] sm:$0xf]
    %v92 = vld [vmem:[%s0 + $0x130] sm:$0xf]
    %v93 = vld [vmem:[%s0 + $0x134] sm:$0x1]
    %v94 = vld [vmem:[%s0 + $0x138] sm:$0xf]
    %v95 = vld [vmem:[%s0 + $0x13c] sm:$0xf]
    %v96 = vld [vmem:[%s0 + $0x140] sm:$0x1]
    %v97 = vld [vmem:[%s0 + $0x144] sm:$0xf]
    %v98 = vld [vmem:[%s0 + $0x148] sm:$0xf]
    %v99 = vld [vmem:[%s0 + $0x14c] sm:$0x1]
    %v100 = vld [vmem:[%s0 + $0x150] sm:$0xf]
    %v101 = vld [vmem:[%s0 + $0x154] sm:$0xf]
    %v102 = vld [vmem:[%s0 + $0x158] sm:$0x1]
    %v103 = vld [vmem:[%s0 + $0x15c] sm:$0xf]
    %v104 = vld [vmem:[%s0 + $0x160] sm:$0xf]
    %v105 = vld [vmem:[%s0 + $0x164] sm:$0x1]
    %v106 = vld [vmem:[%s0 + $0x168] sm:$0xf]
    %v107 = vld [vmem:[%s0 + $0x16c] sm:$0xf]
    %v108 = vld [vmem:[%s0 + $0x170] sm:$0x1]
    %v109 = vld [vmem:[%s0 + $0x174] sm:$0xf]
    %v110 = vld [vmem:[%s0 + $0x178] sm:$0xf]
    %v111 = vld [vmem:[%s0 + $0x17c] sm:$0x1]
    %v112 = vld [vmem:[%s0 + $0x180] sm:$0xf]
    %v113 = vld [vmem:[%s0 + $0x184] sm:$0xf]
    %v114 = vld [vmem:[%s0 + $0x188] sm:$0x1]
    %v115 = vld [vmem:[%s0 + $0x18c] sm:$0xf]
    %v116 = vld [vmem:[%s0 + $0x190] sm:$0xf]
    %v117 = vld [vmem:[%s0 + $0x194] sm:$0x1]
    %v118 = vld [vmem:[%s0 + $0x198] sm:$0xf]
    %v119 = vld [vmem:[%s0 + $0x19c] sm:$0xf]
    %v120 = vld [vmem:[%s0 + $0x1a0] sm:$0x1]
    %v121 = vld [vmem:[%s0 + $0x1a4] sm:$0xf]
    %v122 = vld [vmem:[%s0 + $0x1a8] sm:$0xf]
    %v123 = vld [vmem:[%s0 + $0x1ac] sm:$0x1]
    %v124 = vld [vmem:[%s1] sm:$0xf]
    %vm125 = vsmask.f32 3328
    %vm126 = vsmask.f32 7440
    %vm127 = vmor %vm125, %vm126
    %v129 = vshrl.u32 %v16, 16
    %v131 = vrot.slane %v129, 4
    %v132 = vshll.u32 %v16, 16
    %v134 = vrot.slane %v132, 5
    %v135 = vor.u32 %v131, %v134
    %v136 = vrot.slane %v135, 4
    %v138 = vshll.u32 %v17, 16
    %v140 = vrot.slane %v138, 5
    %v141 = vsel %vm127, %v136, %v140
    %v142 = vshrl.u32 %v17, 16
    %v144 = vrot.slane %v142, 4
    %v145 = vor.u32 %v144, %v140
    %v146 = vrot.slane %v145, 4
    %v148 = vshll.u32 %v18, 16
    %v150 = vrot.slane %v148, 5
    %v151 = vsel %vm127, %v146, %v150
    %v153 = vshrl.u32 %v19, 16
    %v155 = vrot.slane %v153, 4
    %v156 = vshll.u32 %v19, 16
    %v158 = vrot.slane %v156, 5
    %v159 = vor.u32 %v155, %v158
    %v160 = vrot.slane %v159, 4
    %v162 = vshll.u32 %v20, 16
    %v164 = vrot.slane %v162, 5
    %v165 = vsel %vm127, %v160, %v164
    %v166 = vshrl.u32 %v20, 16
    %v168 = vrot.slane %v166, 4
    %v169 = vor.u32 %v168, %v164
    %v170 = vrot.slane %v169, 4
    %v172 = vshll.u32 %v21, 16
    %v174 = vrot.slane %v172, 5
    %v175 = vsel %vm127, %v170, %v174
    %v177 = vshrl.u32 %v22, 16
    %v179 = vrot.slane %v177, 4
    %v180 = vshll.u32 %v22, 16
    %v182 = vrot.slane %v180, 5
    %v183 = vor.u32 %v179, %v182
    %v184 = vrot.slane %v183, 4
    %v186 = vshll.u32 %v23, 16
    %v188 = vrot.slane %v186, 5
    %v189 = vsel %vm127, %v184, %v188
    %v190 = vshrl.u32 %v23, 16
    %v192 = vrot.slane %v190, 4
    %v193 = vor.u32 %v192, %v188
    %v194 = vrot.slane %v193, 4
    %v196 = vshll.u32 %v24, 16
    %v198 = vrot.slane %v196, 5
    %v199 = vsel %vm127, %v194, %v198
    %v201 = vshrl.u32 %v25, 16
    %v203 = vrot.slane %v201, 4
    %v204 = vshll.u32 %v25, 16
    %v206 = vrot.slane %v204, 5
    %v207 = vor.u32 %v203, %v206
    %v208 = vrot.slane %v207, 4
    %v210 = vshll.u32 %v26, 16
    %v212 = vrot.slane %v210, 5
    %v213 = vsel %vm127, %v208, %v212
    %v214 = vshrl.u32 %v26, 16
    %v216 = vrot.slane %v214, 4
    %v217 = vor.u32 %v216, %v212
    %v218 = vrot.slane %v217, 4
    %v220 = vshll.u32 %v27, 16
    %v222 = vrot.slane %v220, 5
    %v223 = vsel %vm127, %v218, %v222
    %v225 = vshrl.u32 %v28, 16
    %v227 = vrot.slane %v225, 4
    %v228 = vshll.u32 %v28, 16
    %v230 = vrot.slane %v228, 5
    %v231 = vor.u32 %v227, %v230
    %v232 = vrot.slane %v231, 4
    %v234 = vshll.u32 %v29, 16
    %v236 = vrot.slane %v234, 5
    %v237 = vsel %vm127, %v232, %v236
    %v238 = vshrl.u32 %v29, 16
    %v240 = vrot.slane %v238, 4
    %v241 = vor.u32 %v240, %v236
    %v242 = vrot.slane %v241, 4
    %v244 = vshll.u32 %v30, 16
    %v246 = vrot.slane %v244, 5
    %v247 = vsel %vm127, %v242, %v246
    %v249 = vshrl.u32 %v31, 16
    %v251 = vrot.slane %v249, 4
    %v252 = vshll.u32 %v31, 16
    %v254 = vrot.slane %v252, 5
    %v255 = vor.u32 %v251, %v254
    %v256 = vrot.slane %v255, 4
    %v258 = vshll.u32 %v32, 16
    %v260 = vrot.slane %v258, 5
    %v261 = vsel %vm127, %v256, %v260
    %v262 = vshrl.u32 %v32, 16
    %v264 = vrot.slane %v262, 4
    %v265 = vor.u32 %v264, %v260
    %v266 = vrot.slane %v265, 4
    %v268 = vshll.u32 %v33, 16
    %v270 = vrot.slane %v268, 5
    %v271 = vsel %vm127, %v266, %v270
    %v273 = vshrl.u32 %v34, 16
    %v275 = vrot.slane %v273, 4
    %v276 = vshll.u32 %v34, 16
    %v278 = vrot.slane %v276, 5
    %v279 = vor.u32 %v275, %v278
    %v280 = vrot.slane %v279, 4
    %v282 = vshll.u32 %v35, 16
    %v284 = vrot.slane %v282, 5
    %v285 = vsel %vm127, %v280, %v284
    %v286 = vshrl.u32 %v35, 16
    %v288 = vrot.slane %v286, 4
    %v289 = vor.u32 %v288, %v284
    %v290 = vrot.slane %v289, 4
    %v292 = vshll.u32 %v36, 16
    %v294 = vrot.slane %v292, 5
    %v295 = vsel %vm127, %v290, %v294
    %v297 = vshrl.u32 %v37, 16
    %v299 = vrot.slane %v297, 4
    %v300 = vshll.u32 %v37, 16
    %v302 = vrot.slane %v300, 5
    %v303 = vor.u32 %v299, %v302
    %v304 = vrot.slane %v303, 4
    %v306 = vshll.u32 %v38, 16
    %v308 = vrot.slane %v306, 5
    %v309 = vsel %vm127, %v304, %v308
    %v310 = vshrl.u32 %v38, 16
    %v312 = vrot.slane %v310, 4
    %v313 = vor.u32 %v312, %v308
    %v314 = vrot.slane %v313, 4
    %v316 = vshll.u32 %v39, 16
    %v318 = vrot.slane %v316, 5
    %v319 = vsel %vm127, %v314, %v318
    %v321 = vshrl.u32 %v40, 16
    %v323 = vrot.slane %v321, 4
    %v324 = vshll.u32 %v40, 16
    %v326 = vrot.slane %v324, 5
    %v327 = vor.u32 %v323, %v326
    %v328 = vrot.slane %v327, 4
    %v330 = vshll.u32 %v41, 16
    %v332 = vrot.slane %v330, 5
    %v333 = vsel %vm127, %v328, %v332
    %v334 = vshrl.u32 %v41, 16
    %v336 = vrot.slane %v334, 4
    %v337 = vor.u32 %v336, %v332
    %v338 = vrot.slane %v337, 4
    %v340 = vshll.u32 %v42, 16
    %v342 = vrot.slane %v340, 5
    %v343 = vsel %vm127, %v338, %v342
    %v345 = vshrl.u32 %v43, 16
    %v347 = vrot.slane %v345, 4
    %v348 = vshll.u32 %v43, 16
    %v350 = vrot.slane %v348, 5
    %v351 = vor.u32 %v347, %v350
    %v352 = vrot.slane %v351, 4
    %v354 = vshll.u32 %v44, 16
    %v356 = vrot.slane %v354, 5
    %v357 = vsel %vm127, %v352, %v356
    %v358 = vshrl.u32 %v44, 16
    %v360 = vrot.slane %v358, 4
    %v361 = vor.u32 %v360, %v356
    %v362 = vrot.slane %v361, 4
    %v364 = vshll.u32 %v45, 16
    %v366 = vrot.slane %v364, 5
    %v367 = vsel %vm127, %v362, %v366
    %v369 = vshrl.u32 %v46, 16
    %v371 = vrot.slane %v369, 4
    %v372 = vshll.u32 %v46, 16
    %v374 = vrot.slane %v372, 5
    %v375 = vor.u32 %v371, %v374
    %v376 = vrot.slane %v375, 4
    %v378 = vshll.u32 %v47, 16
    %v380 = vrot.slane %v378, 5
    %v381 = vsel %vm127, %v376, %v380
    %v382 = vshrl.u32 %v47, 16
    %v384 = vrot.slane %v382, 4
    %v385 = vor.u32 %v384, %v380
    %v386 = vrot.slane %v385, 4
    %v388 = vshll.u32 %v48, 16
    %v390 = vrot.slane %v388, 5
    %v391 = vsel %vm127, %v386, %v390
    %v393 = vshrl.u32 %v49, 16
    %v395 = vrot.slane %v393, 4
    %v396 = vshll.u32 %v49, 16
    %v398 = vrot.slane %v396, 5
    %v399 = vor.u32 %v395, %v398
    %v400 = vrot.slane %v399, 4
    %v402 = vshll.u32 %v50, 16
    %v404 = vrot.slane %v402, 5
    %v405 = vsel %vm127, %v400, %v404
    %v406 = vshrl.u32 %v50, 16
    %v408 = vrot.slane %v406, 4
    %v409 = vor.u32 %v408, %v404
    %v410 = vrot.slane %v409, 4
    %v412 = vshll.u32 %v51, 16
    %v414 = vrot.slane %v412, 5
    %v415 = vsel %vm127, %v410, %v414
    %v417 = vshrl.u32 %v52, 16
    %v419 = vrot.slane %v417, 4
    %v420 = vshll.u32 %v52, 16
    %v422 = vrot.slane %v420, 5
    %v423 = vor.u32 %v419, %v422
    %v424 = vrot.slane %v423, 4
    %v426 = vshll.u32 %v53, 16
    %v428 = vrot.slane %v426, 5
    %v429 = vsel %vm127, %v424, %v428
    %v430 = vshrl.u32 %v53, 16
    %v432 = vrot.slane %v430, 4
    %v433 = vor.u32 %v432, %v428
    %v434 = vrot.slane %v433, 4
    %v436 = vshll.u32 %v54, 16
    %v438 = vrot.slane %v436, 5
    %v439 = vsel %vm127, %v434, %v438
    %v441 = vshrl.u32 %v55, 16
    %v443 = vrot.slane %v441, 4
    %v444 = vshll.u32 %v55, 16
    %v446 = vrot.slane %v444, 5
    %v447 = vor.u32 %v443, %v446
    %v448 = vrot.slane %v447, 4
    %v450 = vshll.u32 %v56, 16
    %v452 = vrot.slane %v450, 5
    %v453 = vsel %vm127, %v448, %v452
    %v454 = vshrl.u32 %v56, 16
    %v456 = vrot.slane %v454, 4
    %v457 = vor.u32 %v456, %v452
    %v458 = vrot.slane %v457, 4
    %v460 = vshll.u32 %v57, 16
    %v462 = vrot.slane %v460, 5
    %v463 = vsel %vm127, %v458, %v462
    %v465 = vshrl.u32 %v58, 16
    %v467 = vrot.slane %v465, 4
    %v468 = vshll.u32 %v58, 16
    %v470 = vrot.slane %v468, 5
    %v471 = vor.u32 %v467, %v470
    %v472 = vrot.slane %v471, 4
    %v474 = vshll.u32 %v59, 16
    %v476 = vrot.slane %v474, 5
    %v477 = vsel %vm127, %v472, %v476
    %v478 = vshrl.u32 %v59, 16
    %v480 = vrot.slane %v478, 4
    %v481 = vor.u32 %v480, %v476
    %v482 = vrot.slane %v481, 4
    %v484 = vshll.u32 %v60, 16
    %v486 = vrot.slane %v484, 5
    %v487 = vsel %vm127, %v482, %v486
    %v489 = vshrl.u32 %v61, 16
    %v491 = vrot.slane %v489, 4
    %v492 = vshll.u32 %v61, 16
    %v494 = vrot.slane %v492, 5
    %v495 = vor.u32 %v491, %v494
    %v496 = vrot.slane %v495, 4
    %v498 = vshll.u32 %v62, 16
    %v500 = vrot.slane %v498, 5
    %v501 = vsel %vm127, %v496, %v500
    %v502 = vshrl.u32 %v62, 16
    %v504 = vrot.slane %v502, 4
    %v505 = vor.u32 %v504, %v500
    %v506 = vrot.slane %v505, 4
    %v508 = vshll.u32 %v63, 16
    %v510 = vrot.slane %v508, 5
    %v511 = vsel %vm127, %v506, %v510
    %v513 = vshrl.u32 %v70, 16
    %v515 = vrot.slane %v513, 4
    %v516 = vshll.u32 %v70, 16
    %v518 = vrot.slane %v516, 5
    %v519 = vor.u32 %v515, %v518
    %v520 = vrot.slane %v519, 4
    %v522 = vshll.u32 %v71, 16
    %v524 = vrot.slane %v522, 5
    %v525 = vsel %vm127, %v520, %v524
    %v526 = vshrl.u32 %v71, 16
    %v528 = vrot.slane %v526, 4
    %v529 = vor.u32 %v528, %v524
    %v530 = vrot.slane %v529, 4
    %v532 = vshll.u32 %v72, 16
    %v534 = vrot.slane %v532, 5
    %v535 = vsel %vm127, %v530, %v534
    %v537 = vshrl.u32 %v73, 16
    %v539 = vrot.slane %v537, 4
    %v540 = vshll.u32 %v73, 16
    %v542 = vrot.slane %v540, 5
    %v543 = vor.u32 %v539, %v542
    %v544 = vrot.slane %v543, 4
    %v546 = vshll.u32 %v74, 16
    %v548 = vrot.slane %v546, 5
    %v549 = vsel %vm127, %v544, %v548
    %v550 = vshrl.u32 %v74, 16
    %v552 = vrot.slane %v550, 4
    %v553 = vor.u32 %v552, %v548
    %v554 = vrot.slane %v553, 4
    %v556 = vshll.u32 %v75, 16
    %v558 = vrot.slane %v556, 5
    %v559 = vsel %vm127, %v554, %v558
    %v561 = vshrl.u32 %v76, 16
    %v563 = vrot.slane %v561, 4
    %v564 = vshll.u32 %v76, 16
    %v566 = vrot.slane %v564, 5
    %v567 = vor.u32 %v563, %v566
    %v568 = vrot.slane %v567, 4
    %v570 = vshll.u32 %v77, 16
    %v572 = vrot.slane %v570, 5
    %v573 = vsel %vm127, %v568, %v572
    %v574 = vshrl.u32 %v77, 16
    %v576 = vrot.slane %v574, 4
    %v577 = vor.u32 %v576, %v572
    %v578 = vrot.slane %v577, 4
    %v580 = vshll.u32 %v78, 16
    %v582 = vrot.slane %v580, 5
    %v583 = vsel %vm127, %v578, %v582
    %v585 = vshrl.u32 %v79, 16
    %v587 = vrot.slane %v585, 4
    %v588 = vshll.u32 %v79, 16
    %v590 = vrot.slane %v588, 5
    %v591 = vor.u32 %v587, %v590
    %v592 = vrot.slane %v591, 4
    %v594 = vshll.u32 %v80, 16
    %v596 = vrot.slane %v594, 5
    %v597 = vsel %vm127, %v592, %v596
    %v598 = vshrl.u32 %v80, 16
    %v600 = vrot.slane %v598, 4
    %v601 = vor.u32 %v600, %v596
    %v602 = vrot.slane %v601, 4
    %v604 = vshll.u32 %v81, 16
    %v606 = vrot.slane %v604, 5
    %v607 = vsel %vm127, %v602, %v606
    %v609 = vshrl.u32 %v82, 16
    %v611 = vrot.slane %v609, 4
    %v612 = vshll.u32 %v82, 16
    %v614 = vrot.slane %v612, 5
    %v615 = vor.u32 %v611, %v614
    %v616 = vrot.slane %v615, 4
    %v618 = vshll.u32 %v83, 16
    %v620 = vrot.slane %v618, 5
    %v621 = vsel %vm127, %v616, %v620
    %v622 = vshrl.u32 %v83, 16
    %v624 = vrot.slane %v622, 4
    %v625 = vor.u32 %v624, %v620
    %v626 = vrot.slane %v625, 4
    %v628 = vshll.u32 %v84, 16
    %v630 = vrot.slane %v628, 5
    %v631 = vsel %vm127, %v626, %v630
    %v633 = vshrl.u32 %v85, 16
    %v635 = vrot.slane %v633, 4
    %v636 = vshll.u32 %v85, 16
    %v638 = vrot.slane %v636, 5
    %v639 = vor.u32 %v635, %v638
    %v640 = vrot.slane %v639, 4
    %v642 = vshll.u32 %v86, 16
    %v644 = vrot.slane %v642, 5
    %v645 = vsel %vm127, %v640, %v644
    %v646 = vshrl.u32 %v86, 16
    %v648 = vrot.slane %v646, 4
    %v649 = vor.u32 %v648, %v644
    %v650 = vrot.slane %v649, 4
    %v652 = vshll.u32 %v87, 16
    %v654 = vrot.slane %v652, 5
    %v655 = vsel %vm127, %v650, %v654
    %v657 = vshrl.u32 %v88, 16
    %v659 = vrot.slane %v657, 4
    %v660 = vshll.u32 %v88, 16
    %v662 = vrot.slane %v660, 5
    %v663 = vor.u32 %v659, %v662
    %v664 = vrot.slane %v663, 4
    %v666 = vshll.u32 %v89, 16
    %v668 = vrot.slane %v666, 5
    %v669 = vsel %vm127, %v664, %v668
    %v670 = vshrl.u32 %v89, 16
    %v672 = vrot.slane %v670, 4
    %v673 = vor.u32 %v672, %v668
    %v674 = vrot.slane %v673, 4
    %v676 = vshll.u32 %v90, 16
    %v678 = vrot.slane %v676, 5
    %v679 = vsel %vm127, %v674, %v678
    %v681 = vshrl.u32 %v91, 16
    %v683 = vrot.slane %v681, 4
    %v684 = vshll.u32 %v91, 16
    %v686 = vrot.slane %v684, 5
    %v687 = vor.u32 %v683, %v686
    %v688 = vrot.slane %v687, 4
    %v690 = vshll.u32 %v92, 16
    %v692 = vrot.slane %v690, 5
    %v693 = vsel %vm127, %v688, %v692
    %v694 = vshrl.u32 %v92, 16
    %v696 = vrot.slane %v694, 4
    %v697 = vor.u32 %v696, %v692
    %v698 = vrot.slane %v697, 4
    %v700 = vshll.u32 %v93, 16
    %v702 = vrot.slane %v700, 5
    %v703 = vsel %vm127, %v698, %v702
    %v705 = vshrl.u32 %v94, 16
    %v707 = vrot.slane %v705, 4
    %v708 = vshll.u32 %v94, 16
    %v710 = vrot.slane %v708, 5
    %v711 = vor.u32 %v707, %v710
    %v712 = vrot.slane %v711, 4
    %v714 = vshll.u32 %v95, 16
    %v716 = vrot.slane %v714, 5
    %v717 = vsel %vm127, %v712, %v716
    %v718 = vshrl.u32 %v95, 16
    %v720 = vrot.slane %v718, 4
    %v721 = vor.u32 %v720, %v716
    %v722 = vrot.slane %v721, 4
    %v724 = vshll.u32 %v96, 16
    %v726 = vrot.slane %v724, 5
    %v727 = vsel %vm127, %v722, %v726
    %v729 = vshrl.u32 %v97, 16
    %v731 = vrot.slane %v729, 4
    %v732 = vshll.u32 %v97, 16
    %v734 = vrot.slane %v732, 5
    %v735 = vor.u32 %v731, %v734
    %v736 = vrot.slane %v735, 4
    %v738 = vshll.u32 %v98, 16
    %v740 = vrot.slane %v738, 5
    %v741 = vsel %vm127, %v736, %v740
    %v742 = vshrl.u32 %v98, 16
    %v744 = vrot.slane %v742, 4
    %v745 = vor.u32 %v744, %v740
    %v746 = vrot.slane %v745, 4
    %v748 = vshll.u32 %v99, 16
    %v750 = vrot.slane %v748, 5
    %v751 = vsel %vm127, %v746, %v750
    %v753 = vshrl.u32 %v100, 16
    %v755 = vrot.slane %v753, 4
    %v756 = vshll.u32 %v100, 16
    %v758 = vrot.slane %v756, 5
    %v759 = vor.u32 %v755, %v758
    %v760 = vrot.slane %v759, 4
    %v762 = vshll.u32 %v101, 16
    %v764 = vrot.slane %v762, 5
    %v765 = vsel %vm127, %v760, %v764
    %v766 = vshrl.u32 %v101, 16
    %v768 = vrot.slane %v766, 4
    %v769 = vor.u32 %v768, %v764
    %v770 = vrot.slane %v769, 4
    %v772 = vshll.u32 %v102, 16
    %v774 = vrot.slane %v772, 5
    %v775 = vsel %vm127, %v770, %v774
    %v777 = vshrl.u32 %v103, 16
    %v779 = vrot.slane %v777, 4
    %v780 = vshll.u32 %v103, 16
    %v782 = vrot.slane %v780, 5
    %v783 = vor.u32 %v779, %v782
    %v784 = vrot.slane %v783, 4
    %v786 = vshll.u32 %v104, 16
    %v788 = vrot.slane %v786, 5
    %v789 = vsel %vm127, %v784, %v788
    %v790 = vshrl.u32 %v104, 16
    %v792 = vrot.slane %v790, 4
    %v793 = vor.u32 %v792, %v788
    %v794 = vrot.slane %v793, 4
    %v796 = vshll.u32 %v105, 16
    %v798 = vrot.slane %v796, 5
    %v799 = vsel %vm127, %v794, %v798
    %v801 = vshrl.u32 %v106, 16
    %v803 = vrot.slane %v801, 4
    %v804 = vshll.u32 %v106, 16
    %v806 = vrot.slane %v804, 5
    %v807 = vor.u32 %v803, %v806
    %v808 = vrot.slane %v807, 4
    %v810 = vshll.u32 %v107, 16
    %v812 = vrot.slane %v810, 5
    %v813 = vsel %vm127, %v808, %v812
    %v814 = vshrl.u32 %v107, 16
    %v816 = vrot.slane %v814, 4
    %v817 = vor.u32 %v816, %v812
    %v818 = vrot.slane %v817, 4
    %v820 = vshll.u32 %v108, 16
    %v822 = vrot.slane %v820, 5
    %v823 = vsel %vm127, %v818, %v822
    %v825 = vshrl.u32 %v109, 16
    %v827 = vrot.slane %v825, 4
    %v828 = vshll.u32 %v109, 16
    %v830 = vrot.slane %v828, 5
    %v831 = vor.u32 %v827, %v830
    %v832 = vrot.slane %v831, 4
    %v834 = vshll.u32 %v110, 16
    %v836 = vrot.slane %v834, 5
    %v837 = vsel %vm127, %v832, %v836
    %v838 = vshrl.u32 %v110, 16
    %v840 = vrot.slane %v838, 4
    %v841 = vor.u32 %v840, %v836
    %v842 = vrot.slane %v841, 4
    %v844 = vshll.u32 %v111, 16
    %v846 = vrot.slane %v844, 5
    %v847 = vsel %vm127, %v842, %v846
    %v849 = vshrl.u32 %v112, 16
    %v851 = vrot.slane %v849, 4
    %v852 = vshll.u32 %v112, 16
    %v854 = vrot.slane %v852, 5
    %v855 = vor.u32 %v851, %v854
    %v856 = vrot.slane %v855, 4
    %v858 = vshll.u32 %v113, 16
    %v860 = vrot.slane %v858, 5
    %v861 = vsel %vm127, %v856, %v860
    %v862 = vshrl.u32 %v113, 16
    %v864 = vrot.slane %v862, 4
    %v865 = vor.u32 %v864, %v860
    %v866 = vrot.slane %v865, 4
    %v868 = vshll.u32 %v114, 16
    %v870 = vrot.slane %v868, 5
    %v871 = vsel %vm127, %v866, %v870
    %v873 = vshrl.u32 %v115, 16
    %v875 = vrot.slane %v873, 4
    %v876 = vshll.u32 %v115, 16
    %v878 = vrot.slane %v876, 5
    %v879 = vor.u32 %v875, %v878
    %v880 = vrot.slane %v879, 4
    %v882 = vshll.u32 %v116, 16
    %v884 = vrot.slane %v882, 5
    %v885 = vsel %vm127, %v880, %v884
    %v886 = vshrl.u32 %v116, 16
    %v888 = vrot.slane %v886, 4
    %v889 = vor.u32 %v888, %v884
    %v890 = vrot.slane %v889, 4
    %v892 = vshll.u32 %v117, 16
    %v894 = vrot.slane %v892, 5
    %v895 = vsel %vm127, %v890, %v894
    %s896 = scalar_lea.vmem %s1, 4
    %v897 = vld [vmem:[%s896] sm:$0xf]
    %v898 = vunpack.c.l.b16 %v141
    %v899 = vunpack.c.l.b16 %v151
    %v900 = vunpack.c.l.b16 %v165
    %v901 = vunpack.c.l.b16 %v175
    %v902 = vunpack.c.l.b16 %v189
    %v903 = vunpack.c.l.b16 %v199
    %v904 = vunpack.c.l.b16 %v213
    %v905 = vunpack.c.l.b16 %v223
    %v906 = vunpack.c.l.b16 %v237
    %v907 = vunpack.c.l.b16 %v247
    %v908 = vunpack.c.l.b16 %v261
    %v909 = vunpack.c.l.b16 %v271
    %v910 = vunpack.c.l.b16 %v285
    %v911 = vunpack.c.l.b16 %v295
    %v912 = vunpack.c.l.b16 %v309
    %v913 = vunpack.c.l.b16 %v319
    %v914 = vunpack.c.l.b16 %v333
    %v915 = vunpack.c.l.b16 %v343
    %v916 = vunpack.c.l.b16 %v357
    %v917 = vunpack.c.l.b16 %v367
    %v918 = vunpack.c.l.b16 %v381
    %v919 = vunpack.c.l.b16 %v391
    %v920 = vunpack.c.l.b16 %v405
    %v921 = vunpack.c.l.b16 %v415
    %v922 = vunpack.c.l.b16 %v429
    %v923 = vunpack.c.l.b16 %v439
    %v924 = vunpack.c.l.b16 %v453
    %v925 = vunpack.c.l.b16 %v463
    %v926 = vunpack.c.l.b16 %v477
    %v927 = vunpack.c.l.b16 %v487
    %v928 = vunpack.c.l.b16 %v501
    %v929 = vunpack.c.l.b16 %v511
    %v930 = vunpack.c.l.b16 %v525
    %v931 = vunpack.c.l.b16 %v535
    %v932 = vunpack.c.l.b16 %v549
    %v933 = vunpack.c.l.b16 %v559
    %v934 = vunpack.c.l.b16 %v573
    %v935 = vunpack.c.l.b16 %v583
    %v936 = vunpack.c.l.b16 %v597
    %v937 = vunpack.c.l.b16 %v607
    %v938 = vunpack.c.l.b16 %v621
    %v939 = vunpack.c.l.b16 %v631
    %v940 = vunpack.c.l.b16 %v645
    %v941 = vunpack.c.l.b16 %v655
    %v942 = vunpack.c.l.b16 %v669
    %v943 = vunpack.c.l.b16 %v679
    %v944 = vunpack.c.l.b16 %v693
    %v945 = vunpack.c.l.b16 %v703
    %v946 = vunpack.c.l.b16 %v717
    %v947 = vunpack.c.l.b16 %v727
    %v948 = vunpack.c.l.b16 %v741
    %v949 = vunpack.c.l.b16 %v751
    %v950 = vunpack.c.l.b16 %v765
    %v951 = vunpack.c.l.b16 %v775
    %v952 = vunpack.c.l.b16 %v789
    %v953 = vunpack.c.l.b16 %v799
    %v954 = vunpack.c.l.b16 %v813
    %v955 = vunpack.c.l.b16 %v823
    %v956 = vunpack.c.l.b16 %v837
    %v957 = vunpack.c.l.b16 %v847
    %v958 = vunpack.c.l.b16 %v861
    %v959 = vunpack.c.l.b16 %v871
    %v960 = vunpack.c.l.b16 %v885
    %v961 = vunpack.c.l.b16 %v895
    %v962 = vpack.c.b16 %v899, %v898
    %v963 = vpack.c.b16 %v901, %v900
    %v964 = vpack.c.b16 %v903, %v902
    %v965 = vpack.c.b16 %v905, %v904
    %v966 = vpack.c.b16 %v907, %v906
    %v967 = vpack.c.b16 %v909, %v908
    %v968 = vpack.c.b16 %v911, %v910
    %v969 = vpack.c.b16 %v913, %v912
    %v970 = vpack.c.b16 %v915, %v914
    %v971 = vpack.c.b16 %v917, %v916
    %v972 = vpack.c.b16 %v919, %v918
    %v973 = vpack.c.b16 %v921, %v920
    %v974 = vpack.c.b16 %v923, %v922
    %v975 = vpack.c.b16 %v925, %v924
    %v976 = vpack.c.b16 %v927, %v926
    %v977 = vpack.c.b16 %v929, %v928
    %v978 = vpack.c.b16 %v931, %v930
    %v979 = vpack.c.b16 %v933, %v932
    %v980 = vpack.c.b16 %v935, %v934
    %v981 = vpack.c.b16 %v937, %v936
    %v982 = vpack.c.b16 %v939, %v938
    %v983 = vpack.c.b16 %v941, %v940
    %v984 = vpack.c.b16 %v943, %v942
    %v985 = vpack.c.b16 %v945, %v944
    %v986 = vpack.c.b16 %v947, %v946
    %v987 = vpack.c.b16 %v949, %v948
    %v988 = vpack.c.b16 %v951, %v950
    %v989 = vpack.c.b16 %v953, %v952
    %v990 = vpack.c.b16 %v955, %v954
    %v991 = vpack.c.b16 %v957, %v956
    %v992 = vpack.c.b16 %v959, %v958
    %v993 = vpack.c.b16 %v961, %v960
    %vm994 = vcmask 64512
    %v996 = vsel %vm994, %v962, 0
    %v999 = vsel %vm994, %v963, 0
    %v1002 = vsel %vm994, %v964, 0
    %v1005 = vsel %vm994, %v965, 0
    %v1008 = vsel %vm994, %v966, 0
    %v1011 = vsel %vm994, %v967, 0
    %v1014 = vsel %vm994, %v968, 0
    %v1017 = vsel %vm994, %v969, 0
    %v1020 = vsel %vm994, %v970, 0
    %v1023 = vsel %vm994, %v971, 0
    %v1026 = vsel %vm994, %v972, 0
    %v1029 = vsel %vm994, %v973, 0
    %v1032 = vsel %vm994, %v974, 0
    %v1035 = vsel %vm994, %v975, 0
    %v1038 = vsel %vm994, %v976, 0
    %v1041 = vsel %vm994, %v977, 0
    %v1044 = vsel %vm994, %v978, 0
    %v1047 = vsel %vm994, %v979, 0
    %v1050 = vsel %vm994, %v980, 0
    %v1053 = vsel %vm994, %v981, 0
    %v1056 = vsel %vm994, %v982, 0
    %v1059 = vsel %vm994, %v983, 0
    %v1062 = vsel %vm994, %v984, 0
    %v1065 = vsel %vm994, %v985, 0
    %v1068 = vsel %vm994, %v986, 0
    %v1071 = vsel %vm994, %v987, 0
    %v1074 = vsel %vm994, %v988, 0
    %v1077 = vsel %vm994, %v989, 0
    %v1080 = vsel %vm994, %v990, 0
    %v1083 = vsel %vm994, %v991, 0
    %v1086 = vsel %vm994, %v992, 0
    %v1089 = vsel %vm994, %v993, 0
    %vm1091 = vcmask 1043456
    %v1093 = vsel %vm1091, %v897, 0
    %1095 = vmatprep.subr.bf16.mxu0 0
    %1096 = vmatpush1.bf16.msra.mxu0 %v1093
    %1097 = vmatprep.subr.bf16.mxu0 0
    %1098 = vmatpush1.bf16.msra.mxu0 0
    %1099 = vmatprep.subr.bf16.mxu0 0
    %1100 = vmatpush1.bf16.msra.mxu0 0
    %1101 = vmatprep.subr.bf16.mxu0 0
    %1102 = vmatpush1.bf16.msra.mxu0 0
    %1103 = vmatprep.subr.bf16.mxu0 0
    %1104 = vmatpush1.bf16.msra.mxu0 0
    %1105 = vmatprep.subr.bf16.mxu0 0
    %1106 = vmatpush1.bf16.msra.mxu0 0
    %1107 = vmatprep.subr.bf16.mxu0 0
    %1108 = vmatpush1.bf16.msra.mxu0 0
    %1109 = vmatprep.subr.bf16.mxu0 0
    %1110 = vmatpush1.bf16.msra.mxu0 0
    %1111 = vmatprep.subr.bf16.mxu0 0
    %1112 = vmatpush1.bf16.msra.mxu0 0
    %1113 = vmatprep.subr.bf16.mxu0 0
    %1114 = vmatpush1.bf16.msra.mxu0 0
    %1115 = vmatprep.subr.bf16.mxu0 0
    %1116 = vmatpush1.bf16.msra.mxu0 0
    %1117 = vmatprep.subr.bf16.mxu0 0
    %1118 = vmatpush1.bf16.msra.mxu0 0
    %1119 = vmatprep.subr.bf16.mxu0 0
    %1120 = vmatpush1.bf16.msra.mxu0 0
    %1121 = vmatprep.subr.bf16.mxu0 0
    %1122 = vmatpush1.bf16.msra.mxu0 0
    %1123 = vmatprep.subr.bf16.mxu0 0
    %1124 = vmatpush1.bf16.msra.mxu0 0
    %1125 = vmatprep.subr.bf16.mxu0 0
    %1126 = vmatpush1.bf16.msra.mxu0 0
    %1127 = vmatprep.mubr.bf16.mxu0 0
    %1128 = vmatmul.mubr.bf16.gmra.mrb[0].mxu0 %v996
    %v1129 = vpop.f32.mrb[0].mxu0
    %v1130 = vadd.f32 0.0, %v1129
    %v1131 = vpop.f32.mrb[0].mxu0
    %v1132 = vpop.f32.mrb[0].mxu0
    %v1133 = vadd.f32 0.0, %v1132
    %v1134 = vpop.f32.mrb[0].mxu0
    %1135 = vmatprep.mubr.bf16.mxu0 0
    %1136 = vmatmul.mubr.bf16.gmra.mrb[0].mxu0 %v999
    %v1137 = vpop.f32.mrb[0].mxu0
    %v1138 = vadd.f32 0.0, %v1137
    %v1139 = vpop.f32.mrb[0].mxu0
    %v1140 = vpop.f32.mrb[0].mxu0
    %v1141 = vadd.f32 0.0, %v1140
    %v1142 = vpop.f32.mrb[0].mxu0
    %1143 = vmatprep.mubr.bf16.mxu0 0
    %1144 = vmatmul.mubr.bf16.gmra.mrb[0].mxu0 %v1002
    %v1145 = vpop.f32.mrb[0].mxu0
    %v1146 = vadd.f32 0.0, %v1145
    %v1147 = vpop.f32.mrb[0].mxu0
    %v1148 = vpop.f32.mrb[0].mxu0
    %v1149 = vadd.f32 0.0, %v1148
    %v1150 = vpop.f32.mrb[0].mxu0
    %1151 = vmatprep.mubr.bf16.mxu0 0
    %1152 = vmatmul.mubr.bf16.gmra.mrb[0].mxu0 %v1005
    %v1153 = vpop.f32.mrb[0].mxu0
    %v1154 = vadd.f32 0.0, %v1153
    %v1155 = vpop.f32.mrb[0].mxu0
    %v1156 = vpop.f32.mrb[0].mxu0
    %v1157 = vadd.f32 0.0, %v1156
    %v1158 = vpop.f32.mrb[0].mxu0
    %1159 = vmatprep.mubr.bf16.mxu0 0
    %1160 = vmatmul.mubr.bf16.gmra.mrb[0].mxu0 %v1008
    %v1161 = vpop.f32.mrb[0].mxu0
    %v1162 = vadd.f32 0.0, %v1161
    %v1163 = vpop.f32.mrb[0].mxu0
    %v1164 = vpop.f32.mrb[0].mxu0
    %v1165 = vadd.f32 0.0, %v1164
    %v1166 = vpop.f32.mrb[0].mxu0
    %1167 = vmatprep.mubr.bf16.mxu0 0
    %1168 = vmatmul.mubr.bf16.gmra.mrb[0].mxu0 %v1011
    %v1169 = vpop.f32.mrb[0].mxu0
    %v1170 = vadd.f32 0.0, %v1169
    %v1171 = vpop.f32.mrb[0].mxu0
    %v1172 = vpop.f32.mrb[0].mxu0
    %v1173 = vadd.f32 0.0, %v1172
    %v1174 = vpop.f32.mrb[0].mxu0
    %1175 = vmatprep.mubr.bf16.mxu0 0
    %1176 = vmatmul.mubr.bf16.gmra.mrb[0].mxu0 %v1014
    %v1177 = vpop.f32.mrb[0].mxu0
    %v1178 = vadd.f32 0.0, %v1177
    %v1179 = vpop.f32.mrb[0].mxu0
    %v1180 = vpop.f32.mrb[0].mxu0
    %v1181 = vadd.f32 0.0, %v1180
    %v1182 = vpop.f32.mrb[0].mxu0
    %1183 = vmatprep.mubr.bf16.mxu0 0
    %1184 = vmatmul.mubr.bf16.gmra.mrb[0].mxu0 %v1017
    %v1185 = vpop.f32.mrb[0].mxu0
    %v1186 = vadd.f32 0.0, %v1185
    %v1187 = vpop.f32.mrb[0].mxu0
    %v1188 = vpop.f32.mrb[0].mxu0
    %v1189 = vadd.f32 0.0, %v1188
    %v1190 = vpop.f32.mrb[0].mxu0
    %1191 = vmatprep.mubr.bf16.mxu0 0
    %1192 = vmatmul.mubr.bf16.gmra.mrb[0].mxu0 %v1020
    %v1193 = vpop.f32.mrb[0].mxu0
    %v1194 = vadd.f32 0.0, %v1193
    %v1195 = vpop.f32.mrb[0].mxu0
    %v1196 = vpop.f32.mrb[0].mxu0
    %v1197 = vadd.f32 0.0, %v1196
    %v1198 = vpop.f32.mrb[0].mxu0
    %1199 = vmatprep.mubr.bf16.mxu0 0
    %1200 = vmatmul.mubr.bf16.gmra.mrb[0].mxu0 %v1023
    %v1201 = vpop.f32.mrb[0].mxu0
    %v1202 = vadd.f32 0.0, %v1201
    %v1203 = vpop.f32.mrb[0].mxu0
    %v1204 = vpop.f32.mrb[0].mxu0
    %v1205 = vadd.f32 0.0, %v1204
    %v1206 = vpop.f32.mrb[0].mxu0
    %1207 = vmatprep.mubr.bf16.mxu0 0
    %1208 = vmatmul.mubr.bf16.gmra.mrb[0].mxu0 %v1026
    %v1209 = vpop.f32.mrb[0].mxu0
    %v1210 = vadd.f32 0.0, %v1209
    %v1211 = vpop.f32.mrb[0].mxu0
    %v1212 = vpop.f32.mrb[0].mxu0
    %v1213 = vadd.f32 0.0, %v1212
    %v1214 = vpop.f32.mrb[0].mxu0
    %1215 = vmatprep.mubr.bf16.mxu0 0
    %1216 = vmatmul.mubr.bf16.gmra.mrb[0].mxu0 %v1029
    %v1217 = vpop.f32.mrb[0].mxu0
    %v1218 = vadd.f32 0.0, %v1217
    %v1219 = vpop.f32.mrb[0].mxu0
    %v1220 = vpop.f32.mrb[0].mxu0
    %v1221 = vadd.f32 0.0, %v1220
    %v1222 = vpop.f32.mrb[0].mxu0
    %1223 = vmatprep.mubr.bf16.mxu0 0
    %1224 = vmatmul.mubr.bf16.gmra.mrb[0].mxu0 %v1032
    %v1225 = vpop.f32.mrb[0].mxu0
    %v1226 = vadd.f32 0.0, %v1225
    %v1227 = vpop.f32.mrb[0].mxu0
    %v1228 = vpop.f32.mrb[0].mxu0
    %v1229 = vadd.f32 0.0, %v1228
    %v1230 = vpop.f32.mrb[0].mxu0
    %1231 = vmatprep.mubr.bf16.mxu0 0
    %1232 = vmatmul.mubr.bf16.gmra.mrb[0].mxu0 %v1035
    %v1233 = vpop.f32.mrb[0].mxu0
    %v1234 = vadd.f32 0.0, %v1233
    %v1235 = vpop.f32.mrb[0].mxu0
    %v1236 = vpop.f32.mrb[0].mxu0
    %v1237 = vadd.f32 0.0, %v1236
    %v1238 = vpop.f32.mrb[0].mxu0
    %1239 = vmatprep.mubr.bf16.mxu0 0
    %1240 = vmatmul.mubr.bf16.gmra.mrb[0].mxu0 %v1038
    %v1241 = vpop.f32.mrb[0].mxu0
    %v1242 = vadd.f32 0.0, %v1241
    %v1243 = vpop.f32.mrb[0].mxu0
    %v1244 = vpop.f32.mrb[0].mxu0
    %v1245 = vadd.f32 0.0, %v1244
    %v1246 = vpop.f32.mrb[0].mxu0
    %1247 = vmatprep.mubr.bf16.mxu0 0
    %1248 = vmatmul.mubr.bf16.gmra.mrb[0].mxu0 %v1041
    %v1249 = vpop.f32.mrb[0].mxu0
    %v1250 = vadd.f32 0.0, %v1249
    %v1251 = vpop.f32.mrb[0].mxu0
    %v1252 = vpop.f32.mrb[0].mxu0
    %v1253 = vadd.f32 0.0, %v1252
    %v1254 = vpop.f32.mrb[0].mxu0
    %1255 = vmatprep.mubr.bf16.mxu0 0
    %1256 = vmatmul.mubr.bf16.gmra.mrb[0].mxu0 %v1044
    %v1257 = vpop.f32.mrb[0].mxu0
    %v1258 = vadd.f32 0.0, %v1257
    %v1259 = vpop.f32.mrb[0].mxu0
    %v1260 = vpop.f32.mrb[0].mxu0
    %v1261 = vadd.f32 0.0, %v1260
    %v1262 = vpop.f32.mrb[0].mxu0
    %1263 = vmatprep.mubr.bf16.mxu0 0
    %1264 = vmatmul.mubr.bf16.gmra.mrb[0].mxu0 %v1047
    %v1265 = vpop.f32.mrb[0].mxu0
    %v1266 = vadd.f32 0.0, %v1265
    %v1267 = vpop.f32.mrb[0].mxu0
    %v1268 = vpop.f32.mrb[0].mxu0
    %v1269 = vadd.f32 0.0, %v1268
    %v1270 = vpop.f32.mrb[0].mxu0
    %1271 = vmatprep.mubr.bf16.mxu0 0
    %1272 = vmatmul.mubr.bf16.gmra.mrb[0].mxu0 %v1050
    %v1273 = vpop.f32.mrb[0].mxu0
    %v1274 = vadd.f32 0.0, %v1273
    %v1275 = vpop.f32.mrb[0].mxu0
    %v1276 = vpop.f32.mrb[0].mxu0
    %v1277 = vadd.f32 0.0, %v1276
    %v1278 = vpop.f32.mrb[0].mxu0
    %1279 = vmatprep.mubr.bf16.mxu0 0
    %1280 = vmatmul.mubr.bf16.gmra.mrb[0].mxu0 %v1053
    %v1281 = vpop.f32.mrb[0].mxu0
    %v1282 = vadd.f32 0.0, %v1281
    %v1283 = vpop.f32.mrb[0].mxu0
    %v1284 = vpop.f32.mrb[0].mxu0
    %v1285 = vadd.f32 0.0, %v1284
    %v1286 = vpop.f32.mrb[0].mxu0
    %1287 = vmatprep.mubr.bf16.mxu0 0
    %1288 = vmatmul.mubr.bf16.gmra.mrb[0].mxu0 %v1056
    %v1289 = vpop.f32.mrb[0].mxu0
    %v1290 = vadd.f32 0.0, %v1289
    %v1291 = vpop.f32.mrb[0].mxu0
    %v1292 = vpop.f32.mrb[0].mxu0
    %v1293 = vadd.f32 0.0, %v1292
    %v1294 = vpop.f32.mrb[0].mxu0
    %1295 = vmatprep.mubr.bf16.mxu0 0
    %1296 = vmatmul.mubr.bf16.gmra.mrb[0].mxu0 %v1059
    %v1297 = vpop.f32.mrb[0].mxu0
    %v1298 = vadd.f32 0.0, %v1297
    %v1299 = vpop.f32.mrb[0].mxu0
    %v1300 = vpop.f32.mrb[0].mxu0
    %v1301 = vadd.f32 0.0, %v1300
    %v1302 = vpop.f32.mrb[0].mxu0
    %1303 = vmatprep.mubr.bf16.mxu0 0
    %1304 = vmatmul.mubr.bf16.gmra.mrb[0].mxu0 %v1062
    %v1305 = vpop.f32.mrb[0].mxu0
    %v1306 = vadd.f32 0.0, %v1305
    %v1307 = vpop.f32.mrb[0].mxu0
    %v1308 = vpop.f32.mrb[0].mxu0
    %v1309 = vadd.f32 0.0, %v1308
    %v1310 = vpop.f32.mrb[0].mxu0
    %1311 = vmatprep.mubr.bf16.mxu0 0
    %1312 = vmatmul.mubr.bf16.gmra.mrb[0].mxu0 %v1065
    %v1313 = vpop.f32.mrb[0].mxu0
    %v1314 = vadd.f32 0.0, %v1313
    %v1315 = vpop.f32.mrb[0].mxu0
    %v1316 = vpop.f32.mrb[0].mxu0
    %v1317 = vadd.f32 0.0, %v1316
    %v1318 = vpop.f32.mrb[0].mxu0
    %1319 = vmatprep.mubr.bf16.mxu0 0
    %1320 = vmatmul.mubr.bf16.gmra.mrb[0].mxu0 %v1068
    %v1321 = vpop.f32.mrb[0].mxu0
    %v1322 = vadd.f32 0.0, %v1321
    %v1323 = vpop.f32.mrb[0].mxu0
    %v1324 = vpop.f32.mrb[0].mxu0
    %v1325 = vadd.f32 0.0, %v1324
    %v1326 = vpop.f32.mrb[0].mxu0
    %1327 = vmatprep.mubr.bf16.mxu0 0
    %1328 = vmatmul.mubr.bf16.gmra.mrb[0].mxu0 %v1071
    %v1329 = vpop.f32.mrb[0].mxu0
    %v1330 = vadd.f32 0.0, %v1329
    %v1331 = vpop.f32.mrb[0].mxu0
    %v1332 = vpop.f32.mrb[0].mxu0
    %v1333 = vadd.f32 0.0, %v1332
    %v1334 = vpop.f32.mrb[0].mxu0
    %1335 = vmatprep.mubr.bf16.mxu0 0
    %1336 = vmatmul.mubr.bf16.gmra.mrb[0].mxu0 %v1074
    %v1337 = vpop.f32.mrb[0].mxu0
    %v1338 = vadd.f32 0.0, %v1337
    %v1339 = vpop.f32.mrb[0].mxu0
    %v1340 = vpop.f32.mrb[0].mxu0
    %v1341 = vadd.f32 0.0, %v1340
    %v1342 = vpop.f32.mrb[0].mxu0
    %1343 = vmatprep.mubr.bf16.mxu0 0
    %1344 = vmatmul.mubr.bf16.gmra.mrb[0].mxu0 %v1077
    %v1345 = vpop.f32.mrb[0].mxu0
    %v1346 = vadd.f32 0.0, %v1345
    %v1347 = vpop.f32.mrb[0].mxu0
    %v1348 = vpop.f32.mrb[0].mxu0
    %v1349 = vadd.f32 0.0, %v1348
    %v1350 = vpop.f32.mrb[0].mxu0
    %1351 = vmatprep.mubr.bf16.mxu0 0
    %1352 = vmatmul.mubr.bf16.gmra.mrb[0].mxu0 %v1080
    %v1353 = vpop.f32.mrb[0].mxu0
    %v1354 = vadd.f32 0.0, %v1353
    %v1355 = vpop.f32.mrb[0].mxu0
    %v1356 = vpop.f32.mrb[0].mxu0
    %v1357 = vadd.f32 0.0, %v1356
    %v1358 = vpop.f32.mrb[0].mxu0
    %1359 = vmatprep.mubr.bf16.mxu0 0
    %1360 = vmatmul.mubr.bf16.gmra.mrb[0].mxu0 %v1083
    %v1361 = vpop.f32.mrb[0].mxu0
    %v1362 = vadd.f32 0.0, %v1361
    %v1363 = vpop.f32.mrb[0].mxu0
    %v1364 = vpop.f32.mrb[0].mxu0
    %v1365 = vadd.f32 0.0, %v1364
    %v1366 = vpop.f32.mrb[0].mxu0
    %1367 = vmatprep.mubr.bf16.mxu0 0
    %1368 = vmatmul.mubr.bf16.gmra.mrb[0].mxu0 %v1086
    %v1369 = vpop.f32.mrb[0].mxu0
    %v1370 = vadd.f32 0.0, %v1369
    %v1371 = vpop.f32.mrb[0].mxu0
    %v1372 = vpop.f32.mrb[0].mxu0
    %v1373 = vadd.f32 0.0, %v1372
    %v1374 = vpop.f32.mrb[0].mxu0
    %1375 = vmatprep.mubr.bf16.mxu0 0
    %1376 = vmatmul.mubr.bf16.gmra.mrb[0].mxu0 %v1089
    %v1377 = vpop.f32.mrb[0].mxu0
    %v1378 = vadd.f32 0.0, %v1377
    %v1379 = vpop.f32.mrb[0].mxu0
    %v1380 = vpop.f32.mrb[0].mxu0
    %v1381 = vadd.f32 0.0, %v1380
    %v1382 = vpop.f32.mrb[0].mxu0
    %1383 = vdwg.mxu0
    %v1448 = vunpack.c.l.b16 %v16
    %v1449 = vunpack.c.l.b16 %v17
    %v1450 = vunpack.c.l.b16 %v19
    %v1451 = vunpack.c.l.b16 %v20
    %v1452 = vunpack.c.l.b16 %v22
    %v1453 = vunpack.c.l.b16 %v23
    %v1454 = vunpack.c.l.b16 %v25
    %v1455 = vunpack.c.l.b16 %v26
    %v1456 = vunpack.c.l.b16 %v28
    %v1457 = vunpack.c.l.b16 %v29
    %v1458 = vunpack.c.l.b16 %v31
    %v1459 = vunpack.c.l.b16 %v32
    %v1460 = vunpack.c.l.b16 %v34
    %v1461 = vunpack.c.l.b16 %v35
    %v1462 = vunpack.c.l.b16 %v37
    %v1463 = vunpack.c.l.b16 %v38
    %v1464 = vunpack.c.l.b16 %v40
    %v1465 = vunpack.c.l.b16 %v41
    %v1466 = vunpack.c.l.b16 %v43
    %v1467 = vunpack.c.l.b16 %v44
    %v1468 = vunpack.c.l.b16 %v46
    %v1469 = vunpack.c.l.b16 %v47
    %v1470 = vunpack.c.l.b16 %v49
    %v1471 = vunpack.c.l.b16 %v50
    %v1472 = vunpack.c.l.b16 %v52
    %v1473 = vunpack.c.l.b16 %v53
    %v1474 = vunpack.c.l.b16 %v55
    %v1475 = vunpack.c.l.b16 %v56
    %v1476 = vunpack.c.l.b16 %v58
    %v1477 = vunpack.c.l.b16 %v59
    %v1478 = vunpack.c.l.b16 %v61
    %v1479 = vunpack.c.l.b16 %v62
    %v1480 = vunpack.c.l.b16 %v70
    %v1481 = vunpack.c.l.b16 %v71
    %v1482 = vunpack.c.l.b16 %v73
    %v1483 = vunpack.c.l.b16 %v74
    %v1484 = vunpack.c.l.b16 %v76
    %v1485 = vunpack.c.l.b16 %v77
    %v1486 = vunpack.c.l.b16 %v79
    %v1487 = vunpack.c.l.b16 %v80
    %v1488 = vunpack.c.l.b16 %v82
    %v1489 = vunpack.c.l.b16 %v83
    %v1490 = vunpack.c.l.b16 %v85
    %v1491 = vunpack.c.l.b16 %v86
    %v1492 = vunpack.c.l.b16 %v88
    %v1493 = vunpack.c.l.b16 %v89
    %v1494 = vunpack.c.l.b16 %v91
    %v1495 = vunpack.c.l.b16 %v92
    %v1496 = vunpack.c.l.b16 %v94
    %v1497 = vunpack.c.l.b16 %v95
    %v1498 = vunpack.c.l.b16 %v97
    %v1499 = vunpack.c.l.b16 %v98
    %v1500 = vunpack.c.l.b16 %v100
    %v1501 = vunpack.c.l.b16 %v101
    %v1502 = vunpack.c.l.b16 %v103
    %v1503 = vunpack.c.l.b16 %v104
    %v1504 = vunpack.c.l.b16 %v106
    %v1505 = vunpack.c.l.b16 %v107
    %v1506 = vunpack.c.l.b16 %v109
    %v1507 = vunpack.c.l.b16 %v110
    %v1508 = vunpack.c.l.b16 %v112
    %v1509 = vunpack.c.l.b16 %v113
    %v1510 = vunpack.c.l.b16 %v115
    %v1511 = vunpack.c.l.b16 %v116
    %v1512 = vpack.c.b16 %v1449, %v1448
    %v1513 = vpack.c.b16 %v1451, %v1450
    %v1514 = vpack.c.b16 %v1453, %v1452
    %v1515 = vpack.c.b16 %v1455, %v1454
    %v1516 = vpack.c.b16 %v1457, %v1456
    %v1517 = vpack.c.b16 %v1459, %v1458
    %v1518 = vpack.c.b16 %v1461, %v1460
    %v1519 = vpack.c.b16 %v1463, %v1462
    %v1520 = vpack.c.b16 %v1465, %v1464
    %v1521 = vpack.c.b16 %v1467, %v1466
    %v1522 = vpack.c.b16 %v1469, %v1468
    %v1523 = vpack.c.b16 %v1471, %v1470
    %v1524 = vpack.c.b16 %v1473, %v1472
    %v1525 = vpack.c.b16 %v1475, %v1474
    %v1526 = vpack.c.b16 %v1477, %v1476
    %v1527 = vpack.c.b16 %v1479, %v1478
    %v1528 = vpack.c.b16 %v1481, %v1480
    %v1529 = vpack.c.b16 %v1483, %v1482
    %v1530 = vpack.c.b16 %v1485, %v1484
    %v1531 = vpack.c.b16 %v1487, %v1486
    %v1532 = vpack.c.b16 %v1489, %v1488
    %v1533 = vpack.c.b16 %v1491, %v1490
    %v1534 = vpack.c.b16 %v1493, %v1492
    %v1535 = vpack.c.b16 %v1495, %v1494
    %v1536 = vpack.c.b16 %v1497, %v1496
    %v1537 = vpack.c.b16 %v1499, %v1498
    %v1538 = vpack.c.b16 %v1501, %v1500
    %v1539 = vpack.c.b16 %v1503, %v1502
    %v1540 = vpack.c.b16 %v1505, %v1504
    %v1541 = vpack.c.b16 %v1507, %v1506
    %v1542 = vpack.c.b16 %v1509, %v1508
    %v1543 = vpack.c.b16 %v1511, %v1510
    %v1545 = vsel %vm994, %v1512, 0
    %v1548 = vsel %vm994, %v1513, 0
    %v1551 = vsel %vm994, %v1514, 0
    %v1554 = vsel %vm994, %v1515, 0
    %v1557 = vsel %vm994, %v1516, 0
    %v1560 = vsel %vm994, %v1517, 0
    %v1563 = vsel %vm994, %v1518, 0
    %v1566 = vsel %vm994, %v1519, 0
    %v1569 = vsel %vm994, %v1520, 0
    %v1572 = vsel %vm994, %v1521, 0
    %v1575 = vsel %vm994, %v1522, 0
    %v1578 = vsel %vm994, %v1523, 0
    %v1581 = vsel %vm994, %v1524, 0
    %v1584 = vsel %vm994, %v1525, 0
    %v1587 = vsel %vm994, %v1526, 0
    %v1590 = vsel %vm994, %v1527, 0
    %v1593 = vsel %vm994, %v1528, 0
    %v1596 = vsel %vm994, %v1529, 0
    %v1599 = vsel %vm994, %v1530, 0
    %v1602 = vsel %vm994, %v1531, 0
    %v1605 = vsel %vm994, %v1532, 0
    %v1608 = vsel %vm994, %v1533, 0
    %v1611 = vsel %vm994, %v1534, 0
    %v1614 = vsel %vm994, %v1535, 0
    %v1617 = vsel %vm994, %v1536, 0
    %v1620 = vsel %vm994, %v1537, 0
    %v1623 = vsel %vm994, %v1538, 0
    %v1626 = vsel %vm994, %v1539, 0
    %v1629 = vsel %vm994, %v1540, 0
    %v1632 = vsel %vm994, %v1541, 0
    %v1635 = vsel %vm994, %v1542, 0
    %v1638 = vsel %vm994, %v1543, 0
    %v1641 = vsel %vm1091, %v124, 0
    %1643 = vmatprep.subr.bf16.mxu0 0
    %1644 = vmatpush1.bf16.msra.mxu0 %v1641
    %1645 = vmatprep.subr.bf16.mxu0 0
    %1646 = vmatpush1.bf16.msra.mxu0 0
    %1647 = vmatprep.subr.bf16.mxu0 0
    %1648 = vmatpush1.bf16.msra.mxu0 0
    %1649 = vmatprep.subr.bf16.mxu0 0
    %1650 = vmatpush1.bf16.msra.mxu0 0
    %1651 = vmatprep.subr.bf16.mxu0 0
    %1652 = vmatpush1.bf16.msra.mxu0 0
    %1653 = vmatprep.subr.bf16.mxu0 0
    %1654 = vmatpush1.bf16.msra.mxu0 0
    %1655 = vmatprep.subr.bf16.mxu0 0
    %1656 = vmatpush1.bf16.msra.mxu0 0
    %1657 = vmatprep.subr.bf16.mxu0 0
    %1658 = vmatpush1.bf16.msra.mxu0 0
    %1659 = vmatprep.subr.bf16.mxu0 0
    %1660 = vmatpush1.bf16.msra.mxu0 0
    %1661 = vmatprep.subr.bf16.mxu0 0
    %1662 = vmatpush1.bf16.msra.mxu0 0
    %1663 = vmatprep.subr.bf16.mxu0 0
    %1664 = vmatpush1.bf16.msra.mxu0 0
    %1665 = vmatprep.subr.bf16.mxu0 0
    %1666 = vmatpush1.bf16.msra.mxu0 0
    %1667 = vmatprep.subr.bf16.mxu0 0
    %1668 = vmatpush1.bf16.msra.mxu0 0
    %1669 = vmatprep.subr.bf16.mxu0 0
    %1670 = vmatpush1.bf16.msra.mxu0 0
    %1671 = vmatprep.subr.bf16.mxu0 0
    %1672 = vmatpush1.bf16.msra.mxu0 0
    %1673 = vmatprep.subr.bf16.mxu0 0
    %1674 = vmatpush1.bf16.msra.mxu0 0
    %1675 = vmatprep.mubr.bf16.mxu0 0
    %1676 = vmatmul.mubr.bf16.gmra.mrb[0].mxu0 %v1545
    %v1677 = vpop.f32.mrb[0].mxu0
    %v1678 = vadd.f32 %v1130, %v1677
    %v1679 = vpop.f32.mrb[0].mxu0
    %v1680 = vpop.f32.mrb[0].mxu0
    %v1681 = vadd.f32 %v1133, %v1680
    %v1682 = vpop.f32.mrb[0].mxu0
    %1683 = vmatprep.mubr.bf16.mxu0 0
    %1684 = vmatmul.mubr.bf16.gmra.mrb[0].mxu0 %v1548
    %v1685 = vpop.f32.mrb[0].mxu0
    %v1686 = vadd.f32 %v1138, %v1685
    %v1687 = vpop.f32.mrb[0].mxu0
    %v1688 = vpop.f32.mrb[0].mxu0
    %v1689 = vadd.f32 %v1141, %v1688
    %v1690 = vpop.f32.mrb[0].mxu0
    %1691 = vmatprep.mubr.bf16.mxu0 0
    %1692 = vmatmul.mubr.bf16.gmra.mrb[0].mxu0 %v1551
    %v1693 = vpop.f32.mrb[0].mxu0
    %v1694 = vadd.f32 %v1146, %v1693
    %v1695 = vpop.f32.mrb[0].mxu0
    %v1696 = vpop.f32.mrb[0].mxu0
    %v1697 = vadd.f32 %v1149, %v1696
    %v1698 = vpop.f32.mrb[0].mxu0
    %1699 = vmatprep.mubr.bf16.mxu0 0
    %1700 = vmatmul.mubr.bf16.gmra.mrb[0].mxu0 %v1554
    %v1701 = vpop.f32.mrb[0].mxu0
    %v1702 = vadd.f32 %v1154, %v1701
    %v1703 = vpop.f32.mrb[0].mxu0
    %v1704 = vpop.f32.mrb[0].mxu0
    %v1705 = vadd.f32 %v1157, %v1704
    %v1706 = vpop.f32.mrb[0].mxu0
    %1707 = vmatprep.mubr.bf16.mxu0 0
    %1708 = vmatmul.mubr.bf16.gmra.mrb[0].mxu0 %v1557
    %v1709 = vpop.f32.mrb[0].mxu0
    %v1710 = vadd.f32 %v1162, %v1709
    %v1711 = vpop.f32.mrb[0].mxu0
    %v1712 = vpop.f32.mrb[0].mxu0
    %v1713 = vadd.f32 %v1165, %v1712
    %v1714 = vpop.f32.mrb[0].mxu0
    %1715 = vmatprep.mubr.bf16.mxu0 0
    %1716 = vmatmul.mubr.bf16.gmra.mrb[0].mxu0 %v1560
    %v1717 = vpop.f32.mrb[0].mxu0
    %v1718 = vadd.f32 %v1170, %v1717
    %v1719 = vpop.f32.mrb[0].mxu0
    %v1720 = vpop.f32.mrb[0].mxu0
    %v1721 = vadd.f32 %v1173, %v1720
    %v1722 = vpop.f32.mrb[0].mxu0
    %1723 = vmatprep.mubr.bf16.mxu0 0
    %1724 = vmatmul.mubr.bf16.gmra.mrb[0].mxu0 %v1563
    %v1725 = vpop.f32.mrb[0].mxu0
    %v1726 = vadd.f32 %v1178, %v1725
    %v1727 = vpop.f32.mrb[0].mxu0
    %v1728 = vpop.f32.mrb[0].mxu0
    %v1729 = vadd.f32 %v1181, %v1728
    %v1730 = vpop.f32.mrb[0].mxu0
    %1731 = vmatprep.mubr.bf16.mxu0 0
    %1732 = vmatmul.mubr.bf16.gmra.mrb[0].mxu0 %v1566
    %v1733 = vpop.f32.mrb[0].mxu0
    %v1734 = vadd.f32 %v1186, %v1733
    %v1735 = vpop.f32.mrb[0].mxu0
    %v1736 = vpop.f32.mrb[0].mxu0
    %v1737 = vadd.f32 %v1189, %v1736
    %v1738 = vpop.f32.mrb[0].mxu0
    %1739 = vmatprep.mubr.bf16.mxu0 0
    %1740 = vmatmul.mubr.bf16.gmra.mrb[0].mxu0 %v1569
    %v1741 = vpop.f32.mrb[0].mxu0
    %v1742 = vadd.f32 %v1194, %v1741
    %v1743 = vpop.f32.mrb[0].mxu0
    %v1744 = vpop.f32.mrb[0].mxu0
    %v1745 = vadd.f32 %v1197, %v1744
    %v1746 = vpop.f32.mrb[0].mxu0
    %1747 = vmatprep.mubr.bf16.mxu0 0
    %1748 = vmatmul.mubr.bf16.gmra.mrb[0].mxu0 %v1572
    %v1749 = vpop.f32.mrb[0].mxu0
    %v1750 = vadd.f32 %v1202, %v1749
    %v1751 = vpop.f32.mrb[0].mxu0
    %v1752 = vpop.f32.mrb[0].mxu0
    %v1753 = vadd.f32 %v1205, %v1752
    %v1754 = vpop.f32.mrb[0].mxu0
    %1755 = vmatprep.mubr.bf16.mxu0 0
    %1756 = vmatmul.mubr.bf16.gmra.mrb[0].mxu0 %v1575
    %v1757 = vpop.f32.mrb[0].mxu0
    %v1758 = vadd.f32 %v1210, %v1757
    %v1759 = vpop.f32.mrb[0].mxu0
    %v1760 = vpop.f32.mrb[0].mxu0
    %v1761 = vadd.f32 %v1213, %v1760
    %v1762 = vpop.f32.mrb[0].mxu0
    %1763 = vmatprep.mubr.bf16.mxu0 0
    %1764 = vmatmul.mubr.bf16.gmra.mrb[0].mxu0 %v1578
    %v1765 = vpop.f32.mrb[0].mxu0
    %v1766 = vadd.f32 %v1218, %v1765
    %v1767 = vpop.f32.mrb[0].mxu0
    %v1768 = vpop.f32.mrb[0].mxu0
    %v1769 = vadd.f32 %v1221, %v1768
    %v1770 = vpop.f32.mrb[0].mxu0
    %1771 = vmatprep.mubr.bf16.mxu0 0
    %1772 = vmatmul.mubr.bf16.gmra.mrb[0].mxu0 %v1581
    %v1773 = vpop.f32.mrb[0].mxu0
    %v1774 = vadd.f32 %v1226, %v1773
    %v1775 = vpop.f32.mrb[0].mxu0
    %v1776 = vpop.f32.mrb[0].mxu0
    %v1777 = vadd.f32 %v1229, %v1776
    %v1778 = vpop.f32.mrb[0].mxu0
    %1779 = vmatprep.mubr.bf16.mxu0 0
    %1780 = vmatmul.mubr.bf16.gmra.mrb[0].mxu0 %v1584
    %v1781 = vpop.f32.mrb[0].mxu0
    %v1782 = vadd.f32 %v1234, %v1781
    %v1783 = vpop.f32.mrb[0].mxu0
    %v1784 = vpop.f32.mrb[0].mxu0
    %v1785 = vadd.f32 %v1237, %v1784
    %v1786 = vpop.f32.mrb[0].mxu0
    %1787 = vmatprep.mubr.bf16.mxu0 0
    %1788 = vmatmul.mubr.bf16.gmra.mrb[0].mxu0 %v1587
    %v1789 = vpop.f32.mrb[0].mxu0
    %v1790 = vadd.f32 %v1242, %v1789
    %v1791 = vpop.f32.mrb[0].mxu0
    %v1792 = vpop.f32.mrb[0].mxu0
    %v1793 = vadd.f32 %v1245, %v1792
    %v1794 = vpop.f32.mrb[0].mxu0
    %1795 = vmatprep.mubr.bf16.mxu0 0
    %1796 = vmatmul.mubr.bf16.gmra.mrb[0].mxu0 %v1590
    %v1797 = vpop.f32.mrb[0].mxu0
    %v1798 = vadd.f32 %v1250, %v1797
    %v1799 = vpop.f32.mrb[0].mxu0
    %v1800 = vpop.f32.mrb[0].mxu0
    %v1801 = vadd.f32 %v1253, %v1800
    %v1802 = vpop.f32.mrb[0].mxu0
    %1803 = vmatprep.mubr.bf16.mxu0 0
    %1804 = vmatmul.mubr.bf16.gmra.mrb[0].mxu0 %v1593
    %v1805 = vpop.f32.mrb[0].mxu0
    %v1806 = vadd.f32 %v1258, %v1805
    %v1807 = vpop.f32.mrb[0].mxu0
    %v1808 = vpop.f32.mrb[0].mxu0
    %v1809 = vadd.f32 %v1261, %v1808
    %v1810 = vpop.f32.mrb[0].mxu0
    %1811 = vmatprep.mubr.bf16.mxu0 0
    %1812 = vmatmul.mubr.bf16.gmra.mrb[0].mxu0 %v1596
    %v1813 = vpop.f32.mrb[0].mxu0
    %v1814 = vadd.f32 %v1266, %v1813
    %v1815 = vpop.f32.mrb[0].mxu0
    %v1816 = vpop.f32.mrb[0].mxu0
    %v1817 = vadd.f32 %v1269, %v1816
    %v1818 = vpop.f32.mrb[0].mxu0
    %1819 = vmatprep.mubr.bf16.mxu0 0
    %1820 = vmatmul.mubr.bf16.gmra.mrb[0].mxu0 %v1599
    %v1821 = vpop.f32.mrb[0].mxu0
    %v1822 = vadd.f32 %v1274, %v1821
    %v1823 = vpop.f32.mrb[0].mxu0
    %v1824 = vpop.f32.mrb[0].mxu0
    %v1825 = vadd.f32 %v1277, %v1824
    %v1826 = vpop.f32.mrb[0].mxu0
    %1827 = vmatprep.mubr.bf16.mxu0 0
    %1828 = vmatmul.mubr.bf16.gmra.mrb[0].mxu0 %v1602
    %v1829 = vpop.f32.mrb[0].mxu0
    %v1830 = vadd.f32 %v1282, %v1829
    %v1831 = vpop.f32.mrb[0].mxu0
    %v1832 = vpop.f32.mrb[0].mxu0
    %v1833 = vadd.f32 %v1285, %v1832
    %v1834 = vpop.f32.mrb[0].mxu0
    %1835 = vmatprep.mubr.bf16.mxu0 0
    %1836 = vmatmul.mubr.bf16.gmra.mrb[0].mxu0 %v1605
    %v1837 = vpop.f32.mrb[0].mxu0
    %v1838 = vadd.f32 %v1290, %v1837
    %v1839 = vpop.f32.mrb[0].mxu0
    %v1840 = vpop.f32.mrb[0].mxu0
    %v1841 = vadd.f32 %v1293, %v1840
    %v1842 = vpop.f32.mrb[0].mxu0
    %1843 = vmatprep.mubr.bf16.mxu0 0
    %1844 = vmatmul.mubr.bf16.gmra.mrb[0].mxu0 %v1608
    %v1845 = vpop.f32.mrb[0].mxu0
    %v1846 = vadd.f32 %v1298, %v1845
    %v1847 = vpop.f32.mrb[0].mxu0
    %v1848 = vpop.f32.mrb[0].mxu0
    %v1849 = vadd.f32 %v1301, %v1848
    %v1850 = vpop.f32.mrb[0].mxu0
    %1851 = vmatprep.mubr.bf16.mxu0 0
    %1852 = vmatmul.mubr.bf16.gmra.mrb[0].mxu0 %v1611
    %v1853 = vpop.f32.mrb[0].mxu0
    %v1854 = vadd.f32 %v1306, %v1853
    %v1855 = vpop.f32.mrb[0].mxu0
    %v1856 = vpop.f32.mrb[0].mxu0
    %v1857 = vadd.f32 %v1309, %v1856
    %v1858 = vpop.f32.mrb[0].mxu0
    %1859 = vmatprep.mubr.bf16.mxu0 0
    %1860 = vmatmul.mubr.bf16.gmra.mrb[0].mxu0 %v1614
    %v1861 = vpop.f32.mrb[0].mxu0
    %v1862 = vadd.f32 %v1314, %v1861
    %v1863 = vpop.f32.mrb[0].mxu0
    %v1864 = vpop.f32.mrb[0].mxu0
    %v1865 = vadd.f32 %v1317, %v1864
    %v1866 = vpop.f32.mrb[0].mxu0
    %1867 = vmatprep.mubr.bf16.mxu0 0
    %1868 = vmatmul.mubr.bf16.gmra.mrb[0].mxu0 %v1617
    %v1869 = vpop.f32.mrb[0].mxu0
    %v1870 = vadd.f32 %v1322, %v1869
    %v1871 = vpop.f32.mrb[0].mxu0
    %v1872 = vpop.f32.mrb[0].mxu0
    %v1873 = vadd.f32 %v1325, %v1872
    %v1874 = vpop.f32.mrb[0].mxu0
    %1875 = vmatprep.mubr.bf16.mxu0 0
    %1876 = vmatmul.mubr.bf16.gmra.mrb[0].mxu0 %v1620
    %v1877 = vpop.f32.mrb[0].mxu0
    %v1878 = vadd.f32 %v1330, %v1877
    %v1879 = vpop.f32.mrb[0].mxu0
    %v1880 = vpop.f32.mrb[0].mxu0
    %v1881 = vadd.f32 %v1333, %v1880
    %v1882 = vpop.f32.mrb[0].mxu0
    %1883 = vmatprep.mubr.bf16.mxu0 0
    %1884 = vmatmul.mubr.bf16.gmra.mrb[0].mxu0 %v1623
    %v1885 = vpop.f32.mrb[0].mxu0
    %v1886 = vadd.f32 %v1338, %v1885
    %v1887 = vpop.f32.mrb[0].mxu0
    %v1888 = vpop.f32.mrb[0].mxu0
    %v1889 = vadd.f32 %v1341, %v1888
    %v1890 = vpop.f32.mrb[0].mxu0
    %1891 = vmatprep.mubr.bf16.mxu0 0
    %1892 = vmatmul.mubr.bf16.gmra.mrb[0].mxu0 %v1626
    %v1893 = vpop.f32.mrb[0].mxu0
    %v1894 = vadd.f32 %v1346, %v1893
    %v1895 = vpop.f32.mrb[0].mxu0
    %v1896 = vpop.f32.mrb[0].mxu0
    %v1897 = vadd.f32 %v1349, %v1896
    %v1898 = vpop.f32.mrb[0].mxu0
    %1899 = vmatprep.mubr.bf16.mxu0 0
    %1900 = vmatmul.mubr.bf16.gmra.mrb[0].mxu0 %v1629
    %v1901 = vpop.f32.mrb[0].mxu0
    %v1902 = vadd.f32 %v1354, %v1901
    %v1903 = vpop.f32.mrb[0].mxu0
    %v1904 = vpop.f32.mrb[0].mxu0
    %v1905 = vadd.f32 %v1357, %v1904
    %v1906 = vpop.f32.mrb[0].mxu0
    %1907 = vmatprep.mubr.bf16.mxu0 0
    %1908 = vmatmul.mubr.bf16.gmra.mrb[0].mxu0 %v1632
    %v1909 = vpop.f32.mrb[0].mxu0
    %v1910 = vadd.f32 %v1362, %v1909
    %v1911 = vpop.f32.mrb[0].mxu0
    %v1912 = vpop.f32.mrb[0].mxu0
    %v1913 = vadd.f32 %v1365, %v1912
    %v1914 = vpop.f32.mrb[0].mxu0
    %1915 = vmatprep.mubr.bf16.mxu0 0
    %1916 = vmatmul.mubr.bf16.gmra.mrb[0].mxu0 %v1635
    %v1917 = vpop.f32.mrb[0].mxu0
    %v1918 = vadd.f32 %v1370, %v1917
    %v1919 = vpop.f32.mrb[0].mxu0
    %v1920 = vpop.f32.mrb[0].mxu0
    %v1921 = vadd.f32 %v1373, %v1920
    %v1922 = vpop.f32.mrb[0].mxu0
    %1923 = vmatprep.mubr.bf16.mxu0 0
    %1924 = vmatmul.mubr.bf16.gmra.mrb[0].mxu0 %v1638
    %v1925 = vpop.f32.mrb[0].mxu0
    %v1926 = vadd.f32 %v1378, %v1925
    %v1927 = vpop.f32.mrb[0].mxu0
    %v1928 = vpop.f32.mrb[0].mxu0
    %v1929 = vadd.f32 %v1381, %v1928
    %v1930 = vpop.f32.mrb[0].mxu0
    %1931 = vdwg.mxu0
    %vm1964 = vcmask 1042432
    %vm1965 = vcmask 1046532
    %vm1966 = vmor %vm1964, %vm1965
    %v1967 = vrot.slane %v16, 5
    %v1968 = vrot.slane %v1967, 4
    %v1969 = vrot.slane %v17, 5
    %v1970 = vsel %vm1966, %v1968, %v1969
    %v1971 = vrot.slane %v1969, 4
    %v1972 = vrot.slane %v18, 5
    %v1973 = vsel %vm1966, %v1971, %v1972
    %v1974 = vrot.slane %v19, 5
    %v1975 = vrot.slane %v1974, 4
    %v1976 = vrot.slane %v20, 5
    %v1977 = vsel %vm1966, %v1975, %v1976
    %v1978 = vrot.slane %v1976, 4
    %v1979 = vrot.slane %v21, 5
    %v1980 = vsel %vm1966, %v1978, %v1979
    %v1981 = vrot.slane %v22, 5
    %v1982 = vrot.slane %v1981, 4
    %v1983 = vrot.slane %v23, 5
    %v1984 = vsel %vm1966, %v1982, %v1983
    %v1985 = vrot.slane %v1983, 4
    %v1986 = vrot.slane %v24, 5
    %v1987 = vsel %vm1966, %v1985, %v1986
    %v1988 = vrot.slane %v25, 5
    %v1989 = vrot.slane %v1988, 4
    %v1990 = vrot.slane %v26, 5
    %v1991 = vsel %vm1966, %v1989, %v1990
    %v1992 = vrot.slane %v1990, 4
    %v1993 = vrot.slane %v27, 5
    %v1994 = vsel %vm1966, %v1992, %v1993
    %v1995 = vrot.slane %v28, 5
    %v1996 = vrot.slane %v1995, 4
    %v1997 = vrot.slane %v29, 5
    %v1998 = vsel %vm1966, %v1996, %v1997
    %v1999 = vrot.slane %v1997, 4
    %v2000 = vrot.slane %v30, 5
    %v2001 = vsel %vm1966, %v1999, %v2000
    %v2002 = vrot.slane %v31, 5
    %v2003 = vrot.slane %v2002, 4
    %v2004 = vrot.slane %v32, 5
    %v2005 = vsel %vm1966, %v2003, %v2004
    %v2006 = vrot.slane %v2004, 4
    %v2007 = vrot.slane %v33, 5
    %v2008 = vsel %vm1966, %v2006, %v2007
    %v2009 = vrot.slane %v34, 5
    %v2010 = vrot.slane %v2009, 4
    %v2011 = vrot.slane %v35, 5
    %v2012 = vsel %vm1966, %v2010, %v2011
    %v2013 = vrot.slane %v2011, 4
    %v2014 = vrot.slane %v36, 5
    %v2015 = vsel %vm1966, %v2013, %v2014
    %v2016 = vrot.slane %v37, 5
    %v2017 = vrot.slane %v2016, 4
    %v2018 = vrot.slane %v38, 5
    %v2019 = vsel %vm1966, %v2017, %v2018
    %v2020 = vrot.slane %v2018, 4
    %v2021 = vrot.slane %v39, 5
    %v2022 = vsel %vm1966, %v2020, %v2021
    %v2023 = vrot.slane %v40, 5
    %v2024 = vrot.slane %v2023, 4
    %v2025 = vrot.slane %v41, 5
    %v2026 = vsel %vm1966, %v2024, %v2025
    %v2027 = vrot.slane %v2025, 4
    %v2028 = vrot.slane %v42, 5
    %v2029 = vsel %vm1966, %v2027, %v2028
    %v2030 = vrot.slane %v43, 5
    %v2031 = vrot.slane %v2030, 4
    %v2032 = vrot.slane %v44, 5
    %v2033 = vsel %vm1966, %v2031, %v2032
    %v2034 = vrot.slane %v2032, 4
    %v2035 = vrot.slane %v45, 5
    %v2036 = vsel %vm1966, %v2034, %v2035
    %v2037 = vrot.slane %v46, 5
    %v2038 = vrot.slane %v2037, 4
    %v2039 = vrot.slane %v47, 5
    %v2040 = vsel %vm1966, %v2038, %v2039
    %v2041 = vrot.slane %v2039, 4
    %v2042 = vrot.slane %v48, 5
    %v2043 = vsel %vm1966, %v2041, %v2042
    %v2044 = vrot.slane %v49, 5
    %v2045 = vrot.slane %v2044, 4
    %v2046 = vrot.slane %v50, 5
    %v2047 = vsel %vm1966, %v2045, %v2046
    %v2048 = vrot.slane %v2046, 4
    %v2049 = vrot.slane %v51, 5
    %v2050 = vsel %vm1966, %v2048, %v2049
    %v2051 = vrot.slane %v52, 5
    %v2052 = vrot.slane %v2051, 4
    %v2053 = vrot.slane %v53, 5
    %v2054 = vsel %vm1966, %v2052, %v2053
    %v2055 = vrot.slane %v2053, 4
    %v2056 = vrot.slane %v54, 5
    %v2057 = vsel %vm1966, %v2055, %v2056
    %v2058 = vrot.slane %v55, 5
    %v2059 = vrot.slane %v2058, 4
    %v2060 = vrot.slane %v56, 5
    %v2061 = vsel %vm1966, %v2059, %v2060
    %v2062 = vrot.slane %v2060, 4
    %v2063 = vrot.slane %v57, 5
    %v2064 = vsel %vm1966, %v2062, %v2063
    %v2065 = vrot.slane %v58, 5
    %v2066 = vrot.slane %v2065, 4
    %v2067 = vrot.slane %v59, 5
    %v2068 = vsel %vm1966, %v2066, %v2067
    %v2069 = vrot.slane %v2067, 4
    %v2070 = vrot.slane %v60, 5
    %v2071 = vsel %vm1966, %v2069, %v2070
    %v2072 = vrot.slane %v61, 5
    %v2073 = vrot.slane %v2072, 4
    %v2074 = vrot.slane %v62, 5
    %v2075 = vsel %vm1966, %v2073, %v2074
    %v2076 = vrot.slane %v2074, 4
    %v2077 = vrot.slane %v63, 5
    %v2078 = vsel %vm1966, %v2076, %v2077
    %v2079 = vrot.slane %v70, 5
    %v2080 = vrot.slane %v2079, 4
    %v2081 = vrot.slane %v71, 5
    %v2082 = vsel %vm1966, %v2080, %v2081
    %v2083 = vrot.slane %v2081, 4
    %v2084 = vrot.slane %v72, 5
    %v2085 = vsel %vm1966, %v2083, %v2084
    %v2086 = vrot.slane %v73, 5
    %v2087 = vrot.slane %v2086, 4
    %v2088 = vrot.slane %v74, 5
    %v2089 = vsel %vm1966, %v2087, %v2088
    %v2090 = vrot.slane %v2088, 4
    %v2091 = vrot.slane %v75, 5
    %v2092 = vsel %vm1966, %v2090, %v2091
    %v2093 = vrot.slane %v76, 5
    %v2094 = vrot.slane %v2093, 4
    %v2095 = vrot.slane %v77, 5
    %v2096 = vsel %vm1966, %v2094, %v2095
    %v2097 = vrot.slane %v2095, 4
    %v2098 = vrot.slane %v78, 5
    %v2099 = vsel %vm1966, %v2097, %v2098
    %v2100 = vrot.slane %v79, 5
    %v2101 = vrot.slane %v2100, 4
    %v2102 = vrot.slane %v80, 5
    %v2103 = vsel %vm1966, %v2101, %v2102
    %v2104 = vrot.slane %v2102, 4
    %v2105 = vrot.slane %v81, 5
    %v2106 = vsel %vm1966, %v2104, %v2105
    %v2107 = vrot.slane %v82, 5
    %v2108 = vrot.slane %v2107, 4
    %v2109 = vrot.slane %v83, 5
    %v2110 = vsel %vm1966, %v2108, %v2109
    %v2111 = vrot.slane %v2109, 4
    %v2112 = vrot.slane %v84, 5
    %v2113 = vsel %vm1966, %v2111, %v2112
    %v2114 = vrot.slane %v85, 5
    %v2115 = vrot.slane %v2114, 4
    %v2116 = vrot.slane %v86, 5
    %v2117 = vsel %vm1966, %v2115, %v2116
    %v2118 = vrot.slane %v2116, 4
    %v2119 = vrot.slane %v87, 5
    %v2120 = vsel %vm1966, %v2118, %v2119
    %v2121 = vrot.slane %v88, 5
    %v2122 = vrot.slane %v2121, 4
    %v2123 = vrot.slane %v89, 5
    %v2124 = vsel %vm1966, %v2122, %v2123
    %v2125 = vrot.slane %v2123, 4
    %v2126 = vrot.slane %v90, 5
    %v2127 = vsel %vm1966, %v2125, %v2126
    %v2128 = vrot.slane %v91, 5
    %v2129 = vrot.slane %v2128, 4
    %v2130 = vrot.slane %v92, 5
    %v2131 = vsel %vm1966, %v2129, %v2130
    %v2132 = vrot.slane %v2130, 4
    %v2133 = vrot.slane %v93, 5
    %v2134 = vsel %vm1966, %v2132, %v2133
    %v2135 = vrot.slane %v94, 5
    %v2136 = vrot.slane %v2135, 4
    %v2137 = vrot.slane %v95, 5
    %v2138 = vsel %vm1966, %v2136, %v2137
    %v2139 = vrot.slane %v2137, 4
    %v2140 = vrot.slane %v96, 5
    %v2141 = vsel %vm1966, %v2139, %v2140
    %v2142 = vrot.slane %v97, 5
    %v2143 = vrot.slane %v2142, 4
    %v2144 = vrot.slane %v98, 5
    %v2145 = vsel %vm1966, %v2143, %v2144
    %v2146 = vrot.slane %v2144, 4
    %v2147 = vrot.slane %v99, 5
    %v2148 = vsel %vm1966, %v2146, %v2147
    %v2149 = vrot.slane %v100, 5
    %v2150 = vrot.slane %v2149, 4
    %v2151 = vrot.slane %v101, 5
    %v2152 = vsel %vm1966, %v2150, %v2151
    %v2153 = vrot.slane %v2151, 4
    %v2154 = vrot.slane %v102, 5
    %v2155 = vsel %vm1966, %v2153, %v2154
    %v2156 = vrot.slane %v103, 5
    %v2157 = vrot.slane %v2156, 4
    %v2158 = vrot.slane %v104, 5
    %v2159 = vsel %vm1966, %v2157, %v2158
    %v2160 = vrot.slane %v2158, 4
    %v2161 = vrot.slane %v105, 5
    %v2162 = vsel %vm1966, %v2160, %v2161
    %v2163 = vrot.slane %v106, 5
    %v2164 = vrot.slane %v2163, 4
    %v2165 = vrot.slane %v107, 5
    %v2166 = vsel %vm1966, %v2164, %v2165
    %v2167 = vrot.slane %v2165, 4
    %v2168 = vrot.slane %v108, 5
    %v2169 = vsel %vm1966, %v2167, %v2168
    %v2170 = vrot.slane %v109, 5
    %v2171 = vrot.slane %v2170, 4
    %v2172 = vrot.slane %v110, 5
    %v2173 = vsel %vm1966, %v2171, %v2172
    %v2174 = vrot.slane %v2172, 4
    %v2175 = vrot.slane %v111, 5
    %v2176 = vsel %vm1966, %v2174, %v2175
    %v2177 = vrot.slane %v112, 5
    %v2178 = vrot.slane %v2177, 4
    %v2179 = vrot.slane %v113, 5
    %v2180 = vsel %vm1966, %v2178, %v2179
    %v2181 = vrot.slane %v2179, 4
    %v2182 = vrot.slane %v114, 5
    %v2183 = vsel %vm1966, %v2181, %v2182
    %v2184 = vrot.slane %v115, 5
    %v2185 = vrot.slane %v2184, 4
    %v2186 = vrot.slane %v116, 5
    %v2187 = vsel %vm1966, %v2185, %v2186
    %v2188 = vrot.slane %v2186, 4
    %v2189 = vrot.slane %v117, 5
    %v2190 = vsel %vm1966, %v2188, %v2189
    %s2191 = scalar_lea.vmem %s1, 8
    %v2192 = vld [vmem:[%s2191] sm:$0xf]
    %v2193 = vunpack.c.l.b16 %v1970
    %v2194 = vunpack.c.l.b16 %v1973
    %v2195 = vunpack.c.l.b16 %v1977
    %v2196 = vunpack.c.l.b16 %v1980
    %v2197 = vunpack.c.l.b16 %v1984
    %v2198 = vunpack.c.l.b16 %v1987
    %v2199 = vunpack.c.l.b16 %v1991
    %v2200 = vunpack.c.l.b16 %v1994
    %v2201 = vunpack.c.l.b16 %v1998
    %v2202 = vunpack.c.l.b16 %v2001
    %v2203 = vunpack.c.l.b16 %v2005
    %v2204 = vunpack.c.l.b16 %v2008
    %v2205 = vunpack.c.l.b16 %v2012
    %v2206 = vunpack.c.l.b16 %v2015
    %v2207 = vunpack.c.l.b16 %v2019
    %v2208 = vunpack.c.l.b16 %v2022
    %v2209 = vunpack.c.l.b16 %v2026
    %v2210 = vunpack.c.l.b16 %v2029
    %v2211 = vunpack.c.l.b16 %v2033
    %v2212 = vunpack.c.l.b16 %v2036
    %v2213 = vunpack.c.l.b16 %v2040
    %v2214 = vunpack.c.l.b16 %v2043
    %v2215 = vunpack.c.l.b16 %v2047
    %v2216 = vunpack.c.l.b16 %v2050
    %v2217 = vunpack.c.l.b16 %v2054
    %v2218 = vunpack.c.l.b16 %v2057
    %v2219 = vunpack.c.l.b16 %v2061
    %v2220 = vunpack.c.l.b16 %v2064
    %v2221 = vunpack.c.l.b16 %v2068
    %v2222 = vunpack.c.l.b16 %v2071
    %v2223 = vunpack.c.l.b16 %v2075
    %v2224 = vunpack.c.l.b16 %v2078
    %v2225 = vunpack.c.l.b16 %v2082
    %v2226 = vunpack.c.l.b16 %v2085
    %v2227 = vunpack.c.l.b16 %v2089
    %v2228 = vunpack.c.l.b16 %v2092
    %v2229 = vunpack.c.l.b16 %v2096
    %v2230 = vunpack.c.l.b16 %v2099
    %v2231 = vunpack.c.l.b16 %v2103
    %v2232 = vunpack.c.l.b16 %v2106
    %v2233 = vunpack.c.l.b16 %v2110
    %v2234 = vunpack.c.l.b16 %v2113
    %v2235 = vunpack.c.l.b16 %v2117
    %v2236 = vunpack.c.l.b16 %v2120
    %v2237 = vunpack.c.l.b16 %v2124
    %v2238 = vunpack.c.l.b16 %v2127
    %v2239 = vunpack.c.l.b16 %v2131
    %v2240 = vunpack.c.l.b16 %v2134
    %v2241 = vunpack.c.l.b16 %v2138
    %v2242 = vunpack.c.l.b16 %v2141
    %v2243 = vunpack.c.l.b16 %v2145
    %v2244 = vunpack.c.l.b16 %v2148
    %v2245 = vunpack.c.l.b16 %v2152
    %v2246 = vunpack.c.l.b16 %v2155
    %v2247 = vunpack.c.l.b16 %v2159
    %v2248 = vunpack.c.l.b16 %v2162
    %v2249 = vunpack.c.l.b16 %v2166
    %v2250 = vunpack.c.l.b16 %v2169
    %v2251 = vunpack.c.l.b16 %v2173
    %v2252 = vunpack.c.l.b16 %v2176
    %v2253 = vunpack.c.l.b16 %v2180
    %v2254 = vunpack.c.l.b16 %v2183
    %v2255 = vunpack.c.l.b16 %v2187
    %v2256 = vunpack.c.l.b16 %v2190
    %v2257 = vpack.c.b16 %v2194, %v2193
    %v2258 = vpack.c.b16 %v2196, %v2195
    %v2259 = vpack.c.b16 %v2198, %v2197
    %v2260 = vpack.c.b16 %v2200, %v2199
    %v2261 = vpack.c.b16 %v2202, %v2201
    %v2262 = vpack.c.b16 %v2204, %v2203
    %v2263 = vpack.c.b16 %v2206, %v2205
    %v2264 = vpack.c.b16 %v2208, %v2207
    %v2265 = vpack.c.b16 %v2210, %v2209
    %v2266 = vpack.c.b16 %v2212, %v2211
    %v2267 = vpack.c.b16 %v2214, %v2213
    %v2268 = vpack.c.b16 %v2216, %v2215
    %v2269 = vpack.c.b16 %v2218, %v2217
    %v2270 = vpack.c.b16 %v2220, %v2219
    %v2271 = vpack.c.b16 %v2222, %v2221
    %v2272 = vpack.c.b16 %v2224, %v2223
    %v2273 = vpack.c.b16 %v2226, %v2225
    %v2274 = vpack.c.b16 %v2228, %v2227
    %v2275 = vpack.c.b16 %v2230, %v2229
    %v2276 = vpack.c.b16 %v2232, %v2231
    %v2277 = vpack.c.b16 %v2234, %v2233
    %v2278 = vpack.c.b16 %v2236, %v2235
    %v2279 = vpack.c.b16 %v2238, %v2237
    %v2280 = vpack.c.b16 %v2240, %v2239
    %v2281 = vpack.c.b16 %v2242, %v2241
    %v2282 = vpack.c.b16 %v2244, %v2243
    %v2283 = vpack.c.b16 %v2246, %v2245
    %v2284 = vpack.c.b16 %v2248, %v2247
    %v2285 = vpack.c.b16 %v2250, %v2249
    %v2286 = vpack.c.b16 %v2252, %v2251
    %v2287 = vpack.c.b16 %v2254, %v2253
    %v2288 = vpack.c.b16 %v2256, %v2255
    %v2290 = vsel %vm994, %v2257, 0
    %v2293 = vsel %vm994, %v2258, 0
    %v2296 = vsel %vm994, %v2259, 0
    %v2299 = vsel %vm994, %v2260, 0
    %v2302 = vsel %vm994, %v2261, 0
    %v2305 = vsel %vm994, %v2262, 0
    %v2308 = vsel %vm994, %v2263, 0
    %v2311 = vsel %vm994, %v2264, 0
    %v2314 = vsel %vm994, %v2265, 0
    %v2317 = vsel %vm994, %v2266, 0
    %v2320 = vsel %vm994, %v2267, 0
    %v2323 = vsel %vm994, %v2268, 0
    %v2326 = vsel %vm994, %v2269, 0
    %v2329 = vsel %vm994, %v2270, 0
    %v2332 = vsel %vm994, %v2271, 0
    %v2335 = vsel %vm994, %v2272, 0
    %v2338 = vsel %vm994, %v2273, 0
    %v2341 = vsel %vm994, %v2274, 0
    %v2344 = vsel %vm994, %v2275, 0
    %v2347 = vsel %vm994, %v2276, 0
    %v2350 = vsel %vm994, %v2277, 0
    %v2353 = vsel %vm994, %v2278, 0
    %v2356 = vsel %vm994, %v2279, 0
    %v2359 = vsel %vm994, %v2280, 0
    %v2362 = vsel %vm994, %v2281, 0
    %v2365 = vsel %vm994, %v2282, 0
    %v2368 = vsel %vm994, %v2283, 0
    %v2371 = vsel %vm994, %v2284, 0
    %v2374 = vsel %vm994, %v2285, 0
    %v2377 = vsel %vm994, %v2286, 0
    %v2380 = vsel %vm994, %v2287, 0
    %v2383 = vsel %vm994, %v2288, 0
    %v2386 = vsel %vm1091, %v2192, 0
    %2388 = vmatprep.subr.bf16.mxu0 0
    %2389 = vmatpush1.bf16.msra.mxu0 %v2386
    %2390 = vmatprep.subr.bf16.mxu0 0
    %2391 = vmatpush1.bf16.msra.mxu0 0
    %2392 = vmatprep.subr.bf16.mxu0 0
    %2393 = vmatpush1.bf16.msra.mxu0 0
    %2394 = vmatprep.subr.bf16.mxu0 0
    %2395 = vmatpush1.bf16.msra.mxu0 0
    %2396 = vmatprep.subr.bf16.mxu0 0
    %2397 = vmatpush1.bf16.msra.mxu0 0
    %2398 = vmatprep.subr.bf16.mxu0 0
    %2399 = vmatpush1.bf16.msra.mxu0 0
    %2400 = vmatprep.subr.bf16.mxu0 0
    %2401 = vmatpush1.bf16.msra.mxu0 0
    %2402 = vmatprep.subr.bf16.mxu0 0
    %2403 = vmatpush1.bf16.msra.mxu0 0
    %2404 = vmatprep.subr.bf16.mxu0 0
    %2405 = vmatpush1.bf16.msra.mxu0 0
    %2406 = vmatprep.subr.bf16.mxu0 0
    %2407 = vmatpush1.bf16.msra.mxu0 0
    %2408 = vmatprep.subr.bf16.mxu0 0
    %2409 = vmatpush1.bf16.msra.mxu0 0
    %2410 = vmatprep.subr.bf16.mxu0 0
    %2411 = vmatpush1.bf16.msra.mxu0 0
    %2412 = vmatprep.subr.bf16.mxu0 0
    %2413 = vmatpush1.bf16.msra.mxu0 0
    %2414 = vmatprep.subr.bf16.mxu0 0
    %2415 = vmatpush1.bf16.msra.mxu0 0
    %2416 = vmatprep.subr.bf16.mxu0 0
    %2417 = vmatpush1.bf16.msra.mxu0 0
    %2418 = vmatprep.subr.bf16.mxu0 0
    %2419 = vmatpush1.bf16.msra.mxu0 0
    %2420 = vmatprep.mubr.bf16.mxu0 0
    %2421 = vmatmul.mubr.bf16.gmra.mrb[0].mxu0 %v2290
    %v2422 = vpop.f32.mrb[0].mxu0
    %v2423 = vadd.f32 0.0, %v2422
    %v2424 = vpop.f32.mrb[0].mxu0
    %v2425 = vpop.f32.mrb[0].mxu0
    %v2426 = vadd.f32 0.0, %v2425
    %v2427 = vpop.f32.mrb[0].mxu0
    %2428 = vmatprep.mubr.bf16.mxu0 0
    %2429 = vmatmul.mubr.bf16.gmra.mrb[0].mxu0 %v2293
    %v2430 = vpop.f32.mrb[0].mxu0
    %v2431 = vadd.f32 0.0, %v2430
    %v2432 = vpop.f32.mrb[0].mxu0
    %v2433 = vpop.f32.mrb[0].mxu0
    %v2434 = vadd.f32 0.0, %v2433
    %v2435 = vpop.f32.mrb[0].mxu0
    %2436 = vmatprep.mubr.bf16.mxu0 0
    %2437 = vmatmul.mubr.bf16.gmra.mrb[0].mxu0 %v2296
    %v2438 = vpop.f32.mrb[0].mxu0
    %v2439 = vadd.f32 0.0, %v2438
    %v2440 = vpop.f32.mrb[0].mxu0
    %v2441 = vpop.f32.mrb[0].mxu0
    %v2442 = vadd.f32 0.0, %v2441
    %v2443 = vpop.f32.mrb[0].mxu0
    %2444 = vmatprep.mubr.bf16.mxu0 0
    %2445 = vmatmul.mubr.bf16.gmra.mrb[0].mxu0 %v2299
    %v2446 = vpop.f32.mrb[0].mxu0
    %v2447 = vadd.f32 0.0, %v2446
    %v2448 = vpop.f32.mrb[0].mxu0
    %v2449 = vpop.f32.mrb[0].mxu0
    %v2450 = vadd.f32 0.0, %v2449
    %v2451 = vpop.f32.mrb[0].mxu0
    %2452 = vmatprep.mubr.bf16.mxu0 0
    %2453 = vmatmul.mubr.bf16.gmra.mrb[0].mxu0 %v2302
    %v2454 = vpop.f32.mrb[0].mxu0
    %v2455 = vadd.f32 0.0, %v2454
    %v2456 = vpop.f32.mrb[0].mxu0
    %v2457 = vpop.f32.mrb[0].mxu0
    %v2458 = vadd.f32 0.0, %v2457
    %v2459 = vpop.f32.mrb[0].mxu0
    %2460 = vmatprep.mubr.bf16.mxu0 0
    %2461 = vmatmul.mubr.bf16.gmra.mrb[0].mxu0 %v2305
    %v2462 = vpop.f32.mrb[0].mxu0
    %v2463 = vadd.f32 0.0, %v2462
    %v2464 = vpop.f32.mrb[0].mxu0
    %v2465 = vpop.f32.mrb[0].mxu0
    %v2466 = vadd.f32 0.0, %v2465
    %v2467 = vpop.f32.mrb[0].mxu0
    %2468 = vmatprep.mubr.bf16.mxu0 0
    %2469 = vmatmul.mubr.bf16.gmra.mrb[0].mxu0 %v2308
    %v2470 = vpop.f32.mrb[0].mxu0
    %v2471 = vadd.f32 0.0, %v2470
    %v2472 = vpop.f32.mrb[0].mxu0
    %v2473 = vpop.f32.mrb[0].mxu0
    %v2474 = vadd.f32 0.0, %v2473
    %v2475 = vpop.f32.mrb[0].mxu0
    %2476 = vmatprep.mubr.bf16.mxu0 0
    %2477 = vmatmul.mubr.bf16.gmra.mrb[0].mxu0 %v2311
    %v2478 = vpop.f32.mrb[0].mxu0
    %v2479 = vadd.f32 0.0, %v2478
    %v2480 = vpop.f32.mrb[0].mxu0
    %v2481 = vpop.f32.mrb[0].mxu0
    %v2482 = vadd.f32 0.0, %v2481
    %v2483 = vpop.f32.mrb[0].mxu0
    %2484 = vmatprep.mubr.bf16.mxu0 0
    %2485 = vmatmul.mubr.bf16.gmra.mrb[0].mxu0 %v2314
    %v2486 = vpop.f32.mrb[0].mxu0
    %v2487 = vadd.f32 0.0, %v2486
    %v2488 = vpop.f32.mrb[0].mxu0
    %v2489 = vpop.f32.mrb[0].mxu0
    %v2490 = vadd.f32 0.0, %v2489
    %v2491 = vpop.f32.mrb[0].mxu0
    %2492 = vmatprep.mubr.bf16.mxu0 0
    %2493 = vmatmul.mubr.bf16.gmra.mrb[0].mxu0 %v2317
    %v2494 = vpop.f32.mrb[0].mxu0
    %v2495 = vadd.f32 0.0, %v2494
    %v2496 = vpop.f32.mrb[0].mxu0
    %v2497 = vpop.f32.mrb[0].mxu0
    %v2498 = vadd.f32 0.0, %v2497
    %v2499 = vpop.f32.mrb[0].mxu0
    %2500 = vmatprep.mubr.bf16.mxu0 0
    %2501 = vmatmul.mubr.bf16.gmra.mrb[0].mxu0 %v2320
    %v2502 = vpop.f32.mrb[0].mxu0
    %v2503 = vadd.f32 0.0, %v2502
    %v2504 = vpop.f32.mrb[0].mxu0
    %v2505 = vpop.f32.mrb[0].mxu0
    %v2506 = vadd.f32 0.0, %v2505
    %v2507 = vpop.f32.mrb[0].mxu0
    %2508 = vmatprep.mubr.bf16.mxu0 0
    %2509 = vmatmul.mubr.bf16.gmra.mrb[0].mxu0 %v2323
    %v2510 = vpop.f32.mrb[0].mxu0
    %v2511 = vadd.f32 0.0, %v2510
    %v2512 = vpop.f32.mrb[0].mxu0
    %v2513 = vpop.f32.mrb[0].mxu0
    %v2514 = vadd.f32 0.0, %v2513
    %v2515 = vpop.f32.mrb[0].mxu0
    %2516 = vmatprep.mubr.bf16.mxu0 0
    %2517 = vmatmul.mubr.bf16.gmra.mrb[0].mxu0 %v2326
    %v2518 = vpop.f32.mrb[0].mxu0
    %v2519 = vadd.f32 0.0, %v2518
    %v2520 = vpop.f32.mrb[0].mxu0
    %v2521 = vpop.f32.mrb[0].mxu0
    %v2522 = vadd.f32 0.0, %v2521
    %v2523 = vpop.f32.mrb[0].mxu0
    %2524 = vmatprep.mubr.bf16.mxu0 0
    %2525 = vmatmul.mubr.bf16.gmra.mrb[0].mxu0 %v2329
    %v2526 = vpop.f32.mrb[0].mxu0
    %v2527 = vadd.f32 0.0, %v2526
    %v2528 = vpop.f32.mrb[0].mxu0
    %v2529 = vpop.f32.mrb[0].mxu0
    %v2530 = vadd.f32 0.0, %v2529
    %v2531 = vpop.f32.mrb[0].mxu0
    %2532 = vmatprep.mubr.bf16.mxu0 0
    %2533 = vmatmul.mubr.bf16.gmra.mrb[0].mxu0 %v2332
    %v2534 = vpop.f32.mrb[0].mxu0
    %v2535 = vadd.f32 0.0, %v2534
    %v2536 = vpop.f32.mrb[0].mxu0
    %v2537 = vpop.f32.mrb[0].mxu0
    %v2538 = vadd.f32 0.0, %v2537
    %v2539 = vpop.f32.mrb[0].mxu0
    %2540 = vmatprep.mubr.bf16.mxu0 0
    %2541 = vmatmul.mubr.bf16.gmra.mrb[0].mxu0 %v2335
    %v2542 = vpop.f32.mrb[0].mxu0
    %v2543 = vadd.f32 0.0, %v2542
    %v2544 = vpop.f32.mrb[0].mxu0
    %v2545 = vpop.f32.mrb[0].mxu0
    %v2546 = vadd.f32 0.0, %v2545
    %v2547 = vpop.f32.mrb[0].mxu0
    %2548 = vmatprep.mubr.bf16.mxu0 0
    %2549 = vmatmul.mubr.bf16.gmra.mrb[0].mxu0 %v2338
    %v2550 = vpop.f32.mrb[0].mxu0
    %v2551 = vadd.f32 0.0, %v2550
    %v2552 = vpop.f32.mrb[0].mxu0
    %v2553 = vpop.f32.mrb[0].mxu0
    %v2554 = vadd.f32 0.0, %v2553
    %v2555 = vpop.f32.mrb[0].mxu0
    %2556 = vmatprep.mubr.bf16.mxu0 0
    %2557 = vmatmul.mubr.bf16.gmra.mrb[0].mxu0 %v2341
    %v2558 = vpop.f32.mrb[0].mxu0
    %v2559 = vadd.f32 0.0, %v2558
    %v2560 = vpop.f32.mrb[0].mxu0
    %v2561 = vpop.f32.mrb[0].mxu0
    %v2562 = vadd.f32 0.0, %v2561
    %v2563 = vpop.f32.mrb[0].mxu0
    %2564 = vmatprep.mubr.bf16.mxu0 0
    %2565 = vmatmul.mubr.bf16.gmra.mrb[0].mxu0 %v2344
    %v2566 = vpop.f32.mrb[0].mxu0
    %v2567 = vadd.f32 0.0, %v2566
    %v2568 = vpop.f32.mrb[0].mxu0
    %v2569 = vpop.f32.mrb[0].mxu0
    %v2570 = vadd.f32 0.0, %v2569
    %v2571 = vpop.f32.mrb[0].mxu0
    %2572 = vmatprep.mubr.bf16.mxu0 0
    %2573 = vmatmul.mubr.bf16.gmra.mrb[0].mxu0 %v2347
    %v2574 = vpop.f32.mrb[0].mxu0
    %v2575 = vadd.f32 0.0, %v2574
    %v2576 = vpop.f32.mrb[0].mxu0
    %v2577 = vpop.f32.mrb[0].mxu0
    %v2578 = vadd.f32 0.0, %v2577
    %v2579 = vpop.f32.mrb[0].mxu0
    %2580 = vmatprep.mubr.bf16.mxu0 0
    %2581 = vmatmul.mubr.bf16.gmra.mrb[0].mxu0 %v2350
    %v2582 = vpop.f32.mrb[0].mxu0
    %v2583 = vadd.f32 0.0, %v2582
    %v2584 = vpop.f32.mrb[0].mxu0
    %v2585 = vpop.f32.mrb[0].mxu0
    %v2586 = vadd.f32 0.0, %v2585
    %v2587 = vpop.f32.mrb[0].mxu0
    %2588 = vmatprep.mubr.bf16.mxu0 0
    %2589 = vmatmul.mubr.bf16.gmra.mrb[0].mxu0 %v2353
    %v2590 = vpop.f32.mrb[0].mxu0
    %v2591 = vadd.f32 0.0, %v2590
    %v2592 = vpop.f32.mrb[0].mxu0
    %v2593 = vpop.f32.mrb[0].mxu0
    %v2594 = vadd.f32 0.0, %v2593
    %v2595 = vpop.f32.mrb[0].mxu0
    %2596 = vmatprep.mubr.bf16.mxu0 0
    %2597 = vmatmul.mubr.bf16.gmra.mrb[0].mxu0 %v2356
    %v2598 = vpop.f32.mrb[0].mxu0
    %v2599 = vadd.f32 0.0, %v2598
    %v2600 = vpop.f32.mrb[0].mxu0
    %v2601 = vpop.f32.mrb[0].mxu0
    %v2602 = vadd.f32 0.0, %v2601
    %v2603 = vpop.f32.mrb[0].mxu0
    %2604 = vmatprep.mubr.bf16.mxu0 0
    %2605 = vmatmul.mubr.bf16.gmra.mrb[0].mxu0 %v2359
    %v2606 = vpop.f32.mrb[0].mxu0
    %v2607 = vadd.f32 0.0, %v2606
    %v2608 = vpop.f32.mrb[0].mxu0
    %v2609 = vpop.f32.mrb[0].mxu0
    %v2610 = vadd.f32 0.0, %v2609
    %v2611 = vpop.f32.mrb[0].mxu0
    %2612 = vmatprep.mubr.bf16.mxu0 0
    %2613 = vmatmul.mubr.bf16.gmra.mrb[0].mxu0 %v2362
    %v2614 = vpop.f32.mrb[0].mxu0
    %v2615 = vadd.f32 0.0, %v2614
    %v2616 = vpop.f32.mrb[0].mxu0
    %v2617 = vpop.f32.mrb[0].mxu0
    %v2618 = vadd.f32 0.0, %v2617
    %v2619 = vpop.f32.mrb[0].mxu0
    %2620 = vmatprep.mubr.bf16.mxu0 0
    %2621 = vmatmul.mubr.bf16.gmra.mrb[0].mxu0 %v2365
    %v2622 = vpop.f32.mrb[0].mxu0
    %v2623 = vadd.f32 0.0, %v2622
    %v2624 = vpop.f32.mrb[0].mxu0
    %v2625 = vpop.f32.mrb[0].mxu0
    %v2626 = vadd.f32 0.0, %v2625
    %v2627 = vpop.f32.mrb[0].mxu0
    %2628 = vmatprep.mubr.bf16.mxu0 0
    %2629 = vmatmul.mubr.bf16.gmra.mrb[0].mxu0 %v2368
    %v2630 = vpop.f32.mrb[0].mxu0
    %v2631 = vadd.f32 0.0, %v2630
    %v2632 = vpop.f32.mrb[0].mxu0
    %v2633 = vpop.f32.mrb[0].mxu0
    %v2634 = vadd.f32 0.0, %v2633
    %v2635 = vpop.f32.mrb[0].mxu0
    %2636 = vmatprep.mubr.bf16.mxu0 0
    %2637 = vmatmul.mubr.bf16.gmra.mrb[0].mxu0 %v2371
    %v2638 = vpop.f32.mrb[0].mxu0
    %v2639 = vadd.f32 0.0, %v2638
    %v2640 = vpop.f32.mrb[0].mxu0
    %v2641 = vpop.f32.mrb[0].mxu0
    %v2642 = vadd.f32 0.0, %v2641
    %v2643 = vpop.f32.mrb[0].mxu0
    %2644 = vmatprep.mubr.bf16.mxu0 0
    %2645 = vmatmul.mubr.bf16.gmra.mrb[0].mxu0 %v2374
    %v2646 = vpop.f32.mrb[0].mxu0
    %v2647 = vadd.f32 0.0, %v2646
    %v2648 = vpop.f32.mrb[0].mxu0
    %v2649 = vpop.f32.mrb[0].mxu0
    %v2650 = vadd.f32 0.0, %v2649
    %v2651 = vpop.f32.mrb[0].mxu0
    %2652 = vmatprep.mubr.bf16.mxu0 0
    %2653 = vmatmul.mubr.bf16.gmra.mrb[0].mxu0 %v2377
    %v2654 = vpop.f32.mrb[0].mxu0
    %v2655 = vadd.f32 0.0, %v2654
    %v2656 = vpop.f32.mrb[0].mxu0
    %v2657 = vpop.f32.mrb[0].mxu0
    %v2658 = vadd.f32 0.0, %v2657
    %v2659 = vpop.f32.mrb[0].mxu0
    %2660 = vmatprep.mubr.bf16.mxu0 0
    %2661 = vmatmul.mubr.bf16.gmra.mrb[0].mxu0 %v2380
    %v2662 = vpop.f32.mrb[0].mxu0
    %v2663 = vadd.f32 0.0, %v2662
    %v2664 = vpop.f32.mrb[0].mxu0
    %v2665 = vpop.f32.mrb[0].mxu0
    %v2666 = vadd.f32 0.0, %v2665
    %v2667 = vpop.f32.mrb[0].mxu0
    %2668 = vmatprep.mubr.bf16.mxu0 0
    %2669 = vmatmul.mubr.bf16.gmra.mrb[0].mxu0 %v2383
    %v2670 = vpop.f32.mrb[0].mxu0
    %v2671 = vadd.f32 0.0, %v2670
    %v2672 = vpop.f32.mrb[0].mxu0
    %v2673 = vpop.f32.mrb[0].mxu0
    %v2674 = vadd.f32 0.0, %v2673
    %v2675 = vpop.f32.mrb[0].mxu0
    %2676 = vdwg.mxu0
    %v2677 = vadd.f32 %v1678, %v2423
    %v2678 = vadd.f32 %v1681, %v2426
    %v2679 = vadd.f32 %v1686, %v2431
    %v2680 = vadd.f32 %v1689, %v2434
    %v2681 = vadd.f32 %v1694, %v2439
    %v2682 = vadd.f32 %v1697, %v2442
    %v2683 = vadd.f32 %v1702, %v2447
    %v2684 = vadd.f32 %v1705, %v2450
    %v2685 = vadd.f32 %v1710, %v2455
    %v2686 = vadd.f32 %v1713, %v2458
    %v2687 = vadd.f32 %v1718, %v2463
    %v2688 = vadd.f32 %v1721, %v2466
    %v2689 = vadd.f32 %v1726, %v2471
    %v2690 = vadd.f32 %v1729, %v2474
    %v2691 = vadd.f32 %v1734, %v2479
    %v2692 = vadd.f32 %v1737, %v2482
    %v2693 = vadd.f32 %v1742, %v2487
    %v2694 = vadd.f32 %v1745, %v2490
    %v2695 = vadd.f32 %v1750, %v2495
    %v2696 = vadd.f32 %v1753, %v2498
    %v2697 = vadd.f32 %v1758, %v2503
    %v2698 = vadd.f32 %v1761, %v2506
    %v2699 = vadd.f32 %v1766, %v2511
    %v2700 = vadd.f32 %v1769, %v2514
    %v2701 = vadd.f32 %v1774, %v2519
    %v2702 = vadd.f32 %v1777, %v2522
    %v2703 = vadd.f32 %v1782, %v2527
    %v2704 = vadd.f32 %v1785, %v2530
    %v2705 = vadd.f32 %v1790, %v2535
    %v2706 = vadd.f32 %v1793, %v2538
    %v2707 = vadd.f32 %v1798, %v2543
    %v2708 = vadd.f32 %v1801, %v2546
    %v2709 = vadd.f32 %v1806, %v2551
    %v2710 = vadd.f32 %v1809, %v2554
    %v2711 = vadd.f32 %v1814, %v2559
    %v2712 = vadd.f32 %v1817, %v2562
    %v2713 = vadd.f32 %v1822, %v2567
    %v2714 = vadd.f32 %v1825, %v2570
    %v2715 = vadd.f32 %v1830, %v2575
    %v2716 = vadd.f32 %v1833, %v2578
    %v2717 = vadd.f32 %v1838, %v2583
    %v2718 = vadd.f32 %v1841, %v2586
    %v2719 = vadd.f32 %v1846, %v2591
    %v2720 = vadd.f32 %v1849, %v2594
    %v2721 = vadd.f32 %v1854, %v2599
    %v2722 = vadd.f32 %v1857, %v2602
    %v2723 = vadd.f32 %v1862, %v2607
    %v2724 = vadd.f32 %v1865, %v2610
    %v2725 = vadd.f32 %v1870, %v2615
    %v2726 = vadd.f32 %v1873, %v2618
    %v2727 = vadd.f32 %v1878, %v2623
    %v2728 = vadd.f32 %v1881, %v2626
    %v2729 = vadd.f32 %v1886, %v2631
    %v2730 = vadd.f32 %v1889, %v2634
    %v2731 = vadd.f32 %v1894, %v2639
    %v2732 = vadd.f32 %v1897, %v2642
    %v2733 = vadd.f32 %v1902, %v2647
    %v2734 = vadd.f32 %v1905, %v2650
    %v2735 = vadd.f32 %v1910, %v2655
    %v2736 = vadd.f32 %v1913, %v2658
    %v2737 = vadd.f32 %v1918, %v2663
    %v2738 = vadd.f32 %v1921, %v2666
    %v2739 = vadd.f32 %v1926, %v2671
    %v2740 = vadd.f32 %v1929, %v2674
    %s2741 = scalar_lea.vmem %s1, 12
    %v2742 = vld [vmem:[%s2741] sm:$0xf]
    %v2747 = vunpack.c.l.b16 %v64
    %v2748 = vunpack.c.l.b16 %v65
    %v2749 = vunpack.c.l.b16 %v118
    %v2750 = vunpack.c.l.b16 %v119
    %v2751 = vpack.c.b16 %v2748, %v2747
    %v2752 = vpack.c.b16 %v2750, %v2749
    %v2754 = vsel %vm994, %v2751, 0
    %v2757 = vsel %vm994, %v2752, 0
    %v2760 = vsel %vm1091, %v2742, 0
    %2762 = vmatprep.subr.bf16.mxu0 0
    %2763 = vmatpush1.bf16.msra.mxu0 %v2760
    %2764 = vmatprep.subr.bf16.mxu0 0
    %2765 = vmatpush1.bf16.msra.mxu0 0
    %2766 = vmatprep.subr.bf16.mxu0 0
    %2767 = vmatpush1.bf16.msra.mxu0 0
    %2768 = vmatprep.subr.bf16.mxu0 0
    %2769 = vmatpush1.bf16.msra.mxu0 0
    %2770 = vmatprep.subr.bf16.mxu0 0
    %2771 = vmatpush1.bf16.msra.mxu0 0
    %2772 = vmatprep.subr.bf16.mxu0 0
    %2773 = vmatpush1.bf16.msra.mxu0 0
    %2774 = vmatprep.subr.bf16.mxu0 0
    %2775 = vmatpush1.bf16.msra.mxu0 0
    %2776 = vmatprep.subr.bf16.mxu0 0
    %2777 = vmatpush1.bf16.msra.mxu0 0
    %2778 = vmatprep.subr.bf16.mxu0 0
    %2779 = vmatpush1.bf16.msra.mxu0 0
    %2780 = vmatprep.subr.bf16.mxu0 0
    %2781 = vmatpush1.bf16.msra.mxu0 0
    %2782 = vmatprep.subr.bf16.mxu0 0
    %2783 = vmatpush1.bf16.msra.mxu0 0
    %2784 = vmatprep.subr.bf16.mxu0 0
    %2785 = vmatpush1.bf16.msra.mxu0 0
    %2786 = vmatprep.subr.bf16.mxu0 0
    %2787 = vmatpush1.bf16.msra.mxu0 0
    %2788 = vmatprep.subr.bf16.mxu0 0
    %2789 = vmatpush1.bf16.msra.mxu0 0
    %2790 = vmatprep.subr.bf16.mxu0 0
    %2791 = vmatpush1.bf16.msra.mxu0 0
    %2792 = vmatprep.subr.bf16.mxu0 0
    %2793 = vmatpush1.bf16.msra.mxu0 0
    %2794 = vmatprep.mubr.bf16.mxu0 0
    %2795 = vmatmul.mubr.bf16.gmra.mrb[0].mxu0 %v1548
    %v2796 = vpop.f32.mrb[0].mxu0
    %v2797 = vadd.f32 0.0, %v2796
    %v2798 = vpop.f32.mrb[0].mxu0
    %v2799 = vpop.f32.mrb[0].mxu0
    %v2800 = vadd.f32 0.0, %v2799
    %v2801 = vpop.f32.mrb[0].mxu0
    %2802 = vmatprep.mubr.bf16.mxu0 0
    %2803 = vmatmul.mubr.bf16.gmra.mrb[0].mxu0 %v1551
    %v2804 = vpop.f32.mrb[0].mxu0
    %v2805 = vadd.f32 0.0, %v2804
    %v2806 = vpop.f32.mrb[0].mxu0
    %v2807 = vpop.f32.mrb[0].mxu0
    %v2808 = vadd.f32 0.0, %v2807
    %v2809 = vpop.f32.mrb[0].mxu0
    %2810 = vmatprep.mubr.bf16.mxu0 0
    %2811 = vmatmul.mubr.bf16.gmra.mrb[0].mxu0 %v1554
    %v2812 = vpop.f32.mrb[0].mxu0
    %v2813 = vadd.f32 0.0, %v2812
    %v2814 = vpop.f32.mrb[0].mxu0
    %v2815 = vpop.f32.mrb[0].mxu0
    %v2816 = vadd.f32 0.0, %v2815
    %v2817 = vpop.f32.mrb[0].mxu0
    %2818 = vmatprep.mubr.bf16.mxu0 0
    %2819 = vmatmul.mubr.bf16.gmra.mrb[0].mxu0 %v1557
    %v2820 = vpop.f32.mrb[0].mxu0
    %v2821 = vadd.f32 0.0, %v2820
    %v2822 = vpop.f32.mrb[0].mxu0
    %v2823 = vpop.f32.mrb[0].mxu0
    %v2824 = vadd.f32 0.0, %v2823
    %v2825 = vpop.f32.mrb[0].mxu0
    %2826 = vmatprep.mubr.bf16.mxu0 0
    %2827 = vmatmul.mubr.bf16.gmra.mrb[0].mxu0 %v1560
    %v2828 = vpop.f32.mrb[0].mxu0
    %v2829 = vadd.f32 0.0, %v2828
    %v2830 = vpop.f32.mrb[0].mxu0
    %v2831 = vpop.f32.mrb[0].mxu0
    %v2832 = vadd.f32 0.0, %v2831
    %v2833 = vpop.f32.mrb[0].mxu0
    %2834 = vmatprep.mubr.bf16.mxu0 0
    %2835 = vmatmul.mubr.bf16.gmra.mrb[0].mxu0 %v1563
    %v2836 = vpop.f32.mrb[0].mxu0
    %v2837 = vadd.f32 0.0, %v2836
    %v2838 = vpop.f32.mrb[0].mxu0
    %v2839 = vpop.f32.mrb[0].mxu0
    %v2840 = vadd.f32 0.0, %v2839
    %v2841 = vpop.f32.mrb[0].mxu0
    %2842 = vmatprep.mubr.bf16.mxu0 0
    %2843 = vmatmul.mubr.bf16.gmra.mrb[0].mxu0 %v1566
    %v2844 = vpop.f32.mrb[0].mxu0
    %v2845 = vadd.f32 0.0, %v2844
    %v2846 = vpop.f32.mrb[0].mxu0
    %v2847 = vpop.f32.mrb[0].mxu0
    %v2848 = vadd.f32 0.0, %v2847
    %v2849 = vpop.f32.mrb[0].mxu0
    %2850 = vmatprep.mubr.bf16.mxu0 0
    %2851 = vmatmul.mubr.bf16.gmra.mrb[0].mxu0 %v1569
    %v2852 = vpop.f32.mrb[0].mxu0
    %v2853 = vadd.f32 0.0, %v2852
    %v2854 = vpop.f32.mrb[0].mxu0
    %v2855 = vpop.f32.mrb[0].mxu0
    %v2856 = vadd.f32 0.0, %v2855
    %v2857 = vpop.f32.mrb[0].mxu0
    %2858 = vmatprep.mubr.bf16.mxu0 0
    %2859 = vmatmul.mubr.bf16.gmra.mrb[0].mxu0 %v1572
    %v2860 = vpop.f32.mrb[0].mxu0
    %v2861 = vadd.f32 0.0, %v2860
    %v2862 = vpop.f32.mrb[0].mxu0
    %v2863 = vpop.f32.mrb[0].mxu0
    %v2864 = vadd.f32 0.0, %v2863
    %v2865 = vpop.f32.mrb[0].mxu0
    %2866 = vmatprep.mubr.bf16.mxu0 0
    %2867 = vmatmul.mubr.bf16.gmra.mrb[0].mxu0 %v1575
    %v2868 = vpop.f32.mrb[0].mxu0
    %v2869 = vadd.f32 0.0, %v2868
    %v2870 = vpop.f32.mrb[0].mxu0
    %v2871 = vpop.f32.mrb[0].mxu0
    %v2872 = vadd.f32 0.0, %v2871
    %v2873 = vpop.f32.mrb[0].mxu0
    %2874 = vmatprep.mubr.bf16.mxu0 0
    %2875 = vmatmul.mubr.bf16.gmra.mrb[0].mxu0 %v1578
    %v2876 = vpop.f32.mrb[0].mxu0
    %v2877 = vadd.f32 0.0, %v2876
    %v2878 = vpop.f32.mrb[0].mxu0
    %v2879 = vpop.f32.mrb[0].mxu0
    %v2880 = vadd.f32 0.0, %v2879
    %v2881 = vpop.f32.mrb[0].mxu0
    %2882 = vmatprep.mubr.bf16.mxu0 0
    %2883 = vmatmul.mubr.bf16.gmra.mrb[0].mxu0 %v1581
    %v2884 = vpop.f32.mrb[0].mxu0
    %v2885 = vadd.f32 0.0, %v2884
    %v2886 = vpop.f32.mrb[0].mxu0
    %v2887 = vpop.f32.mrb[0].mxu0
    %v2888 = vadd.f32 0.0, %v2887
    %v2889 = vpop.f32.mrb[0].mxu0
    %2890 = vmatprep.mubr.bf16.mxu0 0
    %2891 = vmatmul.mubr.bf16.gmra.mrb[0].mxu0 %v1584
    %v2892 = vpop.f32.mrb[0].mxu0
    %v2893 = vadd.f32 0.0, %v2892
    %v2894 = vpop.f32.mrb[0].mxu0
    %v2895 = vpop.f32.mrb[0].mxu0
    %v2896 = vadd.f32 0.0, %v2895
    %v2897 = vpop.f32.mrb[0].mxu0
    %2898 = vmatprep.mubr.bf16.mxu0 0
    %2899 = vmatmul.mubr.bf16.gmra.mrb[0].mxu0 %v1587
    %v2900 = vpop.f32.mrb[0].mxu0
    %v2901 = vadd.f32 0.0, %v2900
    %v2902 = vpop.f32.mrb[0].mxu0
    %v2903 = vpop.f32.mrb[0].mxu0
    %v2904 = vadd.f32 0.0, %v2903
    %v2905 = vpop.f32.mrb[0].mxu0
    %2906 = vmatprep.mubr.bf16.mxu0 0
    %2907 = vmatmul.mubr.bf16.gmra.mrb[0].mxu0 %v1590
    %v2908 = vpop.f32.mrb[0].mxu0
    %v2909 = vadd.f32 0.0, %v2908
    %v2910 = vpop.f32.mrb[0].mxu0
    %v2911 = vpop.f32.mrb[0].mxu0
    %v2912 = vadd.f32 0.0, %v2911
    %v2913 = vpop.f32.mrb[0].mxu0
    %2914 = vmatprep.mubr.bf16.mxu0 0
    %2915 = vmatmul.mubr.bf16.gmra.mrb[0].mxu0 %v2754
    %v2916 = vpop.f32.mrb[0].mxu0
    %v2917 = vadd.f32 0.0, %v2916
    %v2918 = vpop.f32.mrb[0].mxu0
    %v2919 = vpop.f32.mrb[0].mxu0
    %v2920 = vadd.f32 0.0, %v2919
    %v2921 = vpop.f32.mrb[0].mxu0
    %2922 = vmatprep.mubr.bf16.mxu0 0
    %2923 = vmatmul.mubr.bf16.gmra.mrb[0].mxu0 %v1596
    %v2924 = vpop.f32.mrb[0].mxu0
    %v2925 = vadd.f32 0.0, %v2924
    %v2926 = vpop.f32.mrb[0].mxu0
    %v2927 = vpop.f32.mrb[0].mxu0
    %v2928 = vadd.f32 0.0, %v2927
    %v2929 = vpop.f32.mrb[0].mxu0
    %2930 = vmatprep.mubr.bf16.mxu0 0
    %2931 = vmatmul.mubr.bf16.gmra.mrb[0].mxu0 %v1599
    %v2932 = vpop.f32.mrb[0].mxu0
    %v2933 = vadd.f32 0.0, %v2932
    %v2934 = vpop.f32.mrb[0].mxu0
    %v2935 = vpop.f32.mrb[0].mxu0
    %v2936 = vadd.f32 0.0, %v2935
    %v2937 = vpop.f32.mrb[0].mxu0
    %2938 = vmatprep.mubr.bf16.mxu0 0
    %2939 = vmatmul.mubr.bf16.gmra.mrb[0].mxu0 %v1602
    %v2940 = vpop.f32.mrb[0].mxu0
    %v2941 = vadd.f32 0.0, %v2940
    %v2942 = vpop.f32.mrb[0].mxu0
    %v2943 = vpop.f32.mrb[0].mxu0
    %v2944 = vadd.f32 0.0, %v2943
    %v2945 = vpop.f32.mrb[0].mxu0
    %2946 = vmatprep.mubr.bf16.mxu0 0
    %2947 = vmatmul.mubr.bf16.gmra.mrb[0].mxu0 %v1605
    %v2948 = vpop.f32.mrb[0].mxu0
    %v2949 = vadd.f32 0.0, %v2948
    %v2950 = vpop.f32.mrb[0].mxu0
    %v2951 = vpop.f32.mrb[0].mxu0
    %v2952 = vadd.f32 0.0, %v2951
    %v2953 = vpop.f32.mrb[0].mxu0
    %2954 = vmatprep.mubr.bf16.mxu0 0
    %2955 = vmatmul.mubr.bf16.gmra.mrb[0].mxu0 %v1608
    %v2956 = vpop.f32.mrb[0].mxu0
    %v2957 = vadd.f32 0.0, %v2956
    %v2958 = vpop.f32.mrb[0].mxu0
    %v2959 = vpop.f32.mrb[0].mxu0
    %v2960 = vadd.f32 0.0, %v2959
    %v2961 = vpop.f32.mrb[0].mxu0
    %2962 = vmatprep.mubr.bf16.mxu0 0
    %2963 = vmatmul.mubr.bf16.gmra.mrb[0].mxu0 %v1611
    %v2964 = vpop.f32.mrb[0].mxu0
    %v2965 = vadd.f32 0.0, %v2964
    %v2966 = vpop.f32.mrb[0].mxu0
    %v2967 = vpop.f32.mrb[0].mxu0
    %v2968 = vadd.f32 0.0, %v2967
    %v2969 = vpop.f32.mrb[0].mxu0
    %2970 = vmatprep.mubr.bf16.mxu0 0
    %2971 = vmatmul.mubr.bf16.gmra.mrb[0].mxu0 %v1614
    %v2972 = vpop.f32.mrb[0].mxu0
    %v2973 = vadd.f32 0.0, %v2972
    %v2974 = vpop.f32.mrb[0].mxu0
    %v2975 = vpop.f32.mrb[0].mxu0
    %v2976 = vadd.f32 0.0, %v2975
    %v2977 = vpop.f32.mrb[0].mxu0
    %2978 = vmatprep.mubr.bf16.mxu0 0
    %2979 = vmatmul.mubr.bf16.gmra.mrb[0].mxu0 %v1617
    %v2980 = vpop.f32.mrb[0].mxu0
    %v2981 = vadd.f32 0.0, %v2980
    %v2982 = vpop.f32.mrb[0].mxu0
    %v2983 = vpop.f32.mrb[0].mxu0
    %v2984 = vadd.f32 0.0, %v2983
    %v2985 = vpop.f32.mrb[0].mxu0
    %2986 = vmatprep.mubr.bf16.mxu0 0
    %2987 = vmatmul.mubr.bf16.gmra.mrb[0].mxu0 %v1620
    %v2988 = vpop.f32.mrb[0].mxu0
    %v2989 = vadd.f32 0.0, %v2988
    %v2990 = vpop.f32.mrb[0].mxu0
    %v2991 = vpop.f32.mrb[0].mxu0
    %v2992 = vadd.f32 0.0, %v2991
    %v2993 = vpop.f32.mrb[0].mxu0
    %2994 = vmatprep.mubr.bf16.mxu0 0
    %2995 = vmatmul.mubr.bf16.gmra.mrb[0].mxu0 %v1623
    %v2996 = vpop.f32.mrb[0].mxu0
    %v2997 = vadd.f32 0.0, %v2996
    %v2998 = vpop.f32.mrb[0].mxu0
    %v2999 = vpop.f32.mrb[0].mxu0
    %v3000 = vadd.f32 0.0, %v2999
    %v3001 = vpop.f32.mrb[0].mxu0
    %3002 = vmatprep.mubr.bf16.mxu0 0
    %3003 = vmatmul.mubr.bf16.gmra.mrb[0].mxu0 %v1626
    %v3004 = vpop.f32.mrb[0].mxu0
    %v3005 = vadd.f32 0.0, %v3004
    %v3006 = vpop.f32.mrb[0].mxu0
    %v3007 = vpop.f32.mrb[0].mxu0
    %v3008 = vadd.f32 0.0, %v3007
    %v3009 = vpop.f32.mrb[0].mxu0
    %3010 = vmatprep.mubr.bf16.mxu0 0
    %3011 = vmatmul.mubr.bf16.gmra.mrb[0].mxu0 %v1629
    %v3012 = vpop.f32.mrb[0].mxu0
    %v3013 = vadd.f32 0.0, %v3012
    %v3014 = vpop.f32.mrb[0].mxu0
    %v3015 = vpop.f32.mrb[0].mxu0
    %v3016 = vadd.f32 0.0, %v3015
    %v3017 = vpop.f32.mrb[0].mxu0
    %3018 = vmatprep.mubr.bf16.mxu0 0
    %3019 = vmatmul.mubr.bf16.gmra.mrb[0].mxu0 %v1632
    %v3020 = vpop.f32.mrb[0].mxu0
    %v3021 = vadd.f32 0.0, %v3020
    %v3022 = vpop.f32.mrb[0].mxu0
    %v3023 = vpop.f32.mrb[0].mxu0
    %v3024 = vadd.f32 0.0, %v3023
    %v3025 = vpop.f32.mrb[0].mxu0
    %3026 = vmatprep.mubr.bf16.mxu0 0
    %3027 = vmatmul.mubr.bf16.gmra.mrb[0].mxu0 %v1635
    %v3028 = vpop.f32.mrb[0].mxu0
    %v3029 = vadd.f32 0.0, %v3028
    %v3030 = vpop.f32.mrb[0].mxu0
    %v3031 = vpop.f32.mrb[0].mxu0
    %v3032 = vadd.f32 0.0, %v3031
    %v3033 = vpop.f32.mrb[0].mxu0
    %3034 = vmatprep.mubr.bf16.mxu0 0
    %3035 = vmatmul.mubr.bf16.gmra.mrb[0].mxu0 %v1638
    %v3036 = vpop.f32.mrb[0].mxu0
    %v3037 = vadd.f32 0.0, %v3036
    %v3038 = vpop.f32.mrb[0].mxu0
    %v3039 = vpop.f32.mrb[0].mxu0
    %v3040 = vadd.f32 0.0, %v3039
    %v3041 = vpop.f32.mrb[0].mxu0
    %3042 = vmatprep.mubr.bf16.mxu0 0
    %3043 = vmatmul.mubr.bf16.gmra.mrb[0].mxu0 %v2757
    %v3044 = vpop.f32.mrb[0].mxu0
    %v3045 = vadd.f32 0.0, %v3044
    %v3046 = vpop.f32.mrb[0].mxu0
    %v3047 = vpop.f32.mrb[0].mxu0
    %v3048 = vadd.f32 0.0, %v3047
    %v3049 = vpop.f32.mrb[0].mxu0
    %3050 = vdwg.mxu0
    %v3051 = vadd.f32 %v2677, %v2797
    %v3052 = vadd.f32 %v2678, %v2800
    %v3053 = vadd.f32 %v2679, %v2805
    %v3054 = vadd.f32 %v2680, %v2808
    %v3055 = vadd.f32 %v2681, %v2813
    %v3056 = vadd.f32 %v2682, %v2816
    %v3057 = vadd.f32 %v2683, %v2821
    %v3058 = vadd.f32 %v2684, %v2824
    %v3059 = vadd.f32 %v2685, %v2829
    %v3060 = vadd.f32 %v2686, %v2832
    %v3061 = vadd.f32 %v2687, %v2837
    %v3062 = vadd.f32 %v2688, %v2840
    %v3063 = vadd.f32 %v2689, %v2845
    %v3064 = vadd.f32 %v2690, %v2848
    %v3065 = vadd.f32 %v2691, %v2853
    %v3066 = vadd.f32 %v2692, %v2856
    %v3067 = vadd.f32 %v2693, %v2861
    %v3068 = vadd.f32 %v2694, %v2864
    %v3069 = vadd.f32 %v2695, %v2869
    %v3070 = vadd.f32 %v2696, %v2872
    %v3071 = vadd.f32 %v2697, %v2877
    %v3072 = vadd.f32 %v2698, %v2880
    %v3073 = vadd.f32 %v2699, %v2885
    %v3074 = vadd.f32 %v2700, %v2888
    %v3075 = vadd.f32 %v2701, %v2893
    %v3076 = vadd.f32 %v2702, %v2896
    %v3077 = vadd.f32 %v2703, %v2901
    %v3078 = vadd.f32 %v2704, %v2904
    %v3079 = vadd.f32 %v2705, %v2909
    %v3080 = vadd.f32 %v2706, %v2912
    %v3081 = vadd.f32 %v2707, %v2917
    %v3082 = vadd.f32 %v2708, %v2920
    %v3083 = vadd.f32 %v2709, %v2925
    %v3084 = vadd.f32 %v2710, %v2928
    %v3085 = vadd.f32 %v2711, %v2933
    %v3086 = vadd.f32 %v2712, %v2936
    %v3087 = vadd.f32 %v2713, %v2941
    %v3088 = vadd.f32 %v2714, %v2944
    %v3089 = vadd.f32 %v2715, %v2949
    %v3090 = vadd.f32 %v2716, %v2952
    %v3091 = vadd.f32 %v2717, %v2957
    %v3092 = vadd.f32 %v2718, %v2960
    %v3093 = vadd.f32 %v2719, %v2965
    %v3094 = vadd.f32 %v2720, %v2968
    %v3095 = vadd.f32 %v2721, %v2973
    %v3096 = vadd.f32 %v2722, %v2976
    %v3097 = vadd.f32 %v2723, %v2981
    %v3098 = vadd.f32 %v2724, %v2984
    %v3099 = vadd.f32 %v2725, %v2989
    %v3100 = vadd.f32 %v2726, %v2992
    %v3101 = vadd.f32 %v2727, %v2997
    %v3102 = vadd.f32 %v2728, %v3000
    %v3103 = vadd.f32 %v2729, %v3005
    %v3104 = vadd.f32 %v2730, %v3008
    %v3105 = vadd.f32 %v2731, %v3013
    %v3106 = vadd.f32 %v2732, %v3016
    %v3107 = vadd.f32 %v2733, %v3021
    %v3108 = vadd.f32 %v2734, %v3024
    %v3109 = vadd.f32 %v2735, %v3029
    %v3110 = vadd.f32 %v2736, %v3032
    %v3111 = vadd.f32 %v2737, %v3037
    %v3112 = vadd.f32 %v2738, %v3040
    %v3113 = vadd.f32 %v2739, %v3045
    %v3114 = vadd.f32 %v2740, %v3048
    %v3116 = vshrl.u32 %v64, 16
    %v3118 = vrot.slane %v3116, 4
    %v3119 = vshll.u32 %v64, 16
    %v3121 = vrot.slane %v3119, 5
    %v3122 = vor.u32 %v3118, %v3121
    %v3123 = vrot.slane %v3122, 4
    %v3125 = vshll.u32 %v65, 16
    %v3127 = vrot.slane %v3125, 5
    %v3128 = vsel %vm127, %v3123, %v3127
    %v3129 = vshrl.u32 %v65, 16
    %v3131 = vrot.slane %v3129, 4
    %v3132 = vor.u32 %v3131, %v3127
    %v3133 = vrot.slane %v3132, 4
    %v3135 = vshll.u32 %v66, 16
    %v3137 = vrot.slane %v3135, 5
    %v3138 = vsel %vm127, %v3133, %v3137
    %v3140 = vshrl.u32 %v118, 16
    %v3142 = vrot.slane %v3140, 4
    %v3143 = vshll.u32 %v118, 16
    %v3145 = vrot.slane %v3143, 5
    %v3146 = vor.u32 %v3142, %v3145
    %v3147 = vrot.slane %v3146, 4
    %v3149 = vshll.u32 %v119, 16
    %v3151 = vrot.slane %v3149, 5
    %v3152 = vsel %vm127, %v3147, %v3151
    %v3153 = vshrl.u32 %v119, 16
    %v3155 = vrot.slane %v3153, 4
    %v3156 = vor.u32 %v3155, %v3151
    %v3157 = vrot.slane %v3156, 4
    %v3159 = vshll.u32 %v120, 16
    %v3161 = vrot.slane %v3159, 5
    %v3162 = vsel %vm127, %v3157, %v3161
    %s3163 = scalar_lea.vmem %s1, 16
    %v3164 = vld [vmem:[%s3163] sm:$0xf]
    %v3165 = vunpack.c.l.b16 %v3128
    %v3166 = vunpack.c.l.b16 %v3138
    %v3167 = vunpack.c.l.b16 %v3152
    %v3168 = vunpack.c.l.b16 %v3162
    %v3169 = vpack.c.b16 %v3166, %v3165
    %v3170 = vpack.c.b16 %v3168, %v3167
    %v3172 = vsel %vm994, %v3169, 0
    %v3175 = vsel %vm994, %v3170, 0
    %v3178 = vsel %vm1091, %v3164, 0
    %3180 = vmatprep.subr.bf16.mxu0 0
    %3181 = vmatpush1.bf16.msra.mxu0 %v3178
    %3182 = vmatprep.subr.bf16.mxu0 0
    %3183 = vmatpush1.bf16.msra.mxu0 0
    %3184 = vmatprep.subr.bf16.mxu0 0
    %3185 = vmatpush1.bf16.msra.mxu0 0
    %3186 = vmatprep.subr.bf16.mxu0 0
    %3187 = vmatpush1.bf16.msra.mxu0 0
    %3188 = vmatprep.subr.bf16.mxu0 0
    %3189 = vmatpush1.bf16.msra.mxu0 0
    %3190 = vmatprep.subr.bf16.mxu0 0
    %3191 = vmatpush1.bf16.msra.mxu0 0
    %3192 = vmatprep.subr.bf16.mxu0 0
    %3193 = vmatpush1.bf16.msra.mxu0 0
    %3194 = vmatprep.subr.bf16.mxu0 0
    %3195 = vmatpush1.bf16.msra.mxu0 0
    %3196 = vmatprep.subr.bf16.mxu0 0
    %3197 = vmatpush1.bf16.msra.mxu0 0
    %3198 = vmatprep.subr.bf16.mxu0 0
    %3199 = vmatpush1.bf16.msra.mxu0 0
    %3200 = vmatprep.subr.bf16.mxu0 0
    %3201 = vmatpush1.bf16.msra.mxu0 0
    %3202 = vmatprep.subr.bf16.mxu0 0
    %3203 = vmatpush1.bf16.msra.mxu0 0
    %3204 = vmatprep.subr.bf16.mxu0 0
    %3205 = vmatpush1.bf16.msra.mxu0 0
    %3206 = vmatprep.subr.bf16.mxu0 0
    %3207 = vmatpush1.bf16.msra.mxu0 0
    %3208 = vmatprep.subr.bf16.mxu0 0
    %3209 = vmatpush1.bf16.msra.mxu0 0
    %3210 = vmatprep.subr.bf16.mxu0 0
    %3211 = vmatpush1.bf16.msra.mxu0 0
    %3212 = vmatprep.mubr.bf16.mxu0 0
    %3213 = vmatmul.mubr.bf16.gmra.mrb[0].mxu0 %v999
    %v3214 = vpop.f32.mrb[0].mxu0
    %v3215 = vadd.f32 0.0, %v3214
    %v3216 = vpop.f32.mrb[0].mxu0
    %v3217 = vpop.f32.mrb[0].mxu0
    %v3218 = vadd.f32 0.0, %v3217
    %v3219 = vpop.f32.mrb[0].mxu0
    %3220 = vmatprep.mubr.bf16.mxu0 0
    %3221 = vmatmul.mubr.bf16.gmra.mrb[0].mxu0 %v1002
    %v3222 = vpop.f32.mrb[0].mxu0
    %v3223 = vadd.f32 0.0, %v3222
    %v3224 = vpop.f32.mrb[0].mxu0
    %v3225 = vpop.f32.mrb[0].mxu0
    %v3226 = vadd.f32 0.0, %v3225
    %v3227 = vpop.f32.mrb[0].mxu0
    %3228 = vmatprep.mubr.bf16.mxu0 0
    %3229 = vmatmul.mubr.bf16.gmra.mrb[0].mxu0 %v1005
    %v3230 = vpop.f32.mrb[0].mxu0
    %v3231 = vadd.f32 0.0, %v3230
    %v3232 = vpop.f32.mrb[0].mxu0
    %v3233 = vpop.f32.mrb[0].mxu0
    %v3234 = vadd.f32 0.0, %v3233
    %v3235 = vpop.f32.mrb[0].mxu0
    %3236 = vmatprep.mubr.bf16.mxu0 0
    %3237 = vmatmul.mubr.bf16.gmra.mrb[0].mxu0 %v1008
    %v3238 = vpop.f32.mrb[0].mxu0
    %v3239 = vadd.f32 0.0, %v3238
    %v3240 = vpop.f32.mrb[0].mxu0
    %v3241 = vpop.f32.mrb[0].mxu0
    %v3242 = vadd.f32 0.0, %v3241
    %v3243 = vpop.f32.mrb[0].mxu0
    %3244 = vmatprep.mubr.bf16.mxu0 0
    %3245 = vmatmul.mubr.bf16.gmra.mrb[0].mxu0 %v1011
    %v3246 = vpop.f32.mrb[0].mxu0
    %v3247 = vadd.f32 0.0, %v3246
    %v3248 = vpop.f32.mrb[0].mxu0
    %v3249 = vpop.f32.mrb[0].mxu0
    %v3250 = vadd.f32 0.0, %v3249
    %v3251 = vpop.f32.mrb[0].mxu0
    %3252 = vmatprep.mubr.bf16.mxu0 0
    %3253 = vmatmul.mubr.bf16.gmra.mrb[0].mxu0 %v1014
    %v3254 = vpop.f32.mrb[0].mxu0
    %v3255 = vadd.f32 0.0, %v3254
    %v3256 = vpop.f32.mrb[0].mxu0
    %v3257 = vpop.f32.mrb[0].mxu0
    %v3258 = vadd.f32 0.0, %v3257
    %v3259 = vpop.f32.mrb[0].mxu0
    %3260 = vmatprep.mubr.bf16.mxu0 0
    %3261 = vmatmul.mubr.bf16.gmra.mrb[0].mxu0 %v1017
    %v3262 = vpop.f32.mrb[0].mxu0
    %v3263 = vadd.f32 0.0, %v3262
    %v3264 = vpop.f32.mrb[0].mxu0
    %v3265 = vpop.f32.mrb[0].mxu0
    %v3266 = vadd.f32 0.0, %v3265
    %v3267 = vpop.f32.mrb[0].mxu0
    %3268 = vmatprep.mubr.bf16.mxu0 0
    %3269 = vmatmul.mubr.bf16.gmra.mrb[0].mxu0 %v1020
    %v3270 = vpop.f32.mrb[0].mxu0
    %v3271 = vadd.f32 0.0, %v3270
    %v3272 = vpop.f32.mrb[0].mxu0
    %v3273 = vpop.f32.mrb[0].mxu0
    %v3274 = vadd.f32 0.0, %v3273
    %v3275 = vpop.f32.mrb[0].mxu0
    %3276 = vmatprep.mubr.bf16.mxu0 0
    %3277 = vmatmul.mubr.bf16.gmra.mrb[0].mxu0 %v1023
    %v3278 = vpop.f32.mrb[0].mxu0
    %v3279 = vadd.f32 0.0, %v3278
    %v3280 = vpop.f32.mrb[0].mxu0
    %v3281 = vpop.f32.mrb[0].mxu0
    %v3282 = vadd.f32 0.0, %v3281
    %v3283 = vpop.f32.mrb[0].mxu0
    %3284 = vmatprep.mubr.bf16.mxu0 0
    %3285 = vmatmul.mubr.bf16.gmra.mrb[0].mxu0 %v1026
    %v3286 = vpop.f32.mrb[0].mxu0
    %v3287 = vadd.f32 0.0, %v3286
    %v3288 = vpop.f32.mrb[0].mxu0
    %v3289 = vpop.f32.mrb[0].mxu0
    %v3290 = vadd.f32 0.0, %v3289
    %v3291 = vpop.f32.mrb[0].mxu0
    %3292 = vmatprep.mubr.bf16.mxu0 0
    %3293 = vmatmul.mubr.bf16.gmra.mrb[0].mxu0 %v1029
    %v3294 = vpop.f32.mrb[0].mxu0
    %v3295 = vadd.f32 0.0, %v3294
    %v3296 = vpop.f32.mrb[0].mxu0
    %v3297 = vpop.f32.mrb[0].mxu0
    %v3298 = vadd.f32 0.0, %v3297
    %v3299 = vpop.f32.mrb[0].mxu0
    %3300 = vmatprep.mubr.bf16.mxu0 0
    %3301 = vmatmul.mubr.bf16.gmra.mrb[0].mxu0 %v1032
    %v3302 = vpop.f32.mrb[0].mxu0
    %v3303 = vadd.f32 0.0, %v3302
    %v3304 = vpop.f32.mrb[0].mxu0
    %v3305 = vpop.f32.mrb[0].mxu0
    %v3306 = vadd.f32 0.0, %v3305
    %v3307 = vpop.f32.mrb[0].mxu0
    %3308 = vmatprep.mubr.bf16.mxu0 0
    %3309 = vmatmul.mubr.bf16.gmra.mrb[0].mxu0 %v1035
    %v3310 = vpop.f32.mrb[0].mxu0
    %v3311 = vadd.f32 0.0, %v3310
    %v3312 = vpop.f32.mrb[0].mxu0
    %v3313 = vpop.f32.mrb[0].mxu0
    %v3314 = vadd.f32 0.0, %v3313
    %v3315 = vpop.f32.mrb[0].mxu0
    %3316 = vmatprep.mubr.bf16.mxu0 0
    %3317 = vmatmul.mubr.bf16.gmra.mrb[0].mxu0 %v1038
    %v3318 = vpop.f32.mrb[0].mxu0
    %v3319 = vadd.f32 0.0, %v3318
    %v3320 = vpop.f32.mrb[0].mxu0
    %v3321 = vpop.f32.mrb[0].mxu0
    %v3322 = vadd.f32 0.0, %v3321
    %v3323 = vpop.f32.mrb[0].mxu0
    %3324 = vmatprep.mubr.bf16.mxu0 0
    %3325 = vmatmul.mubr.bf16.gmra.mrb[0].mxu0 %v1041
    %v3326 = vpop.f32.mrb[0].mxu0
    %v3327 = vadd.f32 0.0, %v3326
    %v3328 = vpop.f32.mrb[0].mxu0
    %v3329 = vpop.f32.mrb[0].mxu0
    %v3330 = vadd.f32 0.0, %v3329
    %v3331 = vpop.f32.mrb[0].mxu0
    %3332 = vmatprep.mubr.bf16.mxu0 0
    %3333 = vmatmul.mubr.bf16.gmra.mrb[0].mxu0 %v3172
    %v3334 = vpop.f32.mrb[0].mxu0
    %v3335 = vadd.f32 0.0, %v3334
    %v3336 = vpop.f32.mrb[0].mxu0
    %v3337 = vpop.f32.mrb[0].mxu0
    %v3338 = vadd.f32 0.0, %v3337
    %v3339 = vpop.f32.mrb[0].mxu0
    %3340 = vmatprep.mubr.bf16.mxu0 0
    %3341 = vmatmul.mubr.bf16.gmra.mrb[0].mxu0 %v1047
    %v3342 = vpop.f32.mrb[0].mxu0
    %v3343 = vadd.f32 0.0, %v3342
    %v3344 = vpop.f32.mrb[0].mxu0
    %v3345 = vpop.f32.mrb[0].mxu0
    %v3346 = vadd.f32 0.0, %v3345
    %v3347 = vpop.f32.mrb[0].mxu0
    %3348 = vmatprep.mubr.bf16.mxu0 0
    %3349 = vmatmul.mubr.bf16.gmra.mrb[0].mxu0 %v1050
    %v3350 = vpop.f32.mrb[0].mxu0
    %v3351 = vadd.f32 0.0, %v3350
    %v3352 = vpop.f32.mrb[0].mxu0
    %v3353 = vpop.f32.mrb[0].mxu0
    %v3354 = vadd.f32 0.0, %v3353
    %v3355 = vpop.f32.mrb[0].mxu0
    %3356 = vmatprep.mubr.bf16.mxu0 0
    %3357 = vmatmul.mubr.bf16.gmra.mrb[0].mxu0 %v1053
    %v3358 = vpop.f32.mrb[0].mxu0
    %v3359 = vadd.f32 0.0, %v3358
    %v3360 = vpop.f32.mrb[0].mxu0
    %v3361 = vpop.f32.mrb[0].mxu0
    %v3362 = vadd.f32 0.0, %v3361
    %v3363 = vpop.f32.mrb[0].mxu0
    %3364 = vmatprep.mubr.bf16.mxu0 0
    %3365 = vmatmul.mubr.bf16.gmra.mrb[0].mxu0 %v1056
    %v3366 = vpop.f32.mrb[0].mxu0
    %v3367 = vadd.f32 0.0, %v3366
    %v3368 = vpop.f32.mrb[0].mxu0
    %v3369 = vpop.f32.mrb[0].mxu0
    %v3370 = vadd.f32 0.0, %v3369
    %v3371 = vpop.f32.mrb[0].mxu0
    %3372 = vmatprep.mubr.bf16.mxu0 0
    %3373 = vmatmul.mubr.bf16.gmra.mrb[0].mxu0 %v1059
    %v3374 = vpop.f32.mrb[0].mxu0
    %v3375 = vadd.f32 0.0, %v3374
    %v3376 = vpop.f32.mrb[0].mxu0
    %v3377 = vpop.f32.mrb[0].mxu0
    %v3378 = vadd.f32 0.0, %v3377
    %v3379 = vpop.f32.mrb[0].mxu0
    %3380 = vmatprep.mubr.bf16.mxu0 0
    %3381 = vmatmul.mubr.bf16.gmra.mrb[0].mxu0 %v1062
    %v3382 = vpop.f32.mrb[0].mxu0
    %v3383 = vadd.f32 0.0, %v3382
    %v3384 = vpop.f32.mrb[0].mxu0
    %v3385 = vpop.f32.mrb[0].mxu0
    %v3386 = vadd.f32 0.0, %v3385
    %v3387 = vpop.f32.mrb[0].mxu0
    %3388 = vmatprep.mubr.bf16.mxu0 0
    %3389 = vmatmul.mubr.bf16.gmra.mrb[0].mxu0 %v1065
    %v3390 = vpop.f32.mrb[0].mxu0
    %v3391 = vadd.f32 0.0, %v3390
    %v3392 = vpop.f32.mrb[0].mxu0
    %v3393 = vpop.f32.mrb[0].mxu0
    %v3394 = vadd.f32 0.0, %v3393
    %v3395 = vpop.f32.mrb[0].mxu0
    %3396 = vmatprep.mubr.bf16.mxu0 0
    %3397 = vmatmul.mubr.bf16.gmra.mrb[0].mxu0 %v1068
    %v3398 = vpop.f32.mrb[0].mxu0
    %v3399 = vadd.f32 0.0, %v3398
    %v3400 = vpop.f32.mrb[0].mxu0
    %v3401 = vpop.f32.mrb[0].mxu0
    %v3402 = vadd.f32 0.0, %v3401
    %v3403 = vpop.f32.mrb[0].mxu0
    %3404 = vmatprep.mubr.bf16.mxu0 0
    %3405 = vmatmul.mubr.bf16.gmra.mrb[0].mxu0 %v1071
    %v3406 = vpop.f32.mrb[0].mxu0
    %v3407 = vadd.f32 0.0, %v3406
    %v3408 = vpop.f32.mrb[0].mxu0
    %v3409 = vpop.f32.mrb[0].mxu0
    %v3410 = vadd.f32 0.0, %v3409
    %v3411 = vpop.f32.mrb[0].mxu0
    %3412 = vmatprep.mubr.bf16.mxu0 0
    %3413 = vmatmul.mubr.bf16.gmra.mrb[0].mxu0 %v1074
    %v3414 = vpop.f32.mrb[0].mxu0
    %v3415 = vadd.f32 0.0, %v3414
    %v3416 = vpop.f32.mrb[0].mxu0
    %v3417 = vpop.f32.mrb[0].mxu0
    %v3418 = vadd.f32 0.0, %v3417
    %v3419 = vpop.f32.mrb[0].mxu0
    %3420 = vmatprep.mubr.bf16.mxu0 0
    %3421 = vmatmul.mubr.bf16.gmra.mrb[0].mxu0 %v1077
    %v3422 = vpop.f32.mrb[0].mxu0
    %v3423 = vadd.f32 0.0, %v3422
    %v3424 = vpop.f32.mrb[0].mxu0
    %v3425 = vpop.f32.mrb[0].mxu0
    %v3426 = vadd.f32 0.0, %v3425
    %v3427 = vpop.f32.mrb[0].mxu0
    %3428 = vmatprep.mubr.bf16.mxu0 0
    %3429 = vmatmul.mubr.bf16.gmra.mrb[0].mxu0 %v1080
    %v3430 = vpop.f32.mrb[0].mxu0
    %v3431 = vadd.f32 0.0, %v3430
    %v3432 = vpop.f32.mrb[0].mxu0
    %v3433 = vpop.f32.mrb[0].mxu0
    %v3434 = vadd.f32 0.0, %v3433
    %v3435 = vpop.f32.mrb[0].mxu0
    %3436 = vmatprep.mubr.bf16.mxu0 0
    %3437 = vmatmul.mubr.bf16.gmra.mrb[0].mxu0 %v1083
    %v3438 = vpop.f32.mrb[0].mxu0
    %v3439 = vadd.f32 0.0, %v3438
    %v3440 = vpop.f32.mrb[0].mxu0
    %v3441 = vpop.f32.mrb[0].mxu0
    %v3442 = vadd.f32 0.0, %v3441
    %v3443 = vpop.f32.mrb[0].mxu0
    %3444 = vmatprep.mubr.bf16.mxu0 0
    %3445 = vmatmul.mubr.bf16.gmra.mrb[0].mxu0 %v1086
    %v3446 = vpop.f32.mrb[0].mxu0
    %v3447 = vadd.f32 0.0, %v3446
    %v3448 = vpop.f32.mrb[0].mxu0
    %v3449 = vpop.f32.mrb[0].mxu0
    %v3450 = vadd.f32 0.0, %v3449
    %v3451 = vpop.f32.mrb[0].mxu0
    %3452 = vmatprep.mubr.bf16.mxu0 0
    %3453 = vmatmul.mubr.bf16.gmra.mrb[0].mxu0 %v1089
    %v3454 = vpop.f32.mrb[0].mxu0
    %v3455 = vadd.f32 0.0, %v3454
    %v3456 = vpop.f32.mrb[0].mxu0
    %v3457 = vpop.f32.mrb[0].mxu0
    %v3458 = vadd.f32 0.0, %v3457
    %v3459 = vpop.f32.mrb[0].mxu0
    %3460 = vmatprep.mubr.bf16.mxu0 0
    %3461 = vmatmul.mubr.bf16.gmra.mrb[0].mxu0 %v3175
    %v3462 = vpop.f32.mrb[0].mxu0
    %v3463 = vadd.f32 0.0, %v3462
    %v3464 = vpop.f32.mrb[0].mxu0
    %v3465 = vpop.f32.mrb[0].mxu0
    %v3466 = vadd.f32 0.0, %v3465
    %v3467 = vpop.f32.mrb[0].mxu0
    %3468 = vdwg.mxu0
    %v3469 = vadd.f32 %v3051, %v3215
    %v3470 = vadd.f32 %v3052, %v3218
    %v3471 = vadd.f32 %v3053, %v3223
    %v3472 = vadd.f32 %v3054, %v3226
    %v3473 = vadd.f32 %v3055, %v3231
    %v3474 = vadd.f32 %v3056, %v3234
    %v3475 = vadd.f32 %v3057, %v3239
    %v3476 = vadd.f32 %v3058, %v3242
    %v3477 = vadd.f32 %v3059, %v3247
    %v3478 = vadd.f32 %v3060, %v3250
    %v3479 = vadd.f32 %v3061, %v3255
    %v3480 = vadd.f32 %v3062, %v3258
    %v3481 = vadd.f32 %v3063, %v3263
    %v3482 = vadd.f32 %v3064, %v3266
    %v3483 = vadd.f32 %v3065, %v3271
    %v3484 = vadd.f32 %v3066, %v3274
    %v3485 = vadd.f32 %v3067, %v3279
    %v3486 = vadd.f32 %v3068, %v3282
    %v3487 = vadd.f32 %v3069, %v3287
    %v3488 = vadd.f32 %v3070, %v3290
    %v3489 = vadd.f32 %v3071, %v3295
    %v3490 = vadd.f32 %v3072, %v3298
    %v3491 = vadd.f32 %v3073, %v3303
    %v3492 = vadd.f32 %v3074, %v3306
    %v3493 = vadd.f32 %v3075, %v3311
    %v3494 = vadd.f32 %v3076, %v3314
    %v3495 = vadd.f32 %v3077, %v3319
    %v3496 = vadd.f32 %v3078, %v3322
    %v3497 = vadd.f32 %v3079, %v3327
    %v3498 = vadd.f32 %v3080, %v3330
    %v3499 = vadd.f32 %v3081, %v3335
    %v3500 = vadd.f32 %v3082, %v3338
    %v3501 = vadd.f32 %v3083, %v3343
    %v3502 = vadd.f32 %v3084, %v3346
    %v3503 = vadd.f32 %v3085, %v3351
    %v3504 = vadd.f32 %v3086, %v3354
    %v3505 = vadd.f32 %v3087, %v3359
    %v3506 = vadd.f32 %v3088, %v3362
    %v3507 = vadd.f32 %v3089, %v3367
    %v3508 = vadd.f32 %v3090, %v3370
    %v3509 = vadd.f32 %v3091, %v3375
    %v3510 = vadd.f32 %v3092, %v3378
    %v3511 = vadd.f32 %v3093, %v3383
    %v3512 = vadd.f32 %v3094, %v3386
    %v3513 = vadd.f32 %v3095, %v3391
    %v3514 = vadd.f32 %v3096, %v3394
    %v3515 = vadd.f32 %v3097, %v3399
    %v3516 = vadd.f32 %v3098, %v3402
    %v3517 = vadd.f32 %v3099, %v3407
    %v3518 = vadd.f32 %v3100, %v3410
    %v3519 = vadd.f32 %v3101, %v3415
    %v3520 = vadd.f32 %v3102, %v3418
    %v3521 = vadd.f32 %v3103, %v3423
    %v3522 = vadd.f32 %v3104, %v3426
    %v3523 = vadd.f32 %v3105, %v3431
    %v3524 = vadd.f32 %v3106, %v3434
    %v3525 = vadd.f32 %v3107, %v3439
    %v3526 = vadd.f32 %v3108, %v3442
    %v3527 = vadd.f32 %v3109, %v3447
    %v3528 = vadd.f32 %v3110, %v3450
    %v3529 = vadd.f32 %v3111, %v3455
    %v3530 = vadd.f32 %v3112, %v3458
    %v3531 = vadd.f32 %v3113, %v3463
    %v3532 = vadd.f32 %v3114, %v3466
    %v3535 = vrot.slane %v64, 5
    %v3536 = vrot.slane %v3535, 4
    %v3537 = vrot.slane %v65, 5
    %v3538 = vsel %vm1966, %v3536, %v3537
    %v3539 = vrot.slane %v3537, 4
    %v3540 = vrot.slane %v66, 5
    %v3541 = vsel %vm1966, %v3539, %v3540
    %v3542 = vrot.slane %v118, 5
    %v3543 = vrot.slane %v3542, 4
    %v3544 = vrot.slane %v119, 5
    %v3545 = vsel %vm1966, %v3543, %v3544
    %v3546 = vrot.slane %v3544, 4
    %v3547 = vrot.slane %v120, 5
    %v3548 = vsel %vm1966, %v3546, %v3547
    %s3549 = scalar_lea.vmem %s1, 20
    %v3550 = vld [vmem:[%s3549] sm:$0xf]
    %v3551 = vunpack.c.l.b16 %v3538
    %v3552 = vunpack.c.l.b16 %v3541
    %v3553 = vunpack.c.l.b16 %v3545
    %v3554 = vunpack.c.l.b16 %v3548
    %v3555 = vpack.c.b16 %v3552, %v3551
    %v3556 = vpack.c.b16 %v3554, %v3553
    %v3558 = vsel %vm994, %v3555, 0
    %v3561 = vsel %vm994, %v3556, 0
    %v3564 = vsel %vm1091, %v3550, 0
    %3566 = vmatprep.subr.bf16.mxu0 0
    %3567 = vmatpush1.bf16.msra.mxu0 %v3564
    %3568 = vmatprep.subr.bf16.mxu0 0
    %3569 = vmatpush1.bf16.msra.mxu0 0
    %3570 = vmatprep.subr.bf16.mxu0 0
    %3571 = vmatpush1.bf16.msra.mxu0 0
    %3572 = vmatprep.subr.bf16.mxu0 0
    %3573 = vmatpush1.bf16.msra.mxu0 0
    %3574 = vmatprep.subr.bf16.mxu0 0
    %3575 = vmatpush1.bf16.msra.mxu0 0
    %3576 = vmatprep.subr.bf16.mxu0 0
    %3577 = vmatpush1.bf16.msra.mxu0 0
    %3578 = vmatprep.subr.bf16.mxu0 0
    %3579 = vmatpush1.bf16.msra.mxu0 0
    %3580 = vmatprep.subr.bf16.mxu0 0
    %3581 = vmatpush1.bf16.msra.mxu0 0
    %3582 = vmatprep.subr.bf16.mxu0 0
    %3583 = vmatpush1.bf16.msra.mxu0 0
    %3584 = vmatprep.subr.bf16.mxu0 0
    %3585 = vmatpush1.bf16.msra.mxu0 0
    %3586 = vmatprep.subr.bf16.mxu0 0
    %3587 = vmatpush1.bf16.msra.mxu0 0
    %3588 = vmatprep.subr.bf16.mxu0 0
    %3589 = vmatpush1.bf16.msra.mxu0 0
    %3590 = vmatprep.subr.bf16.mxu0 0
    %3591 = vmatpush1.bf16.msra.mxu0 0
    %3592 = vmatprep.subr.bf16.mxu0 0
    %3593 = vmatpush1.bf16.msra.mxu0 0
    %3594 = vmatprep.subr.bf16.mxu0 0
    %3595 = vmatpush1.bf16.msra.mxu0 0
    %3596 = vmatprep.subr.bf16.mxu0 0
    %3597 = vmatpush1.bf16.msra.mxu0 0
    %3598 = vmatprep.mubr.bf16.mxu0 0
    %3599 = vmatmul.mubr.bf16.gmra.mrb[0].mxu0 %v2293
    %v3600 = vpop.f32.mrb[0].mxu0
    %v3601 = vadd.f32 0.0, %v3600
    %v3602 = vpop.f32.mrb[0].mxu0
    %v3603 = vpop.f32.mrb[0].mxu0
    %v3604 = vadd.f32 0.0, %v3603
    %v3605 = vpop.f32.mrb[0].mxu0
    %3606 = vmatprep.mubr.bf16.mxu0 0
    %3607 = vmatmul.mubr.bf16.gmra.mrb[0].mxu0 %v2296
    %v3608 = vpop.f32.mrb[0].mxu0
    %v3609 = vadd.f32 0.0, %v3608
    %v3610 = vpop.f32.mrb[0].mxu0
    %v3611 = vpop.f32.mrb[0].mxu0
    %v3612 = vadd.f32 0.0, %v3611
    %v3613 = vpop.f32.mrb[0].mxu0
    %3614 = vmatprep.mubr.bf16.mxu0 0
    %3615 = vmatmul.mubr.bf16.gmra.mrb[0].mxu0 %v2299
    %v3616 = vpop.f32.mrb[0].mxu0
    %v3617 = vadd.f32 0.0, %v3616
    %v3618 = vpop.f32.mrb[0].mxu0
    %v3619 = vpop.f32.mrb[0].mxu0
    %v3620 = vadd.f32 0.0, %v3619
    %v3621 = vpop.f32.mrb[0].mxu0
    %3622 = vmatprep.mubr.bf16.mxu0 0
    %3623 = vmatmul.mubr.bf16.gmra.mrb[0].mxu0 %v2302
    %v3624 = vpop.f32.mrb[0].mxu0
    %v3625 = vadd.f32 0.0, %v3624
    %v3626 = vpop.f32.mrb[0].mxu0
    %v3627 = vpop.f32.mrb[0].mxu0
    %v3628 = vadd.f32 0.0, %v3627
    %v3629 = vpop.f32.mrb[0].mxu0
    %3630 = vmatprep.mubr.bf16.mxu0 0
    %3631 = vmatmul.mubr.bf16.gmra.mrb[0].mxu0 %v2305
    %v3632 = vpop.f32.mrb[0].mxu0
    %v3633 = vadd.f32 0.0, %v3632
    %v3634 = vpop.f32.mrb[0].mxu0
    %v3635 = vpop.f32.mrb[0].mxu0
    %v3636 = vadd.f32 0.0, %v3635
    %v3637 = vpop.f32.mrb[0].mxu0
    %3638 = vmatprep.mubr.bf16.mxu0 0
    %3639 = vmatmul.mubr.bf16.gmra.mrb[0].mxu0 %v2308
    %v3640 = vpop.f32.mrb[0].mxu0
    %v3641 = vadd.f32 0.0, %v3640
    %v3642 = vpop.f32.mrb[0].mxu0
    %v3643 = vpop.f32.mrb[0].mxu0
    %v3644 = vadd.f32 0.0, %v3643
    %v3645 = vpop.f32.mrb[0].mxu0
    %3646 = vmatprep.mubr.bf16.mxu0 0
    %3647 = vmatmul.mubr.bf16.gmra.mrb[0].mxu0 %v2311
    %v3648 = vpop.f32.mrb[0].mxu0
    %v3649 = vadd.f32 0.0, %v3648
    %v3650 = vpop.f32.mrb[0].mxu0
    %v3651 = vpop.f32.mrb[0].mxu0
    %v3652 = vadd.f32 0.0, %v3651
    %v3653 = vpop.f32.mrb[0].mxu0
    %3654 = vmatprep.mubr.bf16.mxu0 0
    %3655 = vmatmul.mubr.bf16.gmra.mrb[0].mxu0 %v2314
    %v3656 = vpop.f32.mrb[0].mxu0
    %v3657 = vadd.f32 0.0, %v3656
    %v3658 = vpop.f32.mrb[0].mxu0
    %v3659 = vpop.f32.mrb[0].mxu0
    %v3660 = vadd.f32 0.0, %v3659
    %v3661 = vpop.f32.mrb[0].mxu0
    %3662 = vmatprep.mubr.bf16.mxu0 0
    %3663 = vmatmul.mubr.bf16.gmra.mrb[0].mxu0 %v2317
    %v3664 = vpop.f32.mrb[0].mxu0
    %v3665 = vadd.f32 0.0, %v3664
    %v3666 = vpop.f32.mrb[0].mxu0
    %v3667 = vpop.f32.mrb[0].mxu0
    %v3668 = vadd.f32 0.0, %v3667
    %v3669 = vpop.f32.mrb[0].mxu0
    %3670 = vmatprep.mubr.bf16.mxu0 0
    %3671 = vmatmul.mubr.bf16.gmra.mrb[0].mxu0 %v2320
    %v3672 = vpop.f32.mrb[0].mxu0
    %v3673 = vadd.f32 0.0, %v3672
    %v3674 = vpop.f32.mrb[0].mxu0
    %v3675 = vpop.f32.mrb[0].mxu0
    %v3676 = vadd.f32 0.0, %v3675
    %v3677 = vpop.f32.mrb[0].mxu0
    %3678 = vmatprep.mubr.bf16.mxu0 0
    %3679 = vmatmul.mubr.bf16.gmra.mrb[0].mxu0 %v2323
    %v3680 = vpop.f32.mrb[0].mxu0
    %v3681 = vadd.f32 0.0, %v3680
    %v3682 = vpop.f32.mrb[0].mxu0
    %v3683 = vpop.f32.mrb[0].mxu0
    %v3684 = vadd.f32 0.0, %v3683
    %v3685 = vpop.f32.mrb[0].mxu0
    %3686 = vmatprep.mubr.bf16.mxu0 0
    %3687 = vmatmul.mubr.bf16.gmra.mrb[0].mxu0 %v2326
    %v3688 = vpop.f32.mrb[0].mxu0
    %v3689 = vadd.f32 0.0, %v3688
    %v3690 = vpop.f32.mrb[0].mxu0
    %v3691 = vpop.f32.mrb[0].mxu0
    %v3692 = vadd.f32 0.0, %v3691
    %v3693 = vpop.f32.mrb[0].mxu0
    %3694 = vmatprep.mubr.bf16.mxu0 0
    %3695 = vmatmul.mubr.bf16.gmra.mrb[0].mxu0 %v2329
    %v3696 = vpop.f32.mrb[0].mxu0
    %v3697 = vadd.f32 0.0, %v3696
    %v3698 = vpop.f32.mrb[0].mxu0
    %v3699 = vpop.f32.mrb[0].mxu0
    %v3700 = vadd.f32 0.0, %v3699
    %v3701 = vpop.f32.mrb[0].mxu0
    %3702 = vmatprep.mubr.bf16.mxu0 0
    %3703 = vmatmul.mubr.bf16.gmra.mrb[0].mxu0 %v2332
    %v3704 = vpop.f32.mrb[0].mxu0
    %v3705 = vadd.f32 0.0, %v3704
    %v3706 = vpop.f32.mrb[0].mxu0
    %v3707 = vpop.f32.mrb[0].mxu0
    %v3708 = vadd.f32 0.0, %v3707
    %v3709 = vpop.f32.mrb[0].mxu0
    %3710 = vmatprep.mubr.bf16.mxu0 0
    %3711 = vmatmul.mubr.bf16.gmra.mrb[0].mxu0 %v2335
    %v3712 = vpop.f32.mrb[0].mxu0
    %v3713 = vadd.f32 0.0, %v3712
    %v3714 = vpop.f32.mrb[0].mxu0
    %v3715 = vpop.f32.mrb[0].mxu0
    %v3716 = vadd.f32 0.0, %v3715
    %v3717 = vpop.f32.mrb[0].mxu0
    %3718 = vmatprep.mubr.bf16.mxu0 0
    %3719 = vmatmul.mubr.bf16.gmra.mrb[0].mxu0 %v3558
    %v3720 = vpop.f32.mrb[0].mxu0
    %v3721 = vadd.f32 0.0, %v3720
    %v3722 = vpop.f32.mrb[0].mxu0
    %v3723 = vpop.f32.mrb[0].mxu0
    %v3724 = vadd.f32 0.0, %v3723
    %v3725 = vpop.f32.mrb[0].mxu0
    %3726 = vmatprep.mubr.bf16.mxu0 0
    %3727 = vmatmul.mubr.bf16.gmra.mrb[0].mxu0 %v2341
    %v3728 = vpop.f32.mrb[0].mxu0
    %v3729 = vadd.f32 0.0, %v3728
    %v3730 = vpop.f32.mrb[0].mxu0
    %v3731 = vpop.f32.mrb[0].mxu0
    %v3732 = vadd.f32 0.0, %v3731
    %v3733 = vpop.f32.mrb[0].mxu0
    %3734 = vmatprep.mubr.bf16.mxu0 0
    %3735 = vmatmul.mubr.bf16.gmra.mrb[0].mxu0 %v2344
    %v3736 = vpop.f32.mrb[0].mxu0
    %v3737 = vadd.f32 0.0, %v3736
    %v3738 = vpop.f32.mrb[0].mxu0
    %v3739 = vpop.f32.mrb[0].mxu0
    %v3740 = vadd.f32 0.0, %v3739
    %v3741 = vpop.f32.mrb[0].mxu0
    %3742 = vmatprep.mubr.bf16.mxu0 0
    %3743 = vmatmul.mubr.bf16.gmra.mrb[0].mxu0 %v2347
    %v3744 = vpop.f32.mrb[0].mxu0
    %v3745 = vadd.f32 0.0, %v3744
    %v3746 = vpop.f32.mrb[0].mxu0
    %v3747 = vpop.f32.mrb[0].mxu0
    %v3748 = vadd.f32 0.0, %v3747
    %v3749 = vpop.f32.mrb[0].mxu0
    %3750 = vmatprep.mubr.bf16.mxu0 0
    %3751 = vmatmul.mubr.bf16.gmra.mrb[0].mxu0 %v2350
    %v3752 = vpop.f32.mrb[0].mxu0
    %v3753 = vadd.f32 0.0, %v3752
    %v3754 = vpop.f32.mrb[0].mxu0
    %v3755 = vpop.f32.mrb[0].mxu0
    %v3756 = vadd.f32 0.0, %v3755
    %v3757 = vpop.f32.mrb[0].mxu0
    %3758 = vmatprep.mubr.bf16.mxu0 0
    %3759 = vmatmul.mubr.bf16.gmra.mrb[0].mxu0 %v2353
    %v3760 = vpop.f32.mrb[0].mxu0
    %v3761 = vadd.f32 0.0, %v3760
    %v3762 = vpop.f32.mrb[0].mxu0
    %v3763 = vpop.f32.mrb[0].mxu0
    %v3764 = vadd.f32 0.0, %v3763
    %v3765 = vpop.f32.mrb[0].mxu0
    %3766 = vmatprep.mubr.bf16.mxu0 0
    %3767 = vmatmul.mubr.bf16.gmra.mrb[0].mxu0 %v2356
    %v3768 = vpop.f32.mrb[0].mxu0
    %v3769 = vadd.f32 0.0, %v3768
    %v3770 = vpop.f32.mrb[0].mxu0
    %v3771 = vpop.f32.mrb[0].mxu0
    %v3772 = vadd.f32 0.0, %v3771
    %v3773 = vpop.f32.mrb[0].mxu0
    %3774 = vmatprep.mubr.bf16.mxu0 0
    %3775 = vmatmul.mubr.bf16.gmra.mrb[0].mxu0 %v2359
    %v3776 = vpop.f32.mrb[0].mxu0
    %v3777 = vadd.f32 0.0, %v3776
    %v3778 = vpop.f32.mrb[0].mxu0
    %v3779 = vpop.f32.mrb[0].mxu0
    %v3780 = vadd.f32 0.0, %v3779
    %v3781 = vpop.f32.mrb[0].mxu0
    %3782 = vmatprep.mubr.bf16.mxu0 0
    %3783 = vmatmul.mubr.bf16.gmra.mrb[0].mxu0 %v2362
    %v3784 = vpop.f32.mrb[0].mxu0
    %v3785 = vadd.f32 0.0, %v3784
    %v3786 = vpop.f32.mrb[0].mxu0
    %v3787 = vpop.f32.mrb[0].mxu0
    %v3788 = vadd.f32 0.0, %v3787
    %v3789 = vpop.f32.mrb[0].mxu0
    %3790 = vmatprep.mubr.bf16.mxu0 0
    %3791 = vmatmul.mubr.bf16.gmra.mrb[0].mxu0 %v2365
    %v3792 = vpop.f32.mrb[0].mxu0
    %v3793 = vadd.f32 0.0, %v3792
    %v3794 = vpop.f32.mrb[0].mxu0
    %v3795 = vpop.f32.mrb[0].mxu0
    %v3796 = vadd.f32 0.0, %v3795
    %v3797 = vpop.f32.mrb[0].mxu0
    %3798 = vmatprep.mubr.bf16.mxu0 0
    %3799 = vmatmul.mubr.bf16.gmra.mrb[0].mxu0 %v2368
    %v3800 = vpop.f32.mrb[0].mxu0
    %v3801 = vadd.f32 0.0, %v3800
    %v3802 = vpop.f32.mrb[0].mxu0
    %v3803 = vpop.f32.mrb[0].mxu0
    %v3804 = vadd.f32 0.0, %v3803
    %v3805 = vpop.f32.mrb[0].mxu0
    %3806 = vmatprep.mubr.bf16.mxu0 0
    %3807 = vmatmul.mubr.bf16.gmra.mrb[0].mxu0 %v2371
    %v3808 = vpop.f32.mrb[0].mxu0
    %v3809 = vadd.f32 0.0, %v3808
    %v3810 = vpop.f32.mrb[0].mxu0
    %v3811 = vpop.f32.mrb[0].mxu0
    %v3812 = vadd.f32 0.0, %v3811
    %v3813 = vpop.f32.mrb[0].mxu0
    %3814 = vmatprep.mubr.bf16.mxu0 0
    %3815 = vmatmul.mubr.bf16.gmra.mrb[0].mxu0 %v2374
    %v3816 = vpop.f32.mrb[0].mxu0
    %v3817 = vadd.f32 0.0, %v3816
    %v3818 = vpop.f32.mrb[0].mxu0
    %v3819 = vpop.f32.mrb[0].mxu0
    %v3820 = vadd.f32 0.0, %v3819
    %v3821 = vpop.f32.mrb[0].mxu0
    %3822 = vmatprep.mubr.bf16.mxu0 0
    %3823 = vmatmul.mubr.bf16.gmra.mrb[0].mxu0 %v2377
    %v3824 = vpop.f32.mrb[0].mxu0
    %v3825 = vadd.f32 0.0, %v3824
    %v3826 = vpop.f32.mrb[0].mxu0
    %v3827 = vpop.f32.mrb[0].mxu0
    %v3828 = vadd.f32 0.0, %v3827
    %v3829 = vpop.f32.mrb[0].mxu0
    %3830 = vmatprep.mubr.bf16.mxu0 0
    %3831 = vmatmul.mubr.bf16.gmra.mrb[0].mxu0 %v2380
    %v3832 = vpop.f32.mrb[0].mxu0
    %v3833 = vadd.f32 0.0, %v3832
    %v3834 = vpop.f32.mrb[0].mxu0
    %v3835 = vpop.f32.mrb[0].mxu0
    %v3836 = vadd.f32 0.0, %v3835
    %v3837 = vpop.f32.mrb[0].mxu0
    %3838 = vmatprep.mubr.bf16.mxu0 0
    %3839 = vmatmul.mubr.bf16.gmra.mrb[0].mxu0 %v2383
    %v3840 = vpop.f32.mrb[0].mxu0
    %v3841 = vadd.f32 0.0, %v3840
    %v3842 = vpop.f32.mrb[0].mxu0
    %v3843 = vpop.f32.mrb[0].mxu0
    %v3844 = vadd.f32 0.0, %v3843
    %v3845 = vpop.f32.mrb[0].mxu0
    %3846 = vmatprep.mubr.bf16.mxu0 0
    %3847 = vmatmul.mubr.bf16.gmra.mrb[0].mxu0 %v3561
    %v3848 = vpop.f32.mrb[0].mxu0
    %v3849 = vadd.f32 0.0, %v3848
    %v3850 = vpop.f32.mrb[0].mxu0
    %v3851 = vpop.f32.mrb[0].mxu0
    %v3852 = vadd.f32 0.0, %v3851
    %v3853 = vpop.f32.mrb[0].mxu0
    %3854 = vdwg.mxu0
    %v3855 = vadd.f32 %v3469, %v3601
    %v3856 = vadd.f32 %v3470, %v3604
    %v3857 = vadd.f32 %v3471, %v3609
    %v3858 = vadd.f32 %v3472, %v3612
    %v3859 = vadd.f32 %v3473, %v3617
    %v3860 = vadd.f32 %v3474, %v3620
    %v3861 = vadd.f32 %v3475, %v3625
    %v3862 = vadd.f32 %v3476, %v3628
    %v3863 = vadd.f32 %v3477, %v3633
    %v3864 = vadd.f32 %v3478, %v3636
    %v3865 = vadd.f32 %v3479, %v3641
    %v3866 = vadd.f32 %v3480, %v3644
    %v3867 = vadd.f32 %v3481, %v3649
    %v3868 = vadd.f32 %v3482, %v3652
    %v3869 = vadd.f32 %v3483, %v3657
    %v3870 = vadd.f32 %v3484, %v3660
    %v3871 = vadd.f32 %v3485, %v3665
    %v3872 = vadd.f32 %v3486, %v3668
    %v3873 = vadd.f32 %v3487, %v3673
    %v3874 = vadd.f32 %v3488, %v3676
    %v3875 = vadd.f32 %v3489, %v3681
    %v3876 = vadd.f32 %v3490, %v3684
    %v3877 = vadd.f32 %v3491, %v3689
    %v3878 = vadd.f32 %v3492, %v3692
    %v3879 = vadd.f32 %v3493, %v3697
    %v3880 = vadd.f32 %v3494, %v3700
    %v3881 = vadd.f32 %v3495, %v3705
    %v3882 = vadd.f32 %v3496, %v3708
    %v3883 = vadd.f32 %v3497, %v3713
    %v3884 = vadd.f32 %v3498, %v3716
    %v3885 = vadd.f32 %v3499, %v3721
    %v3886 = vadd.f32 %v3500, %v3724
    %v3887 = vadd.f32 %v3501, %v3729
    %v3888 = vadd.f32 %v3502, %v3732
    %v3889 = vadd.f32 %v3503, %v3737
    %v3890 = vadd.f32 %v3504, %v3740
    %v3891 = vadd.f32 %v3505, %v3745
    %v3892 = vadd.f32 %v3506, %v3748
    %v3893 = vadd.f32 %v3507, %v3753
    %v3894 = vadd.f32 %v3508, %v3756
    %v3895 = vadd.f32 %v3509, %v3761
    %v3896 = vadd.f32 %v3510, %v3764
    %v3897 = vadd.f32 %v3511, %v3769
    %v3898 = vadd.f32 %v3512, %v3772
    %v3899 = vadd.f32 %v3513, %v3777
    %v3900 = vadd.f32 %v3514, %v3780
    %v3901 = vadd.f32 %v3515, %v3785
    %v3902 = vadd.f32 %v3516, %v3788
    %v3903 = vadd.f32 %v3517, %v3793
    %v3904 = vadd.f32 %v3518, %v3796
    %v3905 = vadd.f32 %v3519, %v3801
    %v3906 = vadd.f32 %v3520, %v3804
    %v3907 = vadd.f32 %v3521, %v3809
    %v3908 = vadd.f32 %v3522, %v3812
    %v3909 = vadd.f32 %v3523, %v3817
    %v3910 = vadd.f32 %v3524, %v3820
    %v3911 = vadd.f32 %v3525, %v3825
    %v3912 = vadd.f32 %v3526, %v3828
    %v3913 = vadd.f32 %v3527, %v3833
    %v3914 = vadd.f32 %v3528, %v3836
    %v3915 = vadd.f32 %v3529, %v3841
    %v3916 = vadd.f32 %v3530, %v3844
    %v3917 = vadd.f32 %v3531, %v3849
    %v3918 = vadd.f32 %v3532, %v3852
    %s3919 = scalar_lea.vmem %s1, 24
    %v3920 = vld [vmem:[%s3919] sm:$0xf]
    %v3925 = vunpack.c.l.b16 %v67
    %v3926 = vunpack.c.l.b16 %v68
    %v3927 = vunpack.c.l.b16 %v121
    %v3928 = vunpack.c.l.b16 %v122
    %v3929 = vpack.c.b16 %v3926, %v3925
    %v3930 = vpack.c.b16 %v3928, %v3927
    %v3932 = vsel %vm994, %v3929, 0
    %v3935 = vsel %vm994, %v3930, 0
    %v3938 = vsel %vm1091, %v3920, 0
    %3940 = vmatprep.subr.bf16.mxu0 0
    %3941 = vmatpush1.bf16.msra.mxu0 %v3938
    %3942 = vmatprep.subr.bf16.mxu0 0
    %3943 = vmatpush1.bf16.msra.mxu0 0
    %3944 = vmatprep.subr.bf16.mxu0 0
    %3945 = vmatpush1.bf16.msra.mxu0 0
    %3946 = vmatprep.subr.bf16.mxu0 0
    %3947 = vmatpush1.bf16.msra.mxu0 0
    %3948 = vmatprep.subr.bf16.mxu0 0
    %3949 = vmatpush1.bf16.msra.mxu0 0
    %3950 = vmatprep.subr.bf16.mxu0 0
    %3951 = vmatpush1.bf16.msra.mxu0 0
    %3952 = vmatprep.subr.bf16.mxu0 0
    %3953 = vmatpush1.bf16.msra.mxu0 0
    %3954 = vmatprep.subr.bf16.mxu0 0
    %3955 = vmatpush1.bf16.msra.mxu0 0
    %3956 = vmatprep.subr.bf16.mxu0 0
    %3957 = vmatpush1.bf16.msra.mxu0 0
    %3958 = vmatprep.subr.bf16.mxu0 0
    %3959 = vmatpush1.bf16.msra.mxu0 0
    %3960 = vmatprep.subr.bf16.mxu0 0
    %3961 = vmatpush1.bf16.msra.mxu0 0
    %3962 = vmatprep.subr.bf16.mxu0 0
    %3963 = vmatpush1.bf16.msra.mxu0 0
    %3964 = vmatprep.subr.bf16.mxu0 0
    %3965 = vmatpush1.bf16.msra.mxu0 0
    %3966 = vmatprep.subr.bf16.mxu0 0
    %3967 = vmatpush1.bf16.msra.mxu0 0
    %3968 = vmatprep.subr.bf16.mxu0 0
    %3969 = vmatpush1.bf16.msra.mxu0 0
    %3970 = vmatprep.subr.bf16.mxu0 0
    %3971 = vmatpush1.bf16.msra.mxu0 0
    %3972 = vmatprep.mubr.bf16.mxu0 0
    %3973 = vmatmul.mubr.bf16.gmra.mrb[0].mxu0 %v1551
    %v3974 = vpop.f32.mrb[0].mxu0
    %v3975 = vadd.f32 0.0, %v3974
    %v3976 = vpop.f32.mrb[0].mxu0
    %v3977 = vpop.f32.mrb[0].mxu0
    %v3978 = vadd.f32 0.0, %v3977
    %v3979 = vpop.f32.mrb[0].mxu0
    %3980 = vmatprep.mubr.bf16.mxu0 0
    %3981 = vmatmul.mubr.bf16.gmra.mrb[0].mxu0 %v1554
    %v3982 = vpop.f32.mrb[0].mxu0
    %v3983 = vadd.f32 0.0, %v3982
    %v3984 = vpop.f32.mrb[0].mxu0
    %v3985 = vpop.f32.mrb[0].mxu0
    %v3986 = vadd.f32 0.0, %v3985
    %v3987 = vpop.f32.mrb[0].mxu0
    %3988 = vmatprep.mubr.bf16.mxu0 0
    %3989 = vmatmul.mubr.bf16.gmra.mrb[0].mxu0 %v1557
    %v3990 = vpop.f32.mrb[0].mxu0
    %v3991 = vadd.f32 0.0, %v3990
    %v3992 = vpop.f32.mrb[0].mxu0
    %v3993 = vpop.f32.mrb[0].mxu0
    %v3994 = vadd.f32 0.0, %v3993
    %v3995 = vpop.f32.mrb[0].mxu0
    %3996 = vmatprep.mubr.bf16.mxu0 0
    %3997 = vmatmul.mubr.bf16.gmra.mrb[0].mxu0 %v1560
    %v3998 = vpop.f32.mrb[0].mxu0
    %v3999 = vadd.f32 0.0, %v3998
    %v4000 = vpop.f32.mrb[0].mxu0
    %v4001 = vpop.f32.mrb[0].mxu0
    %v4002 = vadd.f32 0.0, %v4001
    %v4003 = vpop.f32.mrb[0].mxu0
    %4004 = vmatprep.mubr.bf16.mxu0 0
    %4005 = vmatmul.mubr.bf16.gmra.mrb[0].mxu0 %v1563
    %v4006 = vpop.f32.mrb[0].mxu0
    %v4007 = vadd.f32 0.0, %v4006
    %v4008 = vpop.f32.mrb[0].mxu0
    %v4009 = vpop.f32.mrb[0].mxu0
    %v4010 = vadd.f32 0.0, %v4009
    %v4011 = vpop.f32.mrb[0].mxu0
    %4012 = vmatprep.mubr.bf16.mxu0 0
    %4013 = vmatmul.mubr.bf16.gmra.mrb[0].mxu0 %v1566
    %v4014 = vpop.f32.mrb[0].mxu0
    %v4015 = vadd.f32 0.0, %v4014
    %v4016 = vpop.f32.mrb[0].mxu0
    %v4017 = vpop.f32.mrb[0].mxu0
    %v4018 = vadd.f32 0.0, %v4017
    %v4019 = vpop.f32.mrb[0].mxu0
    %4020 = vmatprep.mubr.bf16.mxu0 0
    %4021 = vmatmul.mubr.bf16.gmra.mrb[0].mxu0 %v1569
    %v4022 = vpop.f32.mrb[0].mxu0
    %v4023 = vadd.f32 0.0, %v4022
    %v4024 = vpop.f32.mrb[0].mxu0
    %v4025 = vpop.f32.mrb[0].mxu0
    %v4026 = vadd.f32 0.0, %v4025
    %v4027 = vpop.f32.mrb[0].mxu0
    %4028 = vmatprep.mubr.bf16.mxu0 0
    %4029 = vmatmul.mubr.bf16.gmra.mrb[0].mxu0 %v1572
    %v4030 = vpop.f32.mrb[0].mxu0
    %v4031 = vadd.f32 0.0, %v4030
    %v4032 = vpop.f32.mrb[0].mxu0
    %v4033 = vpop.f32.mrb[0].mxu0
    %v4034 = vadd.f32 0.0, %v4033
    %v4035 = vpop.f32.mrb[0].mxu0
    %4036 = vmatprep.mubr.bf16.mxu0 0
    %4037 = vmatmul.mubr.bf16.gmra.mrb[0].mxu0 %v1575
    %v4038 = vpop.f32.mrb[0].mxu0
    %v4039 = vadd.f32 0.0, %v4038
    %v4040 = vpop.f32.mrb[0].mxu0
    %v4041 = vpop.f32.mrb[0].mxu0
    %v4042 = vadd.f32 0.0, %v4041
    %v4043 = vpop.f32.mrb[0].mxu0
    %4044 = vmatprep.mubr.bf16.mxu0 0
    %4045 = vmatmul.mubr.bf16.gmra.mrb[0].mxu0 %v1578
    %v4046 = vpop.f32.mrb[0].mxu0
    %v4047 = vadd.f32 0.0, %v4046
    %v4048 = vpop.f32.mrb[0].mxu0
    %v4049 = vpop.f32.mrb[0].mxu0
    %v4050 = vadd.f32 0.0, %v4049
    %v4051 = vpop.f32.mrb[0].mxu0
    %4052 = vmatprep.mubr.bf16.mxu0 0
    %4053 = vmatmul.mubr.bf16.gmra.mrb[0].mxu0 %v1581
    %v4054 = vpop.f32.mrb[0].mxu0
    %v4055 = vadd.f32 0.0, %v4054
    %v4056 = vpop.f32.mrb[0].mxu0
    %v4057 = vpop.f32.mrb[0].mxu0
    %v4058 = vadd.f32 0.0, %v4057
    %v4059 = vpop.f32.mrb[0].mxu0
    %4060 = vmatprep.mubr.bf16.mxu0 0
    %4061 = vmatmul.mubr.bf16.gmra.mrb[0].mxu0 %v1584
    %v4062 = vpop.f32.mrb[0].mxu0
    %v4063 = vadd.f32 0.0, %v4062
    %v4064 = vpop.f32.mrb[0].mxu0
    %v4065 = vpop.f32.mrb[0].mxu0
    %v4066 = vadd.f32 0.0, %v4065
    %v4067 = vpop.f32.mrb[0].mxu0
    %4068 = vmatprep.mubr.bf16.mxu0 0
    %4069 = vmatmul.mubr.bf16.gmra.mrb[0].mxu0 %v1587
    %v4070 = vpop.f32.mrb[0].mxu0
    %v4071 = vadd.f32 0.0, %v4070
    %v4072 = vpop.f32.mrb[0].mxu0
    %v4073 = vpop.f32.mrb[0].mxu0
    %v4074 = vadd.f32 0.0, %v4073
    %v4075 = vpop.f32.mrb[0].mxu0
    %4076 = vmatprep.mubr.bf16.mxu0 0
    %4077 = vmatmul.mubr.bf16.gmra.mrb[0].mxu0 %v1590
    %v4078 = vpop.f32.mrb[0].mxu0
    %v4079 = vadd.f32 0.0, %v4078
    %v4080 = vpop.f32.mrb[0].mxu0
    %v4081 = vpop.f32.mrb[0].mxu0
    %v4082 = vadd.f32 0.0, %v4081
    %v4083 = vpop.f32.mrb[0].mxu0
    %4084 = vmatprep.mubr.bf16.mxu0 0
    %4085 = vmatmul.mubr.bf16.gmra.mrb[0].mxu0 %v2754
    %v4086 = vpop.f32.mrb[0].mxu0
    %v4087 = vadd.f32 0.0, %v4086
    %v4088 = vpop.f32.mrb[0].mxu0
    %v4089 = vpop.f32.mrb[0].mxu0
    %v4090 = vadd.f32 0.0, %v4089
    %v4091 = vpop.f32.mrb[0].mxu0
    %4092 = vmatprep.mubr.bf16.mxu0 0
    %4093 = vmatmul.mubr.bf16.gmra.mrb[0].mxu0 %v3932
    %v4094 = vpop.f32.mrb[0].mxu0
    %v4095 = vadd.f32 0.0, %v4094
    %v4096 = vpop.f32.mrb[0].mxu0
    %v4097 = vpop.f32.mrb[0].mxu0
    %v4098 = vadd.f32 0.0, %v4097
    %v4099 = vpop.f32.mrb[0].mxu0
    %4100 = vmatprep.mubr.bf16.mxu0 0
    %4101 = vmatmul.mubr.bf16.gmra.mrb[0].mxu0 %v1599
    %v4102 = vpop.f32.mrb[0].mxu0
    %v4103 = vadd.f32 0.0, %v4102
    %v4104 = vpop.f32.mrb[0].mxu0
    %v4105 = vpop.f32.mrb[0].mxu0
    %v4106 = vadd.f32 0.0, %v4105
    %v4107 = vpop.f32.mrb[0].mxu0
    %4108 = vmatprep.mubr.bf16.mxu0 0
    %4109 = vmatmul.mubr.bf16.gmra.mrb[0].mxu0 %v1602
    %v4110 = vpop.f32.mrb[0].mxu0
    %v4111 = vadd.f32 0.0, %v4110
    %v4112 = vpop.f32.mrb[0].mxu0
    %v4113 = vpop.f32.mrb[0].mxu0
    %v4114 = vadd.f32 0.0, %v4113
    %v4115 = vpop.f32.mrb[0].mxu0
    %4116 = vmatprep.mubr.bf16.mxu0 0
    %4117 = vmatmul.mubr.bf16.gmra.mrb[0].mxu0 %v1605
    %v4118 = vpop.f32.mrb[0].mxu0
    %v4119 = vadd.f32 0.0, %v4118
    %v4120 = vpop.f32.mrb[0].mxu0
    %v4121 = vpop.f32.mrb[0].mxu0
    %v4122 = vadd.f32 0.0, %v4121
    %v4123 = vpop.f32.mrb[0].mxu0
    %4124 = vmatprep.mubr.bf16.mxu0 0
    %4125 = vmatmul.mubr.bf16.gmra.mrb[0].mxu0 %v1608
    %v4126 = vpop.f32.mrb[0].mxu0
    %v4127 = vadd.f32 0.0, %v4126
    %v4128 = vpop.f32.mrb[0].mxu0
    %v4129 = vpop.f32.mrb[0].mxu0
    %v4130 = vadd.f32 0.0, %v4129
    %v4131 = vpop.f32.mrb[0].mxu0
    %4132 = vmatprep.mubr.bf16.mxu0 0
    %4133 = vmatmul.mubr.bf16.gmra.mrb[0].mxu0 %v1611
    %v4134 = vpop.f32.mrb[0].mxu0
    %v4135 = vadd.f32 0.0, %v4134
    %v4136 = vpop.f32.mrb[0].mxu0
    %v4137 = vpop.f32.mrb[0].mxu0
    %v4138 = vadd.f32 0.0, %v4137
    %v4139 = vpop.f32.mrb[0].mxu0
    %4140 = vmatprep.mubr.bf16.mxu0 0
    %4141 = vmatmul.mubr.bf16.gmra.mrb[0].mxu0 %v1614
    %v4142 = vpop.f32.mrb[0].mxu0
    %v4143 = vadd.f32 0.0, %v4142
    %v4144 = vpop.f32.mrb[0].mxu0
    %v4145 = vpop.f32.mrb[0].mxu0
    %v4146 = vadd.f32 0.0, %v4145
    %v4147 = vpop.f32.mrb[0].mxu0
    %4148 = vmatprep.mubr.bf16.mxu0 0
    %4149 = vmatmul.mubr.bf16.gmra.mrb[0].mxu0 %v1617
    %v4150 = vpop.f32.mrb[0].mxu0
    %v4151 = vadd.f32 0.0, %v4150
    %v4152 = vpop.f32.mrb[0].mxu0
    %v4153 = vpop.f32.mrb[0].mxu0
    %v4154 = vadd.f32 0.0, %v4153
    %v4155 = vpop.f32.mrb[0].mxu0
    %4156 = vmatprep.mubr.bf16.mxu0 0
    %4157 = vmatmul.mubr.bf16.gmra.mrb[0].mxu0 %v1620
    %v4158 = vpop.f32.mrb[0].mxu0
    %v4159 = vadd.f32 0.0, %v4158
    %v4160 = vpop.f32.mrb[0].mxu0
    %v4161 = vpop.f32.mrb[0].mxu0
    %v4162 = vadd.f32 0.0, %v4161
    %v4163 = vpop.f32.mrb[0].mxu0
    %4164 = vmatprep.mubr.bf16.mxu0 0
    %4165 = vmatmul.mubr.bf16.gmra.mrb[0].mxu0 %v1623
    %v4166 = vpop.f32.mrb[0].mxu0
    %v4167 = vadd.f32 0.0, %v4166
    %v4168 = vpop.f32.mrb[0].mxu0
    %v4169 = vpop.f32.mrb[0].mxu0
    %v4170 = vadd.f32 0.0, %v4169
    %v4171 = vpop.f32.mrb[0].mxu0
    %4172 = vmatprep.mubr.bf16.mxu0 0
    %4173 = vmatmul.mubr.bf16.gmra.mrb[0].mxu0 %v1626
    %v4174 = vpop.f32.mrb[0].mxu0
    %v4175 = vadd.f32 0.0, %v4174
    %v4176 = vpop.f32.mrb[0].mxu0
    %v4177 = vpop.f32.mrb[0].mxu0
    %v4178 = vadd.f32 0.0, %v4177
    %v4179 = vpop.f32.mrb[0].mxu0
    %4180 = vmatprep.mubr.bf16.mxu0 0
    %4181 = vmatmul.mubr.bf16.gmra.mrb[0].mxu0 %v1629
    %v4182 = vpop.f32.mrb[0].mxu0
    %v4183 = vadd.f32 0.0, %v4182
    %v4184 = vpop.f32.mrb[0].mxu0
    %v4185 = vpop.f32.mrb[0].mxu0
    %v4186 = vadd.f32 0.0, %v4185
    %v4187 = vpop.f32.mrb[0].mxu0
    %4188 = vmatprep.mubr.bf16.mxu0 0
    %4189 = vmatmul.mubr.bf16.gmra.mrb[0].mxu0 %v1632
    %v4190 = vpop.f32.mrb[0].mxu0
    %v4191 = vadd.f32 0.0, %v4190
    %v4192 = vpop.f32.mrb[0].mxu0
    %v4193 = vpop.f32.mrb[0].mxu0
    %v4194 = vadd.f32 0.0, %v4193
    %v4195 = vpop.f32.mrb[0].mxu0
    %4196 = vmatprep.mubr.bf16.mxu0 0
    %4197 = vmatmul.mubr.bf16.gmra.mrb[0].mxu0 %v1635
    %v4198 = vpop.f32.mrb[0].mxu0
    %v4199 = vadd.f32 0.0, %v4198
    %v4200 = vpop.f32.mrb[0].mxu0
    %v4201 = vpop.f32.mrb[0].mxu0
    %v4202 = vadd.f32 0.0, %v4201
    %v4203 = vpop.f32.mrb[0].mxu0
    %4204 = vmatprep.mubr.bf16.mxu0 0
    %4205 = vmatmul.mubr.bf16.gmra.mrb[0].mxu0 %v1638
    %v4206 = vpop.f32.mrb[0].mxu0
    %v4207 = vadd.f32 0.0, %v4206
    %v4208 = vpop.f32.mrb[0].mxu0
    %v4209 = vpop.f32.mrb[0].mxu0
    %v4210 = vadd.f32 0.0, %v4209
    %v4211 = vpop.f32.mrb[0].mxu0
    %4212 = vmatprep.mubr.bf16.mxu0 0
    %4213 = vmatmul.mubr.bf16.gmra.mrb[0].mxu0 %v2757
    %v4214 = vpop.f32.mrb[0].mxu0
    %v4215 = vadd.f32 0.0, %v4214
    %v4216 = vpop.f32.mrb[0].mxu0
    %v4217 = vpop.f32.mrb[0].mxu0
    %v4218 = vadd.f32 0.0, %v4217
    %v4219 = vpop.f32.mrb[0].mxu0
    %4220 = vmatprep.mubr.bf16.mxu0 0
    %4221 = vmatmul.mubr.bf16.gmra.mrb[0].mxu0 %v3935
    %v4222 = vpop.f32.mrb[0].mxu0
    %v4223 = vadd.f32 0.0, %v4222
    %v4224 = vpop.f32.mrb[0].mxu0
    %v4225 = vpop.f32.mrb[0].mxu0
    %v4226 = vadd.f32 0.0, %v4225
    %v4227 = vpop.f32.mrb[0].mxu0
    %4228 = vdwg.mxu0
    %v4229 = vadd.f32 %v3855, %v3975
    %v4230 = vadd.f32 %v3856, %v3978
    %v4231 = vadd.f32 %v3857, %v3983
    %v4232 = vadd.f32 %v3858, %v3986
    %v4233 = vadd.f32 %v3859, %v3991
    %v4234 = vadd.f32 %v3860, %v3994
    %v4235 = vadd.f32 %v3861, %v3999
    %v4236 = vadd.f32 %v3862, %v4002
    %v4237 = vadd.f32 %v3863, %v4007
    %v4238 = vadd.f32 %v3864, %v4010
    %v4239 = vadd.f32 %v3865, %v4015
    %v4240 = vadd.f32 %v3866, %v4018
    %v4241 = vadd.f32 %v3867, %v4023
    %v4242 = vadd.f32 %v3868, %v4026
    %v4243 = vadd.f32 %v3869, %v4031
    %v4244 = vadd.f32 %v3870, %v4034
    %v4245 = vadd.f32 %v3871, %v4039
    %v4246 = vadd.f32 %v3872, %v4042
    %v4247 = vadd.f32 %v3873, %v4047
    %v4248 = vadd.f32 %v3874, %v4050
    %v4249 = vadd.f32 %v3875, %v4055
    %v4250 = vadd.f32 %v3876, %v4058
    %v4251 = vadd.f32 %v3877, %v4063
    %v4252 = vadd.f32 %v3878, %v4066
    %v4253 = vadd.f32 %v3879, %v4071
    %v4254 = vadd.f32 %v3880, %v4074
    %v4255 = vadd.f32 %v3881, %v4079
    %v4256 = vadd.f32 %v3882, %v4082
    %v4257 = vadd.f32 %v3883, %v4087
    %v4258 = vadd.f32 %v3884, %v4090
    %v4259 = vadd.f32 %v3885, %v4095
    %v4260 = vadd.f32 %v3886, %v4098
    %v4261 = vadd.f32 %v3887, %v4103
    %v4262 = vadd.f32 %v3888, %v4106
    %v4263 = vadd.f32 %v3889, %v4111
    %v4264 = vadd.f32 %v3890, %v4114
    %v4265 = vadd.f32 %v3891, %v4119
    %v4266 = vadd.f32 %v3892, %v4122
    %v4267 = vadd.f32 %v3893, %v4127
    %v4268 = vadd.f32 %v3894, %v4130
    %v4269 = vadd.f32 %v3895, %v4135
    %v4270 = vadd.f32 %v3896, %v4138
    %v4271 = vadd.f32 %v3897, %v4143
    %v4272 = vadd.f32 %v3898, %v4146
    %v4273 = vadd.f32 %v3899, %v4151
    %v4274 = vadd.f32 %v3900, %v4154
    %v4275 = vadd.f32 %v3901, %v4159
    %v4276 = vadd.f32 %v3902, %v4162
    %v4277 = vadd.f32 %v3903, %v4167
    %v4278 = vadd.f32 %v3904, %v4170
    %v4279 = vadd.f32 %v3905, %v4175
    %v4280 = vadd.f32 %v3906, %v4178
    %v4281 = vadd.f32 %v3907, %v4183
    %v4282 = vadd.f32 %v3908, %v4186
    %v4283 = vadd.f32 %v3909, %v4191
    %v4284 = vadd.f32 %v3910, %v4194
    %v4285 = vadd.f32 %v3911, %v4199
    %v4286 = vadd.f32 %v3912, %v4202
    %v4287 = vadd.f32 %v3913, %v4207
    %v4288 = vadd.f32 %v3914, %v4210
    %v4289 = vadd.f32 %v3915, %v4215
    %v4290 = vadd.f32 %v3916, %v4218
    %v4291 = vadd.f32 %v3917, %v4223
    %v4292 = vadd.f32 %v3918, %v4226
    %v4294 = vshrl.u32 %v67, 16
    %v4296 = vrot.slane %v4294, 4
    %v4297 = vshll.u32 %v67, 16
    %v4299 = vrot.slane %v4297, 5
    %v4300 = vor.u32 %v4296, %v4299
    %v4301 = vrot.slane %v4300, 4
    %v4303 = vshll.u32 %v68, 16
    %v4305 = vrot.slane %v4303, 5
    %v4306 = vsel %vm127, %v4301, %v4305
    %v4307 = vshrl.u32 %v68, 16
    %v4309 = vrot.slane %v4307, 4
    %v4310 = vor.u32 %v4309, %v4305
    %v4311 = vrot.slane %v4310, 4
    %v4313 = vshll.u32 %v69, 16
    %v4315 = vrot.slane %v4313, 5
    %v4316 = vsel %vm127, %v4311, %v4315
    %v4318 = vshrl.u32 %v121, 16
    %v4320 = vrot.slane %v4318, 4
    %v4321 = vshll.u32 %v121, 16
    %v4323 = vrot.slane %v4321, 5
    %v4324 = vor.u32 %v4320, %v4323
    %v4325 = vrot.slane %v4324, 4
    %v4327 = vshll.u32 %v122, 16
    %v4329 = vrot.slane %v4327, 5
    %v4330 = vsel %vm127, %v4325, %v4329
    %v4331 = vshrl.u32 %v122, 16
    %v4333 = vrot.slane %v4331, 4
    %v4334 = vor.u32 %v4333, %v4329
    %v4335 = vrot.slane %v4334, 4
    %v4337 = vshll.u32 %v123, 16
    %v4339 = vrot.slane %v4337, 5
    %v4340 = vsel %vm127, %v4335, %v4339
    %s4341 = scalar_lea.vmem %s1, 28
    %v4342 = vld [vmem:[%s4341] sm:$0xf]
    %v4343 = vunpack.c.l.b16 %v4306
    %v4344 = vunpack.c.l.b16 %v4316
    %v4345 = vunpack.c.l.b16 %v4330
    %v4346 = vunpack.c.l.b16 %v4340
    %v4347 = vpack.c.b16 %v4344, %v4343
    %v4348 = vpack.c.b16 %v4346, %v4345
    %v4350 = vsel %vm994, %v4347, 0
    %v4353 = vsel %vm994, %v4348, 0
    %v4356 = vsel %vm1091, %v4342, 0
    %4358 = vmatprep.subr.bf16.mxu0 0
    %4359 = vmatpush1.bf16.msra.mxu0 %v4356
    %4360 = vmatprep.subr.bf16.mxu0 0
    %4361 = vmatpush1.bf16.msra.mxu0 0
    %4362 = vmatprep.subr.bf16.mxu0 0
    %4363 = vmatpush1.bf16.msra.mxu0 0
    %4364 = vmatprep.subr.bf16.mxu0 0
    %4365 = vmatpush1.bf16.msra.mxu0 0
    %4366 = vmatprep.subr.bf16.mxu0 0
    %4367 = vmatpush1.bf16.msra.mxu0 0
    %4368 = vmatprep.subr.bf16.mxu0 0
    %4369 = vmatpush1.bf16.msra.mxu0 0
    %4370 = vmatprep.subr.bf16.mxu0 0
    %4371 = vmatpush1.bf16.msra.mxu0 0
    %4372 = vmatprep.subr.bf16.mxu0 0
    %4373 = vmatpush1.bf16.msra.mxu0 0
    %4374 = vmatprep.subr.bf16.mxu0 0
    %4375 = vmatpush1.bf16.msra.mxu0 0
    %4376 = vmatprep.subr.bf16.mxu0 0
    %4377 = vmatpush1.bf16.msra.mxu0 0
    %4378 = vmatprep.subr.bf16.mxu0 0
    %4379 = vmatpush1.bf16.msra.mxu0 0
    %4380 = vmatprep.subr.bf16.mxu0 0
    %4381 = vmatpush1.bf16.msra.mxu0 0
    %4382 = vmatprep.subr.bf16.mxu0 0
    %4383 = vmatpush1.bf16.msra.mxu0 0
    %4384 = vmatprep.subr.bf16.mxu0 0
    %4385 = vmatpush1.bf16.msra.mxu0 0
    %4386 = vmatprep.subr.bf16.mxu0 0
    %4387 = vmatpush1.bf16.msra.mxu0 0
    %4388 = vmatprep.subr.bf16.mxu0 0
    %4389 = vmatpush1.bf16.msra.mxu0 0
    %4390 = vmatprep.mubr.bf16.mxu0 0
    %4391 = vmatmul.mubr.bf16.gmra.mrb[0].mxu0 %v1002
    %v4392 = vpop.f32.mrb[0].mxu0
    %v4393 = vadd.f32 0.0, %v4392
    %v4394 = vpop.f32.mrb[0].mxu0
    %v4395 = vpop.f32.mrb[0].mxu0
    %v4396 = vadd.f32 0.0, %v4395
    %v4397 = vpop.f32.mrb[0].mxu0
    %4398 = vmatprep.mubr.bf16.mxu0 0
    %4399 = vmatmul.mubr.bf16.gmra.mrb[0].mxu0 %v1005
    %v4400 = vpop.f32.mrb[0].mxu0
    %v4401 = vadd.f32 0.0, %v4400
    %v4402 = vpop.f32.mrb[0].mxu0
    %v4403 = vpop.f32.mrb[0].mxu0
    %v4404 = vadd.f32 0.0, %v4403
    %v4405 = vpop.f32.mrb[0].mxu0
    %4406 = vmatprep.mubr.bf16.mxu0 0
    %4407 = vmatmul.mubr.bf16.gmra.mrb[0].mxu0 %v1008
    %v4408 = vpop.f32.mrb[0].mxu0
    %v4409 = vadd.f32 0.0, %v4408
    %v4410 = vpop.f32.mrb[0].mxu0
    %v4411 = vpop.f32.mrb[0].mxu0
    %v4412 = vadd.f32 0.0, %v4411
    %v4413 = vpop.f32.mrb[0].mxu0
    %4414 = vmatprep.mubr.bf16.mxu0 0
    %4415 = vmatmul.mubr.bf16.gmra.mrb[0].mxu0 %v1011
    %v4416 = vpop.f32.mrb[0].mxu0
    %v4417 = vadd.f32 0.0, %v4416
    %v4418 = vpop.f32.mrb[0].mxu0
    %v4419 = vpop.f32.mrb[0].mxu0
    %v4420 = vadd.f32 0.0, %v4419
    %v4421 = vpop.f32.mrb[0].mxu0
    %4422 = vmatprep.mubr.bf16.mxu0 0
    %4423 = vmatmul.mubr.bf16.gmra.mrb[0].mxu0 %v1014
    %v4424 = vpop.f32.mrb[0].mxu0
    %v4425 = vadd.f32 0.0, %v4424
    %v4426 = vpop.f32.mrb[0].mxu0
    %v4427 = vpop.f32.mrb[0].mxu0
    %v4428 = vadd.f32 0.0, %v4427
    %v4429 = vpop.f32.mrb[0].mxu0
    %4430 = vmatprep.mubr.bf16.mxu0 0
    %4431 = vmatmul.mubr.bf16.gmra.mrb[0].mxu0 %v1017
    %v4432 = vpop.f32.mrb[0].mxu0
    %v4433 = vadd.f32 0.0, %v4432
    %v4434 = vpop.f32.mrb[0].mxu0
    %v4435 = vpop.f32.mrb[0].mxu0
    %v4436 = vadd.f32 0.0, %v4435
    %v4437 = vpop.f32.mrb[0].mxu0
    %4438 = vmatprep.mubr.bf16.mxu0 0
    %4439 = vmatmul.mubr.bf16.gmra.mrb[0].mxu0 %v1020
    %v4440 = vpop.f32.mrb[0].mxu0
    %v4441 = vadd.f32 0.0, %v4440
    %v4442 = vpop.f32.mrb[0].mxu0
    %v4443 = vpop.f32.mrb[0].mxu0
    %v4444 = vadd.f32 0.0, %v4443
    %v4445 = vpop.f32.mrb[0].mxu0
    %4446 = vmatprep.mubr.bf16.mxu0 0
    %4447 = vmatmul.mubr.bf16.gmra.mrb[0].mxu0 %v1023
    %v4448 = vpop.f32.mrb[0].mxu0
    %v4449 = vadd.f32 0.0, %v4448
    %v4450 = vpop.f32.mrb[0].mxu0
    %v4451 = vpop.f32.mrb[0].mxu0
    %v4452 = vadd.f32 0.0, %v4451
    %v4453 = vpop.f32.mrb[0].mxu0
    %4454 = vmatprep.mubr.bf16.mxu0 0
    %4455 = vmatmul.mubr.bf16.gmra.mrb[0].mxu0 %v1026
    %v4456 = vpop.f32.mrb[0].mxu0
    %v4457 = vadd.f32 0.0, %v4456
    %v4458 = vpop.f32.mrb[0].mxu0
    %v4459 = vpop.f32.mrb[0].mxu0
    %v4460 = vadd.f32 0.0, %v4459
    %v4461 = vpop.f32.mrb[0].mxu0
    %4462 = vmatprep.mubr.bf16.mxu0 0
    %4463 = vmatmul.mubr.bf16.gmra.mrb[0].mxu0 %v1029
    %v4464 = vpop.f32.mrb[0].mxu0
    %v4465 = vadd.f32 0.0, %v4464
    %v4466 = vpop.f32.mrb[0].mxu0
    %v4467 = vpop.f32.mrb[0].mxu0
    %v4468 = vadd.f32 0.0, %v4467
    %v4469 = vpop.f32.mrb[0].mxu0
    %4470 = vmatprep.mubr.bf16.mxu0 0
    %4471 = vmatmul.mubr.bf16.gmra.mrb[0].mxu0 %v1032
    %v4472 = vpop.f32.mrb[0].mxu0
    %v4473 = vadd.f32 0.0, %v4472
    %v4474 = vpop.f32.mrb[0].mxu0
    %v4475 = vpop.f32.mrb[0].mxu0
    %v4476 = vadd.f32 0.0, %v4475
    %v4477 = vpop.f32.mrb[0].mxu0
    %4478 = vmatprep.mubr.bf16.mxu0 0
    %4479 = vmatmul.mubr.bf16.gmra.mrb[0].mxu0 %v1035
    %v4480 = vpop.f32.mrb[0].mxu0
    %v4481 = vadd.f32 0.0, %v4480
    %v4482 = vpop.f32.mrb[0].mxu0
    %v4483 = vpop.f32.mrb[0].mxu0
    %v4484 = vadd.f32 0.0, %v4483
    %v4485 = vpop.f32.mrb[0].mxu0
    %4486 = vmatprep.mubr.bf16.mxu0 0
    %4487 = vmatmul.mubr.bf16.gmra.mrb[0].mxu0 %v1038
    %v4488 = vpop.f32.mrb[0].mxu0
    %v4489 = vadd.f32 0.0, %v4488
    %v4490 = vpop.f32.mrb[0].mxu0
    %v4491 = vpop.f32.mrb[0].mxu0
    %v4492 = vadd.f32 0.0, %v4491
    %v4493 = vpop.f32.mrb[0].mxu0
    %4494 = vmatprep.mubr.bf16.mxu0 0
    %4495 = vmatmul.mubr.bf16.gmra.mrb[0].mxu0 %v1041
    %v4496 = vpop.f32.mrb[0].mxu0
    %v4497 = vadd.f32 0.0, %v4496
    %v4498 = vpop.f32.mrb[0].mxu0
    %v4499 = vpop.f32.mrb[0].mxu0
    %v4500 = vadd.f32 0.0, %v4499
    %v4501 = vpop.f32.mrb[0].mxu0
    %4502 = vmatprep.mubr.bf16.mxu0 0
    %4503 = vmatmul.mubr.bf16.gmra.mrb[0].mxu0 %v3172
    %v4504 = vpop.f32.mrb[0].mxu0
    %v4505 = vadd.f32 0.0, %v4504
    %v4506 = vpop.f32.mrb[0].mxu0
    %v4507 = vpop.f32.mrb[0].mxu0
    %v4508 = vadd.f32 0.0, %v4507
    %v4509 = vpop.f32.mrb[0].mxu0
    %4510 = vmatprep.mubr.bf16.mxu0 0
    %4511 = vmatmul.mubr.bf16.gmra.mrb[0].mxu0 %v4350
    %v4512 = vpop.f32.mrb[0].mxu0
    %v4513 = vadd.f32 0.0, %v4512
    %v4514 = vpop.f32.mrb[0].mxu0
    %v4515 = vpop.f32.mrb[0].mxu0
    %v4516 = vadd.f32 0.0, %v4515
    %v4517 = vpop.f32.mrb[0].mxu0
    %4518 = vmatprep.mubr.bf16.mxu0 0
    %4519 = vmatmul.mubr.bf16.gmra.mrb[0].mxu0 %v1050
    %v4520 = vpop.f32.mrb[0].mxu0
    %v4521 = vadd.f32 0.0, %v4520
    %v4522 = vpop.f32.mrb[0].mxu0
    %v4523 = vpop.f32.mrb[0].mxu0
    %v4524 = vadd.f32 0.0, %v4523
    %v4525 = vpop.f32.mrb[0].mxu0
    %4526 = vmatprep.mubr.bf16.mxu0 0
    %4527 = vmatmul.mubr.bf16.gmra.mrb[0].mxu0 %v1053
    %v4528 = vpop.f32.mrb[0].mxu0
    %v4529 = vadd.f32 0.0, %v4528
    %v4530 = vpop.f32.mrb[0].mxu0
    %v4531 = vpop.f32.mrb[0].mxu0
    %v4532 = vadd.f32 0.0, %v4531
    %v4533 = vpop.f32.mrb[0].mxu0
    %4534 = vmatprep.mubr.bf16.mxu0 0
    %4535 = vmatmul.mubr.bf16.gmra.mrb[0].mxu0 %v1056
    %v4536 = vpop.f32.mrb[0].mxu0
    %v4537 = vadd.f32 0.0, %v4536
    %v4538 = vpop.f32.mrb[0].mxu0
    %v4539 = vpop.f32.mrb[0].mxu0
    %v4540 = vadd.f32 0.0, %v4539
    %v4541 = vpop.f32.mrb[0].mxu0
    %4542 = vmatprep.mubr.bf16.mxu0 0
    %4543 = vmatmul.mubr.bf16.gmra.mrb[0].mxu0 %v1059
    %v4544 = vpop.f32.mrb[0].mxu0
    %v4545 = vadd.f32 0.0, %v4544
    %v4546 = vpop.f32.mrb[0].mxu0
    %v4547 = vpop.f32.mrb[0].mxu0
    %v4548 = vadd.f32 0.0, %v4547
    %v4549 = vpop.f32.mrb[0].mxu0
    %4550 = vmatprep.mubr.bf16.mxu0 0
    %4551 = vmatmul.mubr.bf16.gmra.mrb[0].mxu0 %v1062
    %v4552 = vpop.f32.mrb[0].mxu0
    %v4553 = vadd.f32 0.0, %v4552
    %v4554 = vpop.f32.mrb[0].mxu0
    %v4555 = vpop.f32.mrb[0].mxu0
    %v4556 = vadd.f32 0.0, %v4555
    %v4557 = vpop.f32.mrb[0].mxu0
    %4558 = vmatprep.mubr.bf16.mxu0 0
    %4559 = vmatmul.mubr.bf16.gmra.mrb[0].mxu0 %v1065
    %v4560 = vpop.f32.mrb[0].mxu0
    %v4561 = vadd.f32 0.0, %v4560
    %v4562 = vpop.f32.mrb[0].mxu0
    %v4563 = vpop.f32.mrb[0].mxu0
    %v4564 = vadd.f32 0.0, %v4563
    %v4565 = vpop.f32.mrb[0].mxu0
    %4566 = vmatprep.mubr.bf16.mxu0 0
    %4567 = vmatmul.mubr.bf16.gmra.mrb[0].mxu0 %v1068
    %v4568 = vpop.f32.mrb[0].mxu0
    %v4569 = vadd.f32 0.0, %v4568
    %v4570 = vpop.f32.mrb[0].mxu0
    %v4571 = vpop.f32.mrb[0].mxu0
    %v4572 = vadd.f32 0.0, %v4571
    %v4573 = vpop.f32.mrb[0].mxu0
    %4574 = vmatprep.mubr.bf16.mxu0 0
    %4575 = vmatmul.mubr.bf16.gmra.mrb[0].mxu0 %v1071
    %v4576 = vpop.f32.mrb[0].mxu0
    %v4577 = vadd.f32 0.0, %v4576
    %v4578 = vpop.f32.mrb[0].mxu0
    %v4579 = vpop.f32.mrb[0].mxu0
    %v4580 = vadd.f32 0.0, %v4579
    %v4581 = vpop.f32.mrb[0].mxu0
    %4582 = vmatprep.mubr.bf16.mxu0 0
    %4583 = vmatmul.mubr.bf16.gmra.mrb[0].mxu0 %v1074
    %v4584 = vpop.f32.mrb[0].mxu0
    %v4585 = vadd.f32 0.0, %v4584
    %v4586 = vpop.f32.mrb[0].mxu0
    %v4587 = vpop.f32.mrb[0].mxu0
    %v4588 = vadd.f32 0.0, %v4587
    %v4589 = vpop.f32.mrb[0].mxu0
    %4590 = vmatprep.mubr.bf16.mxu0 0
    %4591 = vmatmul.mubr.bf16.gmra.mrb[0].mxu0 %v1077
    %v4592 = vpop.f32.mrb[0].mxu0
    %v4593 = vadd.f32 0.0, %v4592
    %v4594 = vpop.f32.mrb[0].mxu0
    %v4595 = vpop.f32.mrb[0].mxu0
    %v4596 = vadd.f32 0.0, %v4595
    %v4597 = vpop.f32.mrb[0].mxu0
    %4598 = vmatprep.mubr.bf16.mxu0 0
    %4599 = vmatmul.mubr.bf16.gmra.mrb[0].mxu0 %v1080
    %v4600 = vpop.f32.mrb[0].mxu0
    %v4601 = vadd.f32 0.0, %v4600
    %v4602 = vpop.f32.mrb[0].mxu0
    %v4603 = vpop.f32.mrb[0].mxu0
    %v4604 = vadd.f32 0.0, %v4603
    %v4605 = vpop.f32.mrb[0].mxu0
    %4606 = vmatprep.mubr.bf16.mxu0 0
    %4607 = vmatmul.mubr.bf16.gmra.mrb[0].mxu0 %v1083
    %v4608 = vpop.f32.mrb[0].mxu0
    %v4609 = vadd.f32 0.0, %v4608
    %v4610 = vpop.f32.mrb[0].mxu0
    %v4611 = vpop.f32.mrb[0].mxu0
    %v4612 = vadd.f32 0.0, %v4611
    %v4613 = vpop.f32.mrb[0].mxu0
    %4614 = vmatprep.mubr.bf16.mxu0 0
    %4615 = vmatmul.mubr.bf16.gmra.mrb[0].mxu0 %v1086
    %v4616 = vpop.f32.mrb[0].mxu0
    %v4617 = vadd.f32 0.0, %v4616
    %v4618 = vpop.f32.mrb[0].mxu0
    %v4619 = vpop.f32.mrb[0].mxu0
    %v4620 = vadd.f32 0.0, %v4619
    %v4621 = vpop.f32.mrb[0].mxu0
    %4622 = vmatprep.mubr.bf16.mxu0 0
    %4623 = vmatmul.mubr.bf16.gmra.mrb[0].mxu0 %v1089
    %v4624 = vpop.f32.mrb[0].mxu0
    %v4625 = vadd.f32 0.0, %v4624
    %v4626 = vpop.f32.mrb[0].mxu0
    %v4627 = vpop.f32.mrb[0].mxu0
    %v4628 = vadd.f32 0.0, %v4627
    %v4629 = vpop.f32.mrb[0].mxu0
    %4630 = vmatprep.mubr.bf16.mxu0 0
    %4631 = vmatmul.mubr.bf16.gmra.mrb[0].mxu0 %v3175
    %v4632 = vpop.f32.mrb[0].mxu0
    %v4633 = vadd.f32 0.0, %v4632
    %v4634 = vpop.f32.mrb[0].mxu0
    %v4635 = vpop.f32.mrb[0].mxu0
    %v4636 = vadd.f32 0.0, %v4635
    %v4637 = vpop.f32.mrb[0].mxu0
    %4638 = vmatprep.mubr.bf16.mxu0 0
    %4639 = vmatmul.mubr.bf16.gmra.mrb[0].mxu0 %v4353
    %v4640 = vpop.f32.mrb[0].mxu0
    %v4641 = vadd.f32 0.0, %v4640
    %v4642 = vpop.f32.mrb[0].mxu0
    %v4643 = vpop.f32.mrb[0].mxu0
    %v4644 = vadd.f32 0.0, %v4643
    %v4645 = vpop.f32.mrb[0].mxu0
    %4646 = vdwg.mxu0
    %v4647 = vadd.f32 %v4229, %v4393
    %v4648 = vadd.f32 %v4230, %v4396
    %v4649 = vadd.f32 %v4231, %v4401
    %v4650 = vadd.f32 %v4232, %v4404
    %v4651 = vadd.f32 %v4233, %v4409
    %v4652 = vadd.f32 %v4234, %v4412
    %v4653 = vadd.f32 %v4235, %v4417
    %v4654 = vadd.f32 %v4236, %v4420
    %v4655 = vadd.f32 %v4237, %v4425
    %v4656 = vadd.f32 %v4238, %v4428
    %v4657 = vadd.f32 %v4239, %v4433
    %v4658 = vadd.f32 %v4240, %v4436
    %v4659 = vadd.f32 %v4241, %v4441
    %v4660 = vadd.f32 %v4242, %v4444
    %v4661 = vadd.f32 %v4243, %v4449
    %v4662 = vadd.f32 %v4244, %v4452
    %v4663 = vadd.f32 %v4245, %v4457
    %v4664 = vadd.f32 %v4246, %v4460
    %v4665 = vadd.f32 %v4247, %v4465
    %v4666 = vadd.f32 %v4248, %v4468
    %v4667 = vadd.f32 %v4249, %v4473
    %v4668 = vadd.f32 %v4250, %v4476
    %v4669 = vadd.f32 %v4251, %v4481
    %v4670 = vadd.f32 %v4252, %v4484
    %v4671 = vadd.f32 %v4253, %v4489
    %v4672 = vadd.f32 %v4254, %v4492
    %v4673 = vadd.f32 %v4255, %v4497
    %v4674 = vadd.f32 %v4256, %v4500
    %v4675 = vadd.f32 %v4257, %v4505
    %v4676 = vadd.f32 %v4258, %v4508
    %v4677 = vadd.f32 %v4259, %v4513
    %v4678 = vadd.f32 %v4260, %v4516
    %v4679 = vadd.f32 %v4261, %v4521
    %v4680 = vadd.f32 %v4262, %v4524
    %v4681 = vadd.f32 %v4263, %v4529
    %v4682 = vadd.f32 %v4264, %v4532
    %v4683 = vadd.f32 %v4265, %v4537
    %v4684 = vadd.f32 %v4266, %v4540
    %v4685 = vadd.f32 %v4267, %v4545
    %v4686 = vadd.f32 %v4268, %v4548
    %v4687 = vadd.f32 %v4269, %v4553
    %v4688 = vadd.f32 %v4270, %v4556
    %v4689 = vadd.f32 %v4271, %v4561
    %v4690 = vadd.f32 %v4272, %v4564
    %v4691 = vadd.f32 %v4273, %v4569
    %v4692 = vadd.f32 %v4274, %v4572
    %v4693 = vadd.f32 %v4275, %v4577
    %v4694 = vadd.f32 %v4276, %v4580
    %v4695 = vadd.f32 %v4277, %v4585
    %v4696 = vadd.f32 %v4278, %v4588
    %v4697 = vadd.f32 %v4279, %v4593
    %v4698 = vadd.f32 %v4280, %v4596
    %v4699 = vadd.f32 %v4281, %v4601
    %v4700 = vadd.f32 %v4282, %v4604
    %v4701 = vadd.f32 %v4283, %v4609
    %v4702 = vadd.f32 %v4284, %v4612
    %v4703 = vadd.f32 %v4285, %v4617
    %v4704 = vadd.f32 %v4286, %v4620
    %v4705 = vadd.f32 %v4287, %v4625
    %v4706 = vadd.f32 %v4288, %v4628
    %v4707 = vadd.f32 %v4289, %v4633
    %v4708 = vadd.f32 %v4290, %v4636
    %v4709 = vadd.f32 %v4291, %v4641
    %v4710 = vadd.f32 %v4292, %v4644
    %v4713 = vrot.slane %v67, 5
    %v4714 = vrot.slane %v4713, 4
    %v4715 = vrot.slane %v68, 5
    %v4716 = vsel %vm1966, %v4714, %v4715
    %v4717 = vrot.slane %v4715, 4
    %v4718 = vrot.slane %v69, 5
    %v4719 = vsel %vm1966, %v4717, %v4718
    %v4720 = vrot.slane %v121, 5
    %v4721 = vrot.slane %v4720, 4
    %v4722 = vrot.slane %v122, 5
    %v4723 = vsel %vm1966, %v4721, %v4722
    %v4724 = vrot.slane %v4722, 4
    %v4725 = vrot.slane %v123, 5
    %v4726 = vsel %vm1966, %v4724, %v4725
    %s4727 = scalar_lea.vmem %s1, 32
    %v4728 = vld [vmem:[%s4727] sm:$0xf]
    %v4729 = vunpack.c.l.b16 %v4716
    %v4730 = vunpack.c.l.b16 %v4719
    %v4731 = vunpack.c.l.b16 %v4723
    %v4732 = vunpack.c.l.b16 %v4726
    %v4733 = vpack.c.b16 %v4730, %v4729
    %v4734 = vpack.c.b16 %v4732, %v4731
    %v4736 = vsel %vm994, %v4733, 0
    %v4739 = vsel %vm994, %v4734, 0
    %v4742 = vsel %vm1091, %v4728, 0
    %4744 = vmatprep.subr.bf16.mxu0 0
    %4745 = vmatpush1.bf16.msra.mxu0 %v4742
    %4746 = vmatprep.subr.bf16.mxu0 0
    %4747 = vmatpush1.bf16.msra.mxu0 0
    %4748 = vmatprep.subr.bf16.mxu0 0
    %4749 = vmatpush1.bf16.msra.mxu0 0
    %4750 = vmatprep.subr.bf16.mxu0 0
    %4751 = vmatpush1.bf16.msra.mxu0 0
    %4752 = vmatprep.subr.bf16.mxu0 0
    %4753 = vmatpush1.bf16.msra.mxu0 0
    %4754 = vmatprep.subr.bf16.mxu0 0
    %4755 = vmatpush1.bf16.msra.mxu0 0
    %4756 = vmatprep.subr.bf16.mxu0 0
    %4757 = vmatpush1.bf16.msra.mxu0 0
    %4758 = vmatprep.subr.bf16.mxu0 0
    %4759 = vmatpush1.bf16.msra.mxu0 0
    %4760 = vmatprep.subr.bf16.mxu0 0
    %4761 = vmatpush1.bf16.msra.mxu0 0
    %4762 = vmatprep.subr.bf16.mxu0 0
    %4763 = vmatpush1.bf16.msra.mxu0 0
    %4764 = vmatprep.subr.bf16.mxu0 0
    %4765 = vmatpush1.bf16.msra.mxu0 0
    %4766 = vmatprep.subr.bf16.mxu0 0
    %4767 = vmatpush1.bf16.msra.mxu0 0
    %4768 = vmatprep.subr.bf16.mxu0 0
    %4769 = vmatpush1.bf16.msra.mxu0 0
    %4770 = vmatprep.subr.bf16.mxu0 0
    %4771 = vmatpush1.bf16.msra.mxu0 0
    %4772 = vmatprep.subr.bf16.mxu0 0
    %4773 = vmatpush1.bf16.msra.mxu0 0
    %4774 = vmatprep.subr.bf16.mxu0 0
    %4775 = vmatpush1.bf16.msra.mxu0 0
    %4776 = vmatprep.mubr.bf16.mxu0 0
    %4777 = vmatmul.mubr.bf16.gmra.mrb[0].mxu0 %v2296
    %v4778 = vpop.f32.mrb[0].mxu0
    %v4779 = vadd.f32 0.0, %v4778
    %v4780 = vpop.f32.mrb[0].mxu0
    %v4781 = vpop.f32.mrb[0].mxu0
    %v4782 = vadd.f32 0.0, %v4781
    %v4783 = vpop.f32.mrb[0].mxu0
    %4784 = vmatprep.mubr.bf16.mxu0 0
    %4785 = vmatmul.mubr.bf16.gmra.mrb[0].mxu0 %v2299
    %v4786 = vpop.f32.mrb[0].mxu0
    %v4787 = vadd.f32 0.0, %v4786
    %v4788 = vpop.f32.mrb[0].mxu0
    %v4789 = vpop.f32.mrb[0].mxu0
    %v4790 = vadd.f32 0.0, %v4789
    %v4791 = vpop.f32.mrb[0].mxu0
    %4792 = vmatprep.mubr.bf16.mxu0 0
    %4793 = vmatmul.mubr.bf16.gmra.mrb[0].mxu0 %v2302
    %v4794 = vpop.f32.mrb[0].mxu0
    %v4795 = vadd.f32 0.0, %v4794
    %v4796 = vpop.f32.mrb[0].mxu0
    %v4797 = vpop.f32.mrb[0].mxu0
    %v4798 = vadd.f32 0.0, %v4797
    %v4799 = vpop.f32.mrb[0].mxu0
    %4800 = vmatprep.mubr.bf16.mxu0 0
    %4801 = vmatmul.mubr.bf16.gmra.mrb[0].mxu0 %v2305
    %v4802 = vpop.f32.mrb[0].mxu0
    %v4803 = vadd.f32 0.0, %v4802
    %v4804 = vpop.f32.mrb[0].mxu0
    %v4805 = vpop.f32.mrb[0].mxu0
    %v4806 = vadd.f32 0.0, %v4805
    %v4807 = vpop.f32.mrb[0].mxu0
    %4808 = vmatprep.mubr.bf16.mxu0 0
    %4809 = vmatmul.mubr.bf16.gmra.mrb[0].mxu0 %v2308
    %v4810 = vpop.f32.mrb[0].mxu0
    %v4811 = vadd.f32 0.0, %v4810
    %v4812 = vpop.f32.mrb[0].mxu0
    %v4813 = vpop.f32.mrb[0].mxu0
    %v4814 = vadd.f32 0.0, %v4813
    %v4815 = vpop.f32.mrb[0].mxu0
    %4816 = vmatprep.mubr.bf16.mxu0 0
    %4817 = vmatmul.mubr.bf16.gmra.mrb[0].mxu0 %v2311
    %v4818 = vpop.f32.mrb[0].mxu0
    %v4819 = vadd.f32 0.0, %v4818
    %v4820 = vpop.f32.mrb[0].mxu0
    %v4821 = vpop.f32.mrb[0].mxu0
    %v4822 = vadd.f32 0.0, %v4821
    %v4823 = vpop.f32.mrb[0].mxu0
    %4824 = vmatprep.mubr.bf16.mxu0 0
    %4825 = vmatmul.mubr.bf16.gmra.mrb[0].mxu0 %v2314
    %v4826 = vpop.f32.mrb[0].mxu0
    %v4827 = vadd.f32 0.0, %v4826
    %v4828 = vpop.f32.mrb[0].mxu0
    %v4829 = vpop.f32.mrb[0].mxu0
    %v4830 = vadd.f32 0.0, %v4829
    %v4831 = vpop.f32.mrb[0].mxu0
    %4832 = vmatprep.mubr.bf16.mxu0 0
    %4833 = vmatmul.mubr.bf16.gmra.mrb[0].mxu0 %v2317
    %v4834 = vpop.f32.mrb[0].mxu0
    %v4835 = vadd.f32 0.0, %v4834
    %v4836 = vpop.f32.mrb[0].mxu0
    %v4837 = vpop.f32.mrb[0].mxu0
    %v4838 = vadd.f32 0.0, %v4837
    %v4839 = vpop.f32.mrb[0].mxu0
    %4840 = vmatprep.mubr.bf16.mxu0 0
    %4841 = vmatmul.mubr.bf16.gmra.mrb[0].mxu0 %v2320
    %v4842 = vpop.f32.mrb[0].mxu0
    %v4843 = vadd.f32 0.0, %v4842
    %v4844 = vpop.f32.mrb[0].mxu0
    %v4845 = vpop.f32.mrb[0].mxu0
    %v4846 = vadd.f32 0.0, %v4845
    %v4847 = vpop.f32.mrb[0].mxu0
    %4848 = vmatprep.mubr.bf16.mxu0 0
    %4849 = vmatmul.mubr.bf16.gmra.mrb[0].mxu0 %v2323
    %v4850 = vpop.f32.mrb[0].mxu0
    %v4851 = vadd.f32 0.0, %v4850
    %v4852 = vpop.f32.mrb[0].mxu0
    %v4853 = vpop.f32.mrb[0].mxu0
    %v4854 = vadd.f32 0.0, %v4853
    %v4855 = vpop.f32.mrb[0].mxu0
    %4856 = vmatprep.mubr.bf16.mxu0 0
    %4857 = vmatmul.mubr.bf16.gmra.mrb[0].mxu0 %v2326
    %v4858 = vpop.f32.mrb[0].mxu0
    %v4859 = vadd.f32 0.0, %v4858
    %v4860 = vpop.f32.mrb[0].mxu0
    %v4861 = vpop.f32.mrb[0].mxu0
    %v4862 = vadd.f32 0.0, %v4861
    %v4863 = vpop.f32.mrb[0].mxu0
    %4864 = vmatprep.mubr.bf16.mxu0 0
    %4865 = vmatmul.mubr.bf16.gmra.mrb[0].mxu0 %v2329
    %v4866 = vpop.f32.mrb[0].mxu0
    %v4867 = vadd.f32 0.0, %v4866
    %v4868 = vpop.f32.mrb[0].mxu0
    %v4869 = vpop.f32.mrb[0].mxu0
    %v4870 = vadd.f32 0.0, %v4869
    %v4871 = vpop.f32.mrb[0].mxu0
    %4872 = vmatprep.mubr.bf16.mxu0 0
    %4873 = vmatmul.mubr.bf16.gmra.mrb[0].mxu0 %v2332
    %v4874 = vpop.f32.mrb[0].mxu0
    %v4875 = vadd.f32 0.0, %v4874
    %v4876 = vpop.f32.mrb[0].mxu0
    %v4877 = vpop.f32.mrb[0].mxu0
    %v4878 = vadd.f32 0.0, %v4877
    %v4879 = vpop.f32.mrb[0].mxu0
    %4880 = vmatprep.mubr.bf16.mxu0 0
    %4881 = vmatmul.mubr.bf16.gmra.mrb[0].mxu0 %v2335
    %v4882 = vpop.f32.mrb[0].mxu0
    %v4883 = vadd.f32 0.0, %v4882
    %v4884 = vpop.f32.mrb[0].mxu0
    %v4885 = vpop.f32.mrb[0].mxu0
    %v4886 = vadd.f32 0.0, %v4885
    %v4887 = vpop.f32.mrb[0].mxu0
    %4888 = vmatprep.mubr.bf16.mxu0 0
    %4889 = vmatmul.mubr.bf16.gmra.mrb[0].mxu0 %v3558
    %v4890 = vpop.f32.mrb[0].mxu0
    %v4891 = vadd.f32 0.0, %v4890
    %v4892 = vpop.f32.mrb[0].mxu0
    %v4893 = vpop.f32.mrb[0].mxu0
    %v4894 = vadd.f32 0.0, %v4893
    %v4895 = vpop.f32.mrb[0].mxu0
    %4896 = vmatprep.mubr.bf16.mxu0 0
    %4897 = vmatmul.mubr.bf16.gmra.mrb[0].mxu0 %v4736
    %v4898 = vpop.f32.mrb[0].mxu0
    %v4899 = vadd.f32 0.0, %v4898
    %v4900 = vpop.f32.mrb[0].mxu0
    %v4901 = vpop.f32.mrb[0].mxu0
    %v4902 = vadd.f32 0.0, %v4901
    %v4903 = vpop.f32.mrb[0].mxu0
    %4904 = vmatprep.mubr.bf16.mxu0 0
    %4905 = vmatmul.mubr.bf16.gmra.mrb[0].mxu0 %v2344
    %v4906 = vpop.f32.mrb[0].mxu0
    %v4907 = vadd.f32 0.0, %v4906
    %v4908 = vpop.f32.mrb[0].mxu0
    %v4909 = vpop.f32.mrb[0].mxu0
    %v4910 = vadd.f32 0.0, %v4909
    %v4911 = vpop.f32.mrb[0].mxu0
    %4912 = vmatprep.mubr.bf16.mxu0 0
    %4913 = vmatmul.mubr.bf16.gmra.mrb[0].mxu0 %v2347
    %v4914 = vpop.f32.mrb[0].mxu0
    %v4915 = vadd.f32 0.0, %v4914
    %v4916 = vpop.f32.mrb[0].mxu0
    %v4917 = vpop.f32.mrb[0].mxu0
    %v4918 = vadd.f32 0.0, %v4917
    %v4919 = vpop.f32.mrb[0].mxu0
    %4920 = vmatprep.mubr.bf16.mxu0 0
    %4921 = vmatmul.mubr.bf16.gmra.mrb[0].mxu0 %v2350
    %v4922 = vpop.f32.mrb[0].mxu0
    %v4923 = vadd.f32 0.0, %v4922
    %v4924 = vpop.f32.mrb[0].mxu0
    %v4925 = vpop.f32.mrb[0].mxu0
    %v4926 = vadd.f32 0.0, %v4925
    %v4927 = vpop.f32.mrb[0].mxu0
    %4928 = vmatprep.mubr.bf16.mxu0 0
    %4929 = vmatmul.mubr.bf16.gmra.mrb[0].mxu0 %v2353
    %v4930 = vpop.f32.mrb[0].mxu0
    %v4931 = vadd.f32 0.0, %v4930
    %v4932 = vpop.f32.mrb[0].mxu0
    %v4933 = vpop.f32.mrb[0].mxu0
    %v4934 = vadd.f32 0.0, %v4933
    %v4935 = vpop.f32.mrb[0].mxu0
    %4936 = vmatprep.mubr.bf16.mxu0 0
    %4937 = vmatmul.mubr.bf16.gmra.mrb[0].mxu0 %v2356
    %v4938 = vpop.f32.mrb[0].mxu0
    %v4939 = vadd.f32 0.0, %v4938
    %v4940 = vpop.f32.mrb[0].mxu0
    %v4941 = vpop.f32.mrb[0].mxu0
    %v4942 = vadd.f32 0.0, %v4941
    %v4943 = vpop.f32.mrb[0].mxu0
    %4944 = vmatprep.mubr.bf16.mxu0 0
    %4945 = vmatmul.mubr.bf16.gmra.mrb[0].mxu0 %v2359
    %v4946 = vpop.f32.mrb[0].mxu0
    %v4947 = vadd.f32 0.0, %v4946
    %v4948 = vpop.f32.mrb[0].mxu0
    %v4949 = vpop.f32.mrb[0].mxu0
    %v4950 = vadd.f32 0.0, %v4949
    %v4951 = vpop.f32.mrb[0].mxu0
    %4952 = vmatprep.mubr.bf16.mxu0 0
    %4953 = vmatmul.mubr.bf16.gmra.mrb[0].mxu0 %v2362
    %v4954 = vpop.f32.mrb[0].mxu0
    %v4955 = vadd.f32 0.0, %v4954
    %v4956 = vpop.f32.mrb[0].mxu0
    %v4957 = vpop.f32.mrb[0].mxu0
    %v4958 = vadd.f32 0.0, %v4957
    %v4959 = vpop.f32.mrb[0].mxu0
    %4960 = vmatprep.mubr.bf16.mxu0 0
    %4961 = vmatmul.mubr.bf16.gmra.mrb[0].mxu0 %v2365
    %v4962 = vpop.f32.mrb[0].mxu0
    %v4963 = vadd.f32 0.0, %v4962
    %v4964 = vpop.f32.mrb[0].mxu0
    %v4965 = vpop.f32.mrb[0].mxu0
    %v4966 = vadd.f32 0.0, %v4965
    %v4967 = vpop.f32.mrb[0].mxu0
    %4968 = vmatprep.mubr.bf16.mxu0 0
    %4969 = vmatmul.mubr.bf16.gmra.mrb[0].mxu0 %v2368
    %v4970 = vpop.f32.mrb[0].mxu0
    %v4971 = vadd.f32 0.0, %v4970
    %v4972 = vpop.f32.mrb[0].mxu0
    %v4973 = vpop.f32.mrb[0].mxu0
    %v4974 = vadd.f32 0.0, %v4973
    %v4975 = vpop.f32.mrb[0].mxu0
    %4976 = vmatprep.mubr.bf16.mxu0 0
    %4977 = vmatmul.mubr.bf16.gmra.mrb[0].mxu0 %v2371
    %v4978 = vpop.f32.mrb[0].mxu0
    %v4979 = vadd.f32 0.0, %v4978
    %v4980 = vpop.f32.mrb[0].mxu0
    %v4981 = vpop.f32.mrb[0].mxu0
    %v4982 = vadd.f32 0.0, %v4981
    %v4983 = vpop.f32.mrb[0].mxu0
    %4984 = vmatprep.mubr.bf16.mxu0 0
    %4985 = vmatmul.mubr.bf16.gmra.mrb[0].mxu0 %v2374
    %v4986 = vpop.f32.mrb[0].mxu0
    %v4987 = vadd.f32 0.0, %v4986
    %v4988 = vpop.f32.mrb[0].mxu0
    %v4989 = vpop.f32.mrb[0].mxu0
    %v4990 = vadd.f32 0.0, %v4989
    %v4991 = vpop.f32.mrb[0].mxu0
    %4992 = vmatprep.mubr.bf16.mxu0 0
    %4993 = vmatmul.mubr.bf16.gmra.mrb[0].mxu0 %v2377
    %v4994 = vpop.f32.mrb[0].mxu0
    %v4995 = vadd.f32 0.0, %v4994
    %v4996 = vpop.f32.mrb[0].mxu0
    %v4997 = vpop.f32.mrb[0].mxu0
    %v4998 = vadd.f32 0.0, %v4997
    %v4999 = vpop.f32.mrb[0].mxu0
    %5000 = vmatprep.mubr.bf16.mxu0 0
    %5001 = vmatmul.mubr.bf16.gmra.mrb[0].mxu0 %v2380
    %v5002 = vpop.f32.mrb[0].mxu0
    %v5003 = vadd.f32 0.0, %v5002
    %v5004 = vpop.f32.mrb[0].mxu0
    %v5005 = vpop.f32.mrb[0].mxu0
    %v5006 = vadd.f32 0.0, %v5005
    %v5007 = vpop.f32.mrb[0].mxu0
    %5008 = vmatprep.mubr.bf16.mxu0 0
    %5009 = vmatmul.mubr.bf16.gmra.mrb[0].mxu0 %v2383
    %v5010 = vpop.f32.mrb[0].mxu0
    %v5011 = vadd.f32 0.0, %v5010
    %v5012 = vpop.f32.mrb[0].mxu0
    %v5013 = vpop.f32.mrb[0].mxu0
    %v5014 = vadd.f32 0.0, %v5013
    %v5015 = vpop.f32.mrb[0].mxu0
    %5016 = vmatprep.mubr.bf16.mxu0 0
    %5017 = vmatmul.mubr.bf16.gmra.mrb[0].mxu0 %v3561
    %v5018 = vpop.f32.mrb[0].mxu0
    %v5019 = vadd.f32 0.0, %v5018
    %v5020 = vpop.f32.mrb[0].mxu0
    %v5021 = vpop.f32.mrb[0].mxu0
    %v5022 = vadd.f32 0.0, %v5021
    %v5023 = vpop.f32.mrb[0].mxu0
    %5024 = vmatprep.mubr.bf16.mxu0 0
    %5025 = vmatmul.mubr.bf16.gmra.mrb[0].mxu0 %v4739
    %v5026 = vpop.f32.mrb[0].mxu0
    %v5027 = vadd.f32 0.0, %v5026
    %v5028 = vpop.f32.mrb[0].mxu0
    %v5029 = vpop.f32.mrb[0].mxu0
    %v5030 = vadd.f32 0.0, %v5029
    %v5031 = vpop.f32.mrb[0].mxu0
    %5032 = vdwg.mxu0
    %v5033 = vadd.f32 %v4647, %v4779
    %v5034 = vadd.f32 %v4648, %v4782
    %v5035 = vadd.f32 %v4649, %v4787
    %v5036 = vadd.f32 %v4650, %v4790
    %v5037 = vadd.f32 %v4651, %v4795
    %v5038 = vadd.f32 %v4652, %v4798
    %v5039 = vadd.f32 %v4653, %v4803
    %v5040 = vadd.f32 %v4654, %v4806
    %v5041 = vadd.f32 %v4655, %v4811
    %v5042 = vadd.f32 %v4656, %v4814
    %v5043 = vadd.f32 %v4657, %v4819
    %v5044 = vadd.f32 %v4658, %v4822
    %v5045 = vadd.f32 %v4659, %v4827
    %v5046 = vadd.f32 %v4660, %v4830
    %v5047 = vadd.f32 %v4661, %v4835
    %v5048 = vadd.f32 %v4662, %v4838
    %v5049 = vadd.f32 %v4663, %v4843
    %v5050 = vadd.f32 %v4664, %v4846
    %v5051 = vadd.f32 %v4665, %v4851
    %v5052 = vadd.f32 %v4666, %v4854
    %v5053 = vadd.f32 %v4667, %v4859
    %v5054 = vadd.f32 %v4668, %v4862
    %v5055 = vadd.f32 %v4669, %v4867
    %v5056 = vadd.f32 %v4670, %v4870
    %v5057 = vadd.f32 %v4671, %v4875
    %v5058 = vadd.f32 %v4672, %v4878
    %v5059 = vadd.f32 %v4673, %v4883
    %v5060 = vadd.f32 %v4674, %v4886
    %v5061 = vadd.f32 %v4675, %v4891
    %v5062 = vadd.f32 %v4676, %v4894
    %v5063 = vadd.f32 %v4677, %v4899
    %v5064 = vadd.f32 %v4678, %v4902
    %v5065 = vadd.f32 %v4679, %v4907
    %v5066 = vadd.f32 %v4680, %v4910
    %v5067 = vadd.f32 %v4681, %v4915
    %v5068 = vadd.f32 %v4682, %v4918
    %v5069 = vadd.f32 %v4683, %v4923
    %v5070 = vadd.f32 %v4684, %v4926
    %v5071 = vadd.f32 %v4685, %v4931
    %v5072 = vadd.f32 %v4686, %v4934
    %v5073 = vadd.f32 %v4687, %v4939
    %v5074 = vadd.f32 %v4688, %v4942
    %v5075 = vadd.f32 %v4689, %v4947
    %v5076 = vadd.f32 %v4690, %v4950
    %v5077 = vadd.f32 %v4691, %v4955
    %v5078 = vadd.f32 %v4692, %v4958
    %v5079 = vadd.f32 %v4693, %v4963
    %v5080 = vadd.f32 %v4694, %v4966
    %v5081 = vadd.f32 %v4695, %v4971
    %v5082 = vadd.f32 %v4696, %v4974
    %v5083 = vadd.f32 %v4697, %v4979
    %v5084 = vadd.f32 %v4698, %v4982
    %v5085 = vadd.f32 %v4699, %v4987
    %v5086 = vadd.f32 %v4700, %v4990
    %v5087 = vadd.f32 %v4701, %v4995
    %v5088 = vadd.f32 %v4702, %v4998
    %v5089 = vadd.f32 %v4703, %v5003
    %v5090 = vadd.f32 %v4704, %v5006
    %v5091 = vadd.f32 %v4705, %v5011
    %v5092 = vadd.f32 %v4706, %v5014
    %v5093 = vadd.f32 %v4707, %v5019
    %v5094 = vadd.f32 %v4708, %v5022
    %v5095 = vadd.f32 %v4709, %v5027
    %v5096 = vadd.f32 %v4710, %v5030
    %v5097 = vld [vmem:[%s2] sm:$0x1]
    %v5099 = vlaneseq
    %v5100 = vshrl.u32 %v5099, 7
    %v5101 = vsub.s32 0, %v5100
    %v5102 = vrot.slane %v5097, %v5101
    %v5104 = vadd.f32 %v5033, %v5102
    %v5105 = vadd.f32 %v5034, %v5102
    %v5106 = vadd.f32 %v5035, %v5102
    %v5107 = vadd.f32 %v5036, %v5102
    %v5108 = vadd.f32 %v5037, %v5102
    %v5109 = vadd.f32 %v5038, %v5102
    %v5110 = vadd.f32 %v5039, %v5102
    %v5111 = vadd.f32 %v5040, %v5102
    %v5112 = vadd.f32 %v5041, %v5102
    %v5113 = vadd.f32 %v5042, %v5102
    %v5114 = vadd.f32 %v5043, %v5102
    %v5115 = vadd.f32 %v5044, %v5102
    %v5116 = vadd.f32 %v5045, %v5102
    %v5117 = vadd.f32 %v5046, %v5102
    %v5118 = vadd.f32 %v5047, %v5102
    %v5119 = vadd.f32 %v5048, %v5102
    %v5120 = vadd.f32 %v5049, %v5102
    %v5121 = vadd.f32 %v5050, %v5102
    %v5122 = vadd.f32 %v5051, %v5102
    %v5123 = vadd.f32 %v5052, %v5102
    %v5124 = vadd.f32 %v5053, %v5102
    %v5125 = vadd.f32 %v5054, %v5102
    %v5126 = vadd.f32 %v5055, %v5102
    %v5127 = vadd.f32 %v5056, %v5102
    %v5128 = vadd.f32 %v5057, %v5102
    %v5129 = vadd.f32 %v5058, %v5102
    %v5130 = vadd.f32 %v5059, %v5102
    %v5131 = vadd.f32 %v5060, %v5102
    %v5132 = vadd.f32 %v5061, %v5102
    %v5133 = vadd.f32 %v5062, %v5102
    %v5134 = vadd.f32 %v5063, %v5102
    %v5135 = vadd.f32 %v5064, %v5102
    %v5136 = vadd.f32 %v5065, %v5102
    %v5137 = vadd.f32 %v5066, %v5102
    %v5138 = vadd.f32 %v5067, %v5102
    %v5139 = vadd.f32 %v5068, %v5102
    %v5140 = vadd.f32 %v5069, %v5102
    %v5141 = vadd.f32 %v5070, %v5102
    %v5142 = vadd.f32 %v5071, %v5102
    %v5143 = vadd.f32 %v5072, %v5102
    %v5144 = vadd.f32 %v5073, %v5102
    %v5145 = vadd.f32 %v5074, %v5102
    %v5146 = vadd.f32 %v5075, %v5102
    %v5147 = vadd.f32 %v5076, %v5102
    %v5148 = vadd.f32 %v5077, %v5102
    %v5149 = vadd.f32 %v5078, %v5102
    %v5150 = vadd.f32 %v5079, %v5102
    %v5151 = vadd.f32 %v5080, %v5102
    %v5152 = vadd.f32 %v5081, %v5102
    %v5153 = vadd.f32 %v5082, %v5102
    %v5154 = vadd.f32 %v5083, %v5102
    %v5155 = vadd.f32 %v5084, %v5102
    %v5156 = vadd.f32 %v5085, %v5102
    %v5157 = vadd.f32 %v5086, %v5102
    %v5158 = vadd.f32 %v5087, %v5102
    %v5159 = vadd.f32 %v5088, %v5102
    %v5160 = vadd.f32 %v5089, %v5102
    %v5161 = vadd.f32 %v5090, %v5102
    %v5162 = vadd.f32 %v5091, %v5102
    %v5163 = vadd.f32 %v5092, %v5102
    %v5164 = vadd.f32 %v5093, %v5102
    %v5165 = vadd.f32 %v5094, %v5102
    %v5166 = vadd.f32 %v5095, %v5102
    %v5167 = vadd.f32 %v5096, %v5102
    %v5168 = vmax.f32 %v5104, 0.0
    %v5169 = vmax.f32 %v5105, 0.0
    %v5170 = vmax.f32 %v5106, 0.0
    %v5171 = vmax.f32 %v5107, 0.0
    %v5172 = vmax.f32 %v5108, 0.0
    %v5173 = vmax.f32 %v5109, 0.0
    %v5174 = vmax.f32 %v5110, 0.0
    %v5175 = vmax.f32 %v5111, 0.0
    %v5176 = vmax.f32 %v5112, 0.0
    %v5177 = vmax.f32 %v5113, 0.0
    %v5178 = vmax.f32 %v5114, 0.0
    %v5179 = vmax.f32 %v5115, 0.0
    %v5180 = vmax.f32 %v5116, 0.0
    %v5181 = vmax.f32 %v5117, 0.0
    %v5182 = vmax.f32 %v5118, 0.0
    %v5183 = vmax.f32 %v5119, 0.0
    %v5184 = vmax.f32 %v5120, 0.0
    %v5185 = vmax.f32 %v5121, 0.0
    %v5186 = vmax.f32 %v5122, 0.0
    %v5187 = vmax.f32 %v5123, 0.0
    %v5188 = vmax.f32 %v5124, 0.0
    %v5189 = vmax.f32 %v5125, 0.0
    %v5190 = vmax.f32 %v5126, 0.0
    %v5191 = vmax.f32 %v5127, 0.0
    %v5192 = vmax.f32 %v5128, 0.0
    %v5193 = vmax.f32 %v5129, 0.0
    %v5194 = vmax.f32 %v5130, 0.0
    %v5195 = vmax.f32 %v5131, 0.0
    %v5196 = vmax.f32 %v5132, 0.0
    %v5197 = vmax.f32 %v5133, 0.0
    %v5198 = vmax.f32 %v5134, 0.0
    %v5199 = vmax.f32 %v5135, 0.0
    %v5200 = vmax.f32 %v5136, 0.0
    %v5201 = vmax.f32 %v5137, 0.0
    %v5202 = vmax.f32 %v5138, 0.0
    %v5203 = vmax.f32 %v5139, 0.0
    %v5204 = vmax.f32 %v5140, 0.0
    %v5205 = vmax.f32 %v5141, 0.0
    %v5206 = vmax.f32 %v5142, 0.0
    %v5207 = vmax.f32 %v5143, 0.0
    %v5208 = vmax.f32 %v5144, 0.0
    %v5209 = vmax.f32 %v5145, 0.0
    %v5210 = vmax.f32 %v5146, 0.0
    %v5211 = vmax.f32 %v5147, 0.0
    %v5212 = vmax.f32 %v5148, 0.0
    %v5213 = vmax.f32 %v5149, 0.0
    %v5214 = vmax.f32 %v5150, 0.0
    %v5215 = vmax.f32 %v5151, 0.0
    %v5216 = vmax.f32 %v5152, 0.0
    %v5217 = vmax.f32 %v5153, 0.0
    %v5218 = vmax.f32 %v5154, 0.0
    %v5219 = vmax.f32 %v5155, 0.0
    %v5220 = vmax.f32 %v5156, 0.0
    %v5221 = vmax.f32 %v5157, 0.0
    %v5222 = vmax.f32 %v5158, 0.0
    %v5223 = vmax.f32 %v5159, 0.0
    %v5224 = vmax.f32 %v5160, 0.0
    %v5225 = vmax.f32 %v5161, 0.0
    %v5226 = vmax.f32 %v5162, 0.0
    %v5227 = vmax.f32 %v5163, 0.0
    %v5228 = vmax.f32 %v5164, 0.0
    %v5229 = vmax.f32 %v5165, 0.0
    %v5230 = vmax.f32 %v5166, 0.0
    %v5231 = vmax.f32 %v5167, 0.0
    %5232 = vst [vmem:[#allocation2] sm:$0xff] %v5168
    %5233 = vst [vmem:[#allocation2 + $0x8] sm:$0xff] %v5169
    %5234 = vst [vmem:[#allocation2 + $0x10] sm:$0xff] %v5170
    %5235 = vst [vmem:[#allocation2 + $0x18] sm:$0xff] %v5171
    %5236 = vst [vmem:[#allocation2 + $0x20] sm:$0xff] %v5172
    %5237 = vst [vmem:[#allocation2 + $0x28] sm:$0xff] %v5173
    %5238 = vst [vmem:[#allocation2 + $0x30] sm:$0xff] %v5174
    %5239 = vst [vmem:[#allocation2 + $0x38] sm:$0xff] %v5175
    %5240 = vst [vmem:[#allocation2 + $0x40] sm:$0xff] %v5176
    %5241 = vst [vmem:[#allocation2 + $0x48] sm:$0xff] %v5177
    %5242 = vst [vmem:[#allocation2 + $0x50] sm:$0xff] %v5178
    %5243 = vst [vmem:[#allocation2 + $0x58] sm:$0xff] %v5179
    %5244 = vst [vmem:[#allocation2 + $0x60] sm:$0xff] %v5180
    %5245 = vst [vmem:[#allocation2 + $0x68] sm:$0xff] %v5181
    %5246 = vst [vmem:[#allocation2 + $0x70] sm:$0xff] %v5182
    %5247 = vst [vmem:[#allocation2 + $0x78] sm:$0xff] %v5183
    %5248 = vst [vmem:[#allocation2 + $0x80] sm:$0xff] %v5184
    %5249 = vst [vmem:[#allocation2 + $0x88] sm:$0xff] %v5185
    %5250 = vst [vmem:[#allocation2 + $0x90] sm:$0xff] %v5186
    %5251 = vst [vmem:[#allocation2 + $0x98] sm:$0xff] %v5187
    %5252 = vst [vmem:[#allocation2 + $0xa0] sm:$0xff] %v5188
    %5253 = vst [vmem:[#allocation2 + $0xa8] sm:$0xff] %v5189
    %5254 = vst [vmem:[#allocation2 + $0xb0] sm:$0xff] %v5190
    %5255 = vst [vmem:[#allocation2 + $0xb8] sm:$0xff] %v5191
    %5256 = vst [vmem:[#allocation2 + $0xc0] sm:$0xff] %v5192
    %5257 = vst [vmem:[#allocation2 + $0xc8] sm:$0xff] %v5193
    %5258 = vst [vmem:[#allocation2 + $0xd0] sm:$0xff] %v5194
    %5259 = vst [vmem:[#allocation2 + $0xd8] sm:$0xff] %v5195
    %5260 = vst [vmem:[#allocation2 + $0xe0] sm:$0xff] %v5196
    %5261 = vst [vmem:[#allocation2 + $0xe8] sm:$0xff] %v5197
    %5262 = vst [vmem:[#allocation2 + $0xf0] sm:$0xff] %v5198
    %5263 = vst [vmem:[#allocation2 + $0xf8] sm:$0xff] %v5199
    %5264 = vst [vmem:[#allocation2 + $0x100] sm:$0xff] %v5200
    %5265 = vst [vmem:[#allocation2 + $0x108] sm:$0xff] %v5201
    %5266 = vst [vmem:[#allocation2 + $0x110] sm:$0xff] %v5202
    %5267 = vst [vmem:[#allocation2 + $0x118] sm:$0xff] %v5203
    %5268 = vst [vmem:[#allocation2 + $0x120] sm:$0xff] %v5204
    %5269 = vst [vmem:[#allocation2 + $0x128] sm:$0xff] %v5205
    %5270 = vst [vmem:[#allocation2 + $0x130] sm:$0xff] %v5206
    %5271 = vst [vmem:[#allocation2 + $0x138] sm:$0xff] %v5207
    %5272 = vst [vmem:[#allocation2 + $0x140] sm:$0xff] %v5208
    %5273 = vst [vmem:[#allocation2 + $0x148] sm:$0xff] %v5209
    %5274 = vst [vmem:[#allocation2 + $0x150] sm:$0xff] %v5210
    %5275 = vst [vmem:[#allocation2 + $0x158] sm:$0xff] %v5211
    %5276 = vst [vmem:[#allocation2 + $0x160] sm:$0xff] %v5212
    %5277 = vst [vmem:[#allocation2 + $0x168] sm:$0xff] %v5213
    %5278 = vst [vmem:[#allocation2 + $0x170] sm:$0xff] %v5214
    %5279 = vst [vmem:[#allocation2 + $0x178] sm:$0xff] %v5215
    %5280 = vst [vmem:[#allocation2 + $0x180] sm:$0xff] %v5216
    %5281 = vst [vmem:[#allocation2 + $0x188] sm:$0xff] %v5217
    %5282 = vst [vmem:[#allocation2 + $0x190] sm:$0xff] %v5218
    %5283 = vst [vmem:[#allocation2 + $0x198] sm:$0xff] %v5219
    %5284 = vst [vmem:[#allocation2 + $0x1a0] sm:$0xff] %v5220
    %5285 = vst [vmem:[#allocation2 + $0x1a8] sm:$0xff] %v5221
    %5286 = vst [vmem:[#allocation2 + $0x1b0] sm:$0xff] %v5222
    %5287 = vst [vmem:[#allocation2 + $0x1b8] sm:$0xff] %v5223
    %5288 = vst [vmem:[#allocation2 + $0x1c0] sm:$0xff] %v5224
    %5289 = vst [vmem:[#allocation2 + $0x1c8] sm:$0xff] %v5225
    %5290 = vst [vmem:[#allocation2 + $0x1d0] sm:$0xff] %v5226
    %5291 = vst [vmem:[#allocation2 + $0x1d8] sm:$0xff] %v5227
    %5292 = vst [vmem:[#allocation2 + $0x1e0] sm:$0xff] %v5228
    %5293 = vst [vmem:[#allocation2 + $0x1e8] sm:$0xff] %v5229
    %5294 = vst [vmem:[#allocation2 + $0x1f0] sm:$0xff] %v5230
    %5295 = vst [vmem:[#allocation2 + $0x1f8] sm:$0xff] %v5231
    // Predicated region
    $region14: #{tpu_custom_call.1} parent=1 // pred_check
      _
    $region15: #{tpu_custom_call.1} parent=1 // pred_check_branch
      %5297 = sbr.rel (0) target = $region17
    $region16: #{tpu_custom_call.1} parent=1 // pred_region
      %s5299 = ssub.s32 8192, 8192
      %5300 = vsyncadd [#allocation3], %s5299
      %s5301 = sshll.u32 [#allocation2], 4
      %s5302 = int_to_ptr.vmem [resolvable:$true] %s5301
      %5307 = dma.vmem_to_hbm [thread:$0]  %s5302, 8192, %s3, [#allocation3], 128, 128, 8
    $region17: #{tpu_custom_call.1} parent=1 // pred_fallthru
      _
    // Predicated region
    $region18: #{tpu_custom_call.1} parent=1 // pred_check
      _
    $region19: #{tpu_custom_call.1} parent=1 // pred_check_branch
      %5309 = sbr.rel (0) target = $region21
    $region20: #{tpu_custom_call.1} parent=1 // pred_region
      %5310 = dma.done [#allocation3], 8192
    $region21: #{tpu_custom_call.1} parent=1 // pred_fallthru
      _
    %5311 = vsyncpa [#allocation3], 1

</llo_original>
